<compile_context>
chip_gen: v6e
topology: v6e:2x2x1
jax: 0.10.0
libtpu: 0.0.40
codegen_flags: <defaults>
</compile_context>

<pallas_src>
import functools

import jax
import jax.numpy as jnp
from jax import lax
from jax.experimental import pallas as pl
from jax.experimental.pallas import tpu as pltpu


# ---------------------------------------------------------------------------
# Kernel 1: serial L-layer LSTM recurrence (single invocation)
# ---------------------------------------------------------------------------
def lstm_recurrence_kernel(x_ref, h0_ref, c0_ref, *rest,
                           n_layers, hidden, batch, seq_len):
    """rest = 3*n_layers weight refs (w_ih, w_hh, b per layer)
            + (seq_ref, hN_ref, cN_ref) outputs
            + (gin_ref,) VMEM scratch [Npad, 4H] for the hoisted projection."""
    H, B, T = hidden, batch, seq_len
    lw = rest[:3 * n_layers]
    seq_ref, hN_ref, cN_ref = rest[3 * n_layers:3 * n_layers + 3]
    gin_ref = rest[3 * n_layers + 3]

    # Padding rows (T*B .. Npad) are never consumed, but keep them finite.
    seq_ref[...] = jnp.zeros_like(seq_ref)

    for l in range(n_layers):
        w_ih_ref, w_hh_ref, b_ref = lw[3 * l], lw[3 * l + 1], lw[3 * l + 2]

        # ---- hoisted input projection: all timesteps in one matmul --------
        x_in = x_ref[...] if l == 0 else seq_ref[...]          # [Npad, E|H] bf16
        gin_ref[...] = (jnp.dot(x_in, w_ih_ref[...],
                                preferred_element_type=jnp.float32)
                        + b_ref[...])                          # [Npad, 4H] f32

        w_hh = w_hh_ref[...]                                   # [H, 4H] bf16

        def step(t, carry, w_hh=w_hh):
            h, c = carry                                       # f32 [B, H]
            gates = (gin_ref[pl.ds(t * B, B), :]
                     + jnp.dot(h.astype(jnp.bfloat16), w_hh,
                               preferred_element_type=jnp.float32))
            i_g = jax.nn.sigmoid(gates[:, 0 * H:1 * H])        # torch gate order
            f_g = jax.nn.sigmoid(gates[:, 1 * H:2 * H])        # i, f, g, o
            g_g = jnp.tanh(gates[:, 2 * H:3 * H])
            o_g = jax.nn.sigmoid(gates[:, 3 * H:4 * H])
            c_new = f_g * c + i_g * g_g
            h_new = o_g * jnp.tanh(c_new)
            seq_ref[pl.ds(t * B, B), :] = h_new.astype(seq_ref.dtype)
            return (h_new, c_new)

        # bound the unroll: full only for short sequences
        h_f, c_f = lax.fori_loop(0, T, step, (h0_ref[l], c0_ref[l]),
                                 unroll=True if T <= 16 else 4)
        hN_ref[l] = h_f
        cN_ref[l] = c_f


# ---------------------------------------------------------------------------
# Kernel 2: decoder Linear, one lane-dense vocab tile per (parallel) grid step
# ---------------------------------------------------------------------------
def decoder_kernel(x_ref, w_ref, b_ref, o_ref):
    o_ref[...] = (jnp.dot(x_ref[...], w_ref[...],
                          preferred_element_type=jnp.float32)
                  + b_ref[...])


# ---------------------------------------------------------------------------
# Wrapper
# ---------------------------------------------------------------------------
def sequential_rnn_lm_forward(y, h0, c0, params, *, vocab_tile=512):
    """Returns (logits [B,T,V], h_n [L,B,H], c_n [L,B,H]) like the torch module."""
    B, T = y.shape
    L, _, H = h0.shape
    V, E = params["emb"].shape
    N = B * T
    Npad = ((N + 7) // 8) * 8

    # Embedding gather at the XLA level: only T*B rows of the table are needed,
    # so the full [V, E] table never enters VMEM.  Flat time-major rows t*B+b.
    emb = params["emb"][y]                                   # [B, T, E]
    x_flat = jnp.transpose(emb, (1, 0, 2)).reshape(N, E)
    x_flat = jnp.pad(x_flat, ((0, Npad - N), (0, 0))).astype(jnp.bfloat16)

    layer_arrays = []
    for lw in params["layers"]:
        layer_arrays += [lw["w_ih"].astype(jnp.bfloat16),
                         lw["w_hh"].astype(jnp.bfloat16),
                         lw["b"]]

    # ---- kernel 1: serial recurrence (everything VMEM-resident) -----------
    seq, h_n, c_n = pl.pallas_call(
        functools.partial(lstm_recurrence_kernel,
                          n_layers=L, hidden=H, batch=B, seq_len=T),
        out_shape=(
            jax.ShapeDtypeStruct((Npad, H), jnp.bfloat16),   # top-layer hidden
            jax.ShapeDtypeStruct((L, B, H), jnp.float32),    # h_n
            jax.ShapeDtypeStruct((L, B, H), jnp.float32),    # c_n
        ),
        scratch_shapes=[pltpu.VMEM((Npad, 4 * H), jnp.float32)],
    )(x_flat, h0, c0, *layer_arrays)

    # ---- kernel 2: decoder, tiled over the vocab axis ----------------------
    TV = min(vocab_tile, V)
    assert V % TV == 0, "vocab size must be a multiple of the vocab tile"
    logits_flat = pl.pallas_call(
        decoder_kernel,
        grid=(V // TV,),
        in_specs=[
            pl.BlockSpec((Npad, H), lambda j: (0, 0)),       # hidden slab
            pl.BlockSpec((H, TV), lambda j: (0, j)),         # decoder weight tile
            pl.BlockSpec((1, TV), lambda j: (0, j)),         # decoder bias tile
        ],
        out_specs=pl.BlockSpec((Npad, TV), lambda j: (0, j)),
        out_shape=jax.ShapeDtypeStruct((Npad, V), jnp.float32),
        compiler_params=pltpu.CompilerParams(
            dimension_semantics=("parallel",)),
    )(seq, params["w_dec"].astype(jnp.bfloat16), params["b_dec"])

    logits = jnp.transpose(logits_flat[:N].reshape(T, B, V), (1, 0, 2))
    return logits, h_n, c_n


# ---------------------------------------------------------------------------
# Parameters + pure-JAX reference (for a sanity check)
# ---------------------------------------------------------------------------
def init_params(key, V, E, H, L, scale=0.08):
    keys = iter(jax.random.split(key, 2 + 3 * L))

    def w(shape, s=scale):
        return jax.random.normal(next(keys), shape, jnp.float32) * s

    params = {
        "emb": w((V, E)),                       # nn.Embedding weight
        "w_dec": w((H, V)),                     # decoder weight (transposed)
        "b_dec": jnp.zeros((1, V), jnp.float32),
        "layers": [],
    }
    for l in range(L):
        in_dim = E if l == 0 else H
        params["layers"].append({
            "w_ih": w((in_dim, 4 * H)),         # torch weight_ih_l{l}.T
            "w_hh": w((H, 4 * H)),              # torch weight_hh_l{l}.T
            "b": w((1, 4 * H), 0.02),           # torch (b_ih + b_hh)
        })
    return params


def reference_forward(y, h0, c0, params):
    B, T = y.shape
    L, _, H = h0.shape
    x = params["emb"][y]                        # [B, T, E]
    hs, cs = [], []
    for l in range(L):
        lw = params["layers"][l]
        h, c = h0[l], c0[l]
        outs = []
        for t in range(T):
            gates = x[:, t, :] @ lw["w_ih"] + h @ lw["w_hh"] + lw["b"]
            i_g = jax.nn.sigmoid(gates[:, 0 * H:1 * H])
            f_g = jax.nn.sigmoid(gates[:, 1 * H:2 * H])
            g_g = jnp.tanh(gates[:, 2 * H:3 * H])
            o_g = jax.nn.sigmoid(gates[:, 3 * H:4 * H])
            c = f_g * c + i_g * g_g
            h = o_g * jnp.tanh(c)
            outs.append(h)
        x = jnp.stack(outs, axis=1)
        hs.append(h)
        cs.append(c)
    V = params["w_dec"].shape[1]
    logits = (x.reshape(B * T, H) @ params["w_dec"]
              + params["b_dec"]).reshape(B, T, V)
    return logits, jnp.stack(hs), jnp.stack(cs)


# ---------------------------------------------------------------------------
if __name__ == "__main__":
    # small, lane-dense config: batch=2, seq=8, vocab=256, ninp=nhid=128, 2 layers
    B, T = 2, 8
    V, E, H, L = 256, 128, 128, 2

    key = jax.random.PRNGKey(0)
    k_tok, k_h, k_c, k_p = jax.random.split(key, 4)

    y = jax.random.randint(k_tok, (B, T), 0, V, dtype=jnp.int32)
    h0 = jax.random.normal(k_h, (L, B, H), jnp.float32) * 0.1
    c0 = jax.random.normal(k_c, (L, B, H), jnp.float32) * 0.1
    params = init_params(k_p, V, E, H, L)

    logits, h_n, c_n = sequential_rnn_lm_forward(y, h0, c0, params)
    jax.block_until_ready((logits, h_n, c_n))

    assert logits.shape == (B, T, V)
    assert h_n.shape == (L, B, H) and c_n.shape == (L, B, H)

    # sanity check against a pure-JAX reference of the same math
    ref_logits, ref_h, ref_c = reference_forward(y, h0, c0, params)
    for got, ref in ((logits, ref_logits), (h_n, ref_h), (c_n, ref_c)):
        err = jnp.max(jnp.abs(got - ref))
        assert err < 3e-2, f"max abs error too large: {err}"

    print("KERNEL_OK")
</pallas_src>

<mosaic_0001>
module attributes {stable_mosaic.version = 11 : i64} {
  func.func @lstm_recurrence_kernel(%arg0: memref<16x128xbf16, #tpu.memory_space<vmem>>, %arg1: memref<2x2x128xf32, #tpu.memory_space<vmem>>, %arg2: memref<2x2x128xf32, #tpu.memory_space<vmem>>, %arg3: memref<128x512xbf16, #tpu.memory_space<vmem>>, %arg4: memref<128x512xbf16, #tpu.memory_space<vmem>>, %arg5: memref<1x512xf32, #tpu.memory_space<vmem>>, %arg6: memref<128x512xbf16, #tpu.memory_space<vmem>>, %arg7: memref<128x512xbf16, #tpu.memory_space<vmem>>, %arg8: memref<1x512xf32, #tpu.memory_space<vmem>>, %arg9: memref<16x128xbf16, #tpu.memory_space<vmem>>, %arg10: memref<2x2x128xf32, #tpu.memory_space<vmem>>, %arg11: memref<2x2x128xf32, #tpu.memory_space<vmem>>, %arg12: memref<16x512xf32, #tpu.memory_space<vmem>>) attributes {dimension_semantics = [], scalar_prefetch = 0 : i64, scratch_operands = 1 : i64, tpu.core_type = #tpu.core_type<tc>} {
    %cst = arith.constant 0.000000e+00 : bf16
    %0 = vector.broadcast %cst : bf16 to vector<16x128xbf16>
    %c0 = arith.constant 0 : index
    %c0_0 = arith.constant 0 : index
    %1 = vector.load %arg9[%c0, %c0_0] : memref<16x128xbf16, #tpu.memory_space<vmem>>, vector<16x128xbf16>
    tpu.vector_store %arg9[%c0, %c0_0], %0 {strides = array<i32>} : memref<16x128xbf16, #tpu.memory_space<vmem>>, vector<16x128xbf16>,
    %c0_1 = arith.constant 0 : index
    %c0_2 = arith.constant 0 : index
    %2 = vector.load %arg0[%c0_1, %c0_2] : memref<16x128xbf16, #tpu.memory_space<vmem>>, vector<16x128xbf16>
    %c0_3 = arith.constant 0 : index
    %c0_4 = arith.constant 0 : index
    %3 = vector.load %arg3[%c0_3, %c0_4] : memref<128x512xbf16, #tpu.memory_space<vmem>>, vector<128x512xbf16>
    %cst_5 = arith.constant dense<0.000000e+00> : vector<16x512xf32>
    %4 = tpu.matmul %2, %3, %cst_5 {dimension_numbers = #tpu.dot_dimension_numbers<[1], [0], [0], [1], [0, 0, 1, 1], [], []>} : vector<16x128xbf16>, vector<128x512xbf16>, vector<16x512xf32> -> vector<16x512xf32>
    %c0_6 = arith.constant 0 : index
    %c0_7 = arith.constant 0 : index
    %5 = vector.load %arg5[%c0_6, %c0_7] : memref<1x512xf32, #tpu.memory_space<vmem>>, vector<1x512xf32>
    %6 = vector.broadcast %5 : vector<1x512xf32> to vector<16x512xf32>
    %7 = arith.addf %4, %6 : vector<16x512xf32>
    %c0_8 = arith.constant 0 : index
    %c0_9 = arith.constant 0 : index
    %8 = vector.load %arg12[%c0_8, %c0_9] : memref<16x512xf32, #tpu.memory_space<vmem>>, vector<16x512xf32>
    tpu.vector_store %arg12[%c0_8, %c0_9], %7 {strides = array<i32>} : memref<16x512xf32, #tpu.memory_space<vmem>>, vector<16x512xf32>,
    %c0_10 = arith.constant 0 : index
    %c0_11 = arith.constant 0 : index
    %9 = vector.load %arg4[%c0_10, %c0_11] : memref<128x512xbf16, #tpu.memory_space<vmem>>, vector<128x512xbf16>
    %c0_12 = arith.constant 0 : index
    %c0_13 = arith.constant 0 : index
    %c0_14 = arith.constant 0 : index
    %10 = vector.load %arg1[%c0_12, %c0_13, %c0_14] : memref<2x2x128xf32, #tpu.memory_space<vmem>>, vector<1x2x128xf32>
    %11 = vector.shape_cast %10 : vector<1x2x128xf32> to vector<2x128xf32>
    %c0_15 = arith.constant 0 : index
    %c0_16 = arith.constant 0 : index
    %c0_17 = arith.constant 0 : index
    %12 = vector.load %arg2[%c0_15, %c0_16, %c0_17] : memref<2x2x128xf32, #tpu.memory_space<vmem>>, vector<1x2x128xf32>
    %13 = vector.shape_cast %12 : vector<1x2x128xf32> to vector<2x128xf32>
    %c0_i32 = arith.constant 0 : i32
    %c2_i32 = arith.constant 2 : i32
    %14 = arith.muli %c0_i32, %c2_i32 : i32
    %15 = arith.index_cast %14 : i32 to index
    %c0_18 = arith.constant 0 : index
    %16 = vector.load %arg12[%15, %c0_18] : memref<16x512xf32, #tpu.memory_space<vmem>>, vector<2x512xf32>
    %17 = arith.truncf %11 : vector<2x128xf32> to vector<2x128xbf16>
    %cst_19 = arith.constant dense<0.000000e+00> : vector<2x512xf32>
    %18 = tpu.matmul %17, %9, %cst_19 {dimension_numbers = #tpu.dot_dimension_numbers<[1], [0], [0], [1], [0, 0, 1, 1], [], []>} : vector<2x128xbf16>, vector<128x512xbf16>, vector<2x512xf32> -> vector<2x512xf32>
    %19 = arith.addf %16, %18 : vector<2x512xf32>
    %20 = vector.extract_strided_slice %19 {offsets = [0, 0], sizes = [2, 128], strides = [1, 1]} : vector<2x512xf32> to vector<2x128xf32>
    %21 = arith.negf %20 : vector<2x128xf32>
    %22 = math.exp %21 : vector<2x128xf32>
    %cst_20 = arith.constant 1.000000e+00 : f32
    %23 = vector.broadcast %cst_20 : f32 to vector<2x128xf32>
    %24 = arith.addf %23, %22 : vector<2x128xf32>
    %25 = arith.divf %23, %24 : vector<2x128xf32>
    %26 = vector.extract_strided_slice %19 {offsets = [0, 128], sizes = [2, 128], strides = [1, 1]} : vector<2x512xf32> to vector<2x128xf32>
    %27 = arith.negf %26 : vector<2x128xf32>
    %28 = math.exp %27 : vector<2x128xf32>
    %cst_21 = arith.constant 1.000000e+00 : f32
    %29 = vector.broadcast %cst_21 : f32 to vector<2x128xf32>
    %30 = arith.addf %29, %28 : vector<2x128xf32>
    %31 = arith.divf %29, %30 : vector<2x128xf32>
    %32 = vector.extract_strided_slice %19 {offsets = [0, 256], sizes = [2, 128], strides = [1, 1]} : vector<2x512xf32> to vector<2x128xf32>
    %33 = math.tanh %32 : vector<2x128xf32>
    %34 = vector.extract_strided_slice %19 {offsets = [0, 384], sizes = [2, 128], strides = [1, 1]} : vector<2x512xf32> to vector<2x128xf32>
    %35 = arith.negf %34 : vector<2x128xf32>
    %36 = math.exp %35 : vector<2x128xf32>
    %cst_22 = arith.constant 1.000000e+00 : f32
    %37 = vector.broadcast %cst_22 : f32 to vector<2x128xf32>
    %38 = arith.addf %37, %36 : vector<2x128xf32>
    %39 = arith.divf %37, %38 : vector<2x128xf32>
    %40 = arith.mulf %31, %13 : vector<2x128xf32>
    %41 = arith.mulf %25, %33 : vector<2x128xf32>
    %42 = arith.addf %40, %41 : vector<2x128xf32>
    %43 = math.tanh %42 : vector<2x128xf32>
    %44 = arith.mulf %39, %43 : vector<2x128xf32>
    %45 = arith.truncf %44 : vector<2x128xf32> to vector<2x128xbf16>
    %c2_i32_23 = arith.constant 2 : i32
    %46 = arith.muli %c0_i32, %c2_i32_23 : i32
    %47 = arith.index_cast %46 : i32 to index
    %c0_24 = arith.constant 0 : index
    %48 = vector.load %arg9[%47, %c0_24] : memref<16x128xbf16, #tpu.memory_space<vmem>>, vector<2x128xbf16>
    tpu.vector_store %arg9[%47, %c0_24], %45 {strides = array<i32>} : memref<16x128xbf16, #tpu.memory_space<vmem>>, vector<2x128xbf16>,
    %c1_i32 = arith.constant 1 : i32
    %c2_i32_25 = arith.constant 2 : i32
    %49 = arith.muli %c1_i32, %c2_i32_25 : i32
    %50 = arith.index_cast %49 : i32 to index
    %c0_26 = arith.constant 0 : index
    %51 = vector.load %arg12[%50, %c0_26] : memref<16x512xf32, #tpu.memory_space<vmem>>, vector<2x512xf32>
    %52 = arith.truncf %44 : vector<2x128xf32> to vector<2x128xbf16>
    %cst_27 = arith.constant dense<0.000000e+00> : vector<2x512xf32>
    %53 = tpu.matmul %52, %9, %cst_27 {dimension_numbers = #tpu.dot_dimension_numbers<[1], [0], [0], [1], [0, 0, 1, 1], [], []>} : vector<2x128xbf16>, vector<128x512xbf16>, vector<2x512xf32> -> vector<2x512xf32>
    %54 = arith.addf %51, %53 : vector<2x512xf32>
    %55 = vector.extract_strided_slice %54 {offsets = [0, 0], sizes = [2, 128], strides = [1, 1]} : vector<2x512xf32> to vector<2x128xf32>
    %56 = arith.negf %55 : vector<2x128xf32>
    %57 = math.exp %56 : vector<2x128xf32>
    %cst_28 = arith.constant 1.000000e+00 : f32
    %58 = vector.broadcast %cst_28 : f32 to vector<2x128xf32>
    %59 = arith.addf %58, %57 : vector<2x128xf32>
    %60 = arith.divf %58, %59 : vector<2x128xf32>
    %61 = vector.extract_strided_slice %54 {offsets = [0, 128], sizes = [2, 128], strides = [1, 1]} : vector<2x512xf32> to vector<2x128xf32>
    %62 = arith.negf %61 : vector<2x128xf32>
    %63 = math.exp %62 : vector<2x128xf32>
    %cst_29 = arith.constant 1.000000e+00 : f32
    %64 = vector.broadcast %cst_29 : f32 to vector<2x128xf32>
    %65 = arith.addf %64, %63 : vector<2x128xf32>
    %66 = arith.divf %64, %65 : vector<2x128xf32>
    %67 = vector.extract_strided_slice %54 {offsets = [0, 256], sizes = [2, 128], strides = [1, 1]} : vector<2x512xf32> to vector<2x128xf32>
    %68 = math.tanh %67 : vector<2x128xf32>
    %69 = vector.extract_strided_slice %54 {offsets = [0, 384], sizes = [2, 128], strides = [1, 1]} : vector<2x512xf32> to vector<2x128xf32>
    %70 = arith.negf %69 : vector<2x128xf32>
    %71 = math.exp %70 : vector<2x128xf32>
    %cst_30 = arith.constant 1.000000e+00 : f32
    %72 = vector.broadcast %cst_30 : f32 to vector<2x128xf32>
    %73 = arith.addf %72, %71 : vector<2x128xf32>
    %74 = arith.divf %72, %73 : vector<2x128xf32>
    %75 = arith.mulf %66, %42 : vector<2x128xf32>
    %76 = arith.mulf %60, %68 : vector<2x128xf32>
    %77 = arith.addf %75, %76 : vector<2x128xf32>
    %78 = math.tanh %77 : vector<2x128xf32>
    %79 = arith.mulf %74, %78 : vector<2x128xf32>
    %80 = arith.truncf %79 : vector<2x128xf32> to vector<2x128xbf16>
    %c2_i32_31 = arith.constant 2 : i32
    %81 = arith.muli %c1_i32, %c2_i32_31 : i32
    %82 = arith.index_cast %81 : i32 to index
    %c0_32 = arith.constant 0 : index
    %83 = vector.load %arg9[%82, %c0_32] : memref<16x128xbf16, #tpu.memory_space<vmem>>, vector<2x128xbf16>
    tpu.vector_store %arg9[%82, %c0_32], %80 {strides = array<i32>} : memref<16x128xbf16, #tpu.memory_space<vmem>>, vector<2x128xbf16>,
    %c2_i32_33 = arith.constant 2 : i32
    %c2_i32_34 = arith.constant 2 : i32
    %84 = arith.muli %c2_i32_33, %c2_i32_34 : i32
    %85 = arith.index_cast %84 : i32 to index
    %c0_35 = arith.constant 0 : index
    %86 = vector.load %arg12[%85, %c0_35] : memref<16x512xf32, #tpu.memory_space<vmem>>, vector<2x512xf32>
    %87 = arith.truncf %79 : vector<2x128xf32> to vector<2x128xbf16>
    %cst_36 = arith.constant dense<0.000000e+00> : vector<2x512xf32>
    %88 = tpu.matmul %87, %9, %cst_36 {dimension_numbers = #tpu.dot_dimension_numbers<[1], [0], [0], [1], [0, 0, 1, 1], [], []>} : vector<2x128xbf16>, vector<128x512xbf16>, vector<2x512xf32> -> vector<2x512xf32>
    %89 = arith.addf %86, %88 : vector<2x512xf32>
    %90 = vector.extract_strided_slice %89 {offsets = [0, 0], sizes = [2, 128], strides = [1, 1]} : vector<2x512xf32> to vector<2x128xf32>
    %91 = arith.negf %90 : vector<2x128xf32>
    %92 = math.exp %91 : vector<2x128xf32>
    %cst_37 = arith.constant 1.000000e+00 : f32
    %93 = vector.broadcast %cst_37 : f32 to vector<2x128xf32>
    %94 = arith.addf %93, %92 : vector<2x128xf32>
    %95 = arith.divf %93, %94 : vector<2x128xf32>
    %96 = vector.extract_strided_slice %89 {offsets = [0, 128], sizes = [2, 128], strides = [1, 1]} : vector<2x512xf32> to vector<2x128xf32>
    %97 = arith.negf %96 : vector<2x128xf32>
    %98 = math.exp %97 : vector<2x128xf32>
    %cst_38 = arith.constant 1.000000e+00 : f32
    %99 = vector.broadcast %cst_38 : f32 to vector<2x128xf32>
    %100 = arith.addf %99, %98 : vector<2x128xf32>
    %101 = arith.divf %99, %100 : vector<2x128xf32>
    %102 = vector.extract_strided_slice %89 {offsets = [0, 256], sizes = [2, 128], strides = [1, 1]} : vector<2x512xf32> to vector<2x128xf32>
    %103 = math.tanh %102 : vector<2x128xf32>
    %104 = vector.extract_strided_slice %89 {offsets = [0, 384], sizes = [2, 128], strides = [1, 1]} : vector<2x512xf32> to vector<2x128xf32>
    %105 = arith.negf %104 : vector<2x128xf32>
    %106 = math.exp %105 : vector<2x128xf32>
    %cst_39 = arith.constant 1.000000e+00 : f32
    %107 = vector.broadcast %cst_39 : f32 to vector<2x128xf32>
    %108 = arith.addf %107, %106 : vector<2x128xf32>
    %109 = arith.divf %107, %108 : vector<2x128xf32>
    %110 = arith.mulf %101, %77 : vector<2x128xf32>
    %111 = arith.mulf %95, %103 : vector<2x128xf32>
    %112 = arith.addf %110, %111 : vector<2x128xf32>
    %113 = math.tanh %112 : vector<2x128xf32>
    %114 = arith.mulf %109, %113 : vector<2x128xf32>
    %115 = arith.truncf %114 : vector<2x128xf32> to vector<2x128xbf16>
    %c2_i32_40 = arith.constant 2 : i32
    %116 = arith.muli %c2_i32_33, %c2_i32_40 : i32
    %117 = arith.index_cast %116 : i32 to index
    %c0_41 = arith.constant 0 : index
    %118 = vector.load %arg9[%117, %c0_41] : memref<16x128xbf16, #tpu.memory_space<vmem>>, vector<2x128xbf16>
    tpu.vector_store %arg9[%117, %c0_41], %115 {strides = array<i32>} : memref<16x128xbf16, #tpu.memory_space<vmem>>, vector<2x128xbf16>,
    %c3_i32 = arith.constant 3 : i32
    %c2_i32_42 = arith.constant 2 : i32
    %119 = arith.muli %c3_i32, %c2_i32_42 : i32
    %120 = arith.index_cast %119 : i32 to index
    %c0_43 = arith.constant 0 : index
    %121 = vector.load %arg12[%120, %c0_43] : memref<16x512xf32, #tpu.memory_space<vmem>>, vector<2x512xf32>
    %122 = arith.truncf %114 : vector<2x128xf32> to vector<2x128xbf16>
    %cst_44 = arith.constant dense<0.000000e+00> : vector<2x512xf32>
    %123 = tpu.matmul %122, %9, %cst_44 {dimension_numbers = #tpu.dot_dimension_numbers<[1], [0], [0], [1], [0, 0, 1, 1], [], []>} : vector<2x128xbf16>, vector<128x512xbf16>, vector<2x512xf32> -> vector<2x512xf32>
    %124 = arith.addf %121, %123 : vector<2x512xf32>
    %125 = vector.extract_strided_slice %124 {offsets = [0, 0], sizes = [2, 128], strides = [1, 1]} : vector<2x512xf32> to vector<2x128xf32>
    %126 = arith.negf %125 : vector<2x128xf32>
    %127 = math.exp %126 : vector<2x128xf32>
    %cst_45 = arith.constant 1.000000e+00 : f32
    %128 = vector.broadcast %cst_45 : f32 to vector<2x128xf32>
    %129 = arith.addf %128, %127 : vector<2x128xf32>
    %130 = arith.divf %128, %129 : vector<2x128xf32>
    %131 = vector.extract_strided_slice %124 {offsets = [0, 128], sizes = [2, 128], strides = [1, 1]} : vector<2x512xf32> to vector<2x128xf32>
    %132 = arith.negf %131 : vector<2x128xf32>
    %133 = math.exp %132 : vector<2x128xf32>
    %cst_46 = arith.constant 1.000000e+00 : f32
    %134 = vector.broadcast %cst_46 : f32 to vector<2x128xf32>
    %135 = arith.addf %134, %133 : vector<2x128xf32>
    %136 = arith.divf %134, %135 : vector<2x128xf32>
    %137 = vector.extract_strided_slice %124 {offsets = [0, 256], sizes = [2, 128], strides = [1, 1]} : vector<2x512xf32> to vector<2x128xf32>
    %138 = math.tanh %137 : vector<2x128xf32>
    %139 = vector.extract_strided_slice %124 {offsets = [0, 384], sizes = [2, 128], strides = [1, 1]} : vector<2x512xf32> to vector<2x128xf32>
    %140 = arith.negf %139 : vector<2x128xf32>
    %141 = math.exp %140 : vector<2x128xf32>
    %cst_47 = arith.constant 1.000000e+00 : f32
    %142 = vector.broadcast %cst_47 : f32 to vector<2x128xf32>
    %143 = arith.addf %142, %141 : vector<2x128xf32>
    %144 = arith.divf %142, %143 : vector<2x128xf32>
    %145 = arith.mulf %136, %112 : vector<2x128xf32>
    %146 = arith.mulf %130, %138 : vector<2x128xf32>
    %147 = arith.addf %145, %146 : vector<2x128xf32>
    %148 = math.tanh %147 : vector<2x128xf32>
    %149 = arith.mulf %144, %148 : vector<2x128xf32>
    %150 = arith.truncf %149 : vector<2x128xf32> to vector<2x128xbf16>
    %c2_i32_48 = arith.constant 2 : i32
    %151 = arith.muli %c3_i32, %c2_i32_48 : i32
    %152 = arith.index_cast %151 : i32 to index
    %c0_49 = arith.constant 0 : index
    %153 = vector.load %arg9[%152, %c0_49] : memref<16x128xbf16, #tpu.memory_space<vmem>>, vector<2x128xbf16>
    tpu.vector_store %arg9[%152, %c0_49], %150 {strides = array<i32>} : memref<16x128xbf16, #tpu.memory_space<vmem>>, vector<2x128xbf16>,
    %c4_i32 = arith.constant 4 : i32
    %c2_i32_50 = arith.constant 2 : i32
    %154 = arith.muli %c4_i32, %c2_i32_50 : i32
    %155 = arith.index_cast %154 : i32 to index
    %c0_51 = arith.constant 0 : index
    %156 = vector.load %arg12[%155, %c0_51] : memref<16x512xf32, #tpu.memory_space<vmem>>, vector<2x512xf32>
    %157 = arith.truncf %149 : vector<2x128xf32> to vector<2x128xbf16>
    %cst_52 = arith.constant dense<0.000000e+00> : vector<2x512xf32>
    %158 = tpu.matmul %157, %9, %cst_52 {dimension_numbers = #tpu.dot_dimension_numbers<[1], [0], [0], [1], [0, 0, 1, 1], [], []>} : vector<2x128xbf16>, vector<128x512xbf16>, vector<2x512xf32> -> vector<2x512xf32>
    %159 = arith.addf %156, %158 : vector<2x512xf32>
    %160 = vector.extract_strided_slice %159 {offsets = [0, 0], sizes = [2, 128], strides = [1, 1]} : vector<2x512xf32> to vector<2x128xf32>
    %161 = arith.negf %160 : vector<2x128xf32>
    %162 = math.exp %161 : vector<2x128xf32>
    %cst_53 = arith.constant 1.000000e+00 : f32
    %163 = vector.broadcast %cst_53 : f32 to vector<2x128xf32>
    %164 = arith.addf %163, %162 : vector<2x128xf32>
    %165 = arith.divf %163, %164 : vector<2x128xf32>
    %166 = vector.extract_strided_slice %159 {offsets = [0, 128], sizes = [2, 128], strides = [1, 1]} : vector<2x512xf32> to vector<2x128xf32>
    %167 = arith.negf %166 : vector<2x128xf32>
    %168 = math.exp %167 : vector<2x128xf32>
    %cst_54 = arith.constant 1.000000e+00 : f32
    %169 = vector.broadcast %cst_54 : f32 to vector<2x128xf32>
    %170 = arith.addf %169, %168 : vector<2x128xf32>
    %171 = arith.divf %169, %170 : vector<2x128xf32>
    %172 = vector.extract_strided_slice %159 {offsets = [0, 256], sizes = [2, 128], strides = [1, 1]} : vector<2x512xf32> to vector<2x128xf32>
    %173 = math.tanh %172 : vector<2x128xf32>
    %174 = vector.extract_strided_slice %159 {offsets = [0, 384], sizes = [2, 128], strides = [1, 1]} : vector<2x512xf32> to vector<2x128xf32>
    %175 = arith.negf %174 : vector<2x128xf32>
    %176 = math.exp %175 : vector<2x128xf32>
    %cst_55 = arith.constant 1.000000e+00 : f32
    %177 = vector.broadcast %cst_55 : f32 to vector<2x128xf32>
    %178 = arith.addf %177, %176 : vector<2x128xf32>
    %179 = arith.divf %177, %178 : vector<2x128xf32>
    %180 = arith.mulf %171, %147 : vector<2x128xf32>
    %181 = arith.mulf %165, %173 : vector<2x128xf32>
    %182 = arith.addf %180, %181 : vector<2x128xf32>
    %183 = math.tanh %182 : vector<2x128xf32>
    %184 = arith.mulf %179, %183 : vector<2x128xf32>
    %185 = arith.truncf %184 : vector<2x128xf32> to vector<2x128xbf16>
    %c2_i32_56 = arith.constant 2 : i32
    %186 = arith.muli %c4_i32, %c2_i32_56 : i32
    %187 = arith.index_cast %186 : i32 to index
    %c0_57 = arith.constant 0 : index
    %188 = vector.load %arg9[%187, %c0_57] : memref<16x128xbf16, #tpu.memory_space<vmem>>, vector<2x128xbf16>
    tpu.vector_store %arg9[%187, %c0_57], %185 {strides = array<i32>} : memref<16x128xbf16, #tpu.memory_space<vmem>>, vector<2x128xbf16>,
    %c5_i32 = arith.constant 5 : i32
    %c2_i32_58 = arith.constant 2 : i32
    %189 = arith.muli %c5_i32, %c2_i32_58 : i32
    %190 = arith.index_cast %189 : i32 to index
    %c0_59 = arith.constant 0 : index
    %191 = vector.load %arg12[%190, %c0_59] : memref<16x512xf32, #tpu.memory_space<vmem>>, vector<2x512xf32>
    %192 = arith.truncf %184 : vector<2x128xf32> to vector<2x128xbf16>
    %cst_60 = arith.constant dense<0.000000e+00> : vector<2x512xf32>
    %193 = tpu.matmul %192, %9, %cst_60 {dimension_numbers = #tpu.dot_dimension_numbers<[1], [0], [0], [1], [0, 0, 1, 1], [], []>} : vector<2x128xbf16>, vector<128x512xbf16>, vector<2x512xf32> -> vector<2x512xf32>
    %194 = arith.addf %191, %193 : vector<2x512xf32>
    %195 = vector.extract_strided_slice %194 {offsets = [0, 0], sizes = [2, 128], strides = [1, 1]} : vector<2x512xf32> to vector<2x128xf32>
    %196 = arith.negf %195 : vector<2x128xf32>
    %197 = math.exp %196 : vector<2x128xf32>
    %cst_61 = arith.constant 1.000000e+00 : f32
    %198 = vector.broadcast %cst_61 : f32 to vector<2x128xf32>
    %199 = arith.addf %198, %197 : vector<2x128xf32>
    %200 = arith.divf %198, %199 : vector<2x128xf32>
    %201 = vector.extract_strided_slice %194 {offsets = [0, 128], sizes = [2, 128], strides = [1, 1]} : vector<2x512xf32> to vector<2x128xf32>
    %202 = arith.negf %201 : vector<2x128xf32>
    %203 = math.exp %202 : vector<2x128xf32>
    %cst_62 = arith.constant 1.000000e+00 : f32
    %204 = vector.broadcast %cst_62 : f32 to vector<2x128xf32>
    %205 = arith.addf %204, %203 : vector<2x128xf32>
    %206 = arith.divf %204, %205 : vector<2x128xf32>
    %207 = vector.extract_strided_slice %194 {offsets = [0, 256], sizes = [2, 128], strides = [1, 1]} : vector<2x512xf32> to vector<2x128xf32>
    %208 = math.tanh %207 : vector<2x128xf32>
    %209 = vector.extract_strided_slice %194 {offsets = [0, 384], sizes = [2, 128], strides = [1, 1]} : vector<2x512xf32> to vector<2x128xf32>
    %210 = arith.negf %209 : vector<2x128xf32>
    %211 = math.exp %210 : vector<2x128xf32>
    %cst_63 = arith.constant 1.000000e+00 : f32
    %212 = vector.broadcast %cst_63 : f32 to vector<2x128xf32>
    %213 = arith.addf %212, %211 : vector<2x128xf32>
    %214 = arith.divf %212, %213 : vector<2x128xf32>
    %215 = arith.mulf %206, %182 : vector<2x128xf32>
    %216 = arith.mulf %200, %208 : vector<2x128xf32>
    %217 = arith.addf %215, %216 : vector<2x128xf32>
    %218 = math.tanh %217 : vector<2x128xf32>
    %219 = arith.mulf %214, %218 : vector<2x128xf32>
    %220 = arith.truncf %219 : vector<2x128xf32> to vector<2x128xbf16>
    %c2_i32_64 = arith.constant 2 : i32
    %221 = arith.muli %c5_i32, %c2_i32_64 : i32
    %222 = arith.index_cast %221 : i32 to index
    %c0_65 = arith.constant 0 : index
    %223 = vector.load %arg9[%222, %c0_65] : memref<16x128xbf16, #tpu.memory_space<vmem>>, vector<2x128xbf16>
    tpu.vector_store %arg9[%222, %c0_65], %220 {strides = array<i32>} : memref<16x128xbf16, #tpu.memory_space<vmem>>, vector<2x128xbf16>,
    %c6_i32 = arith.constant 6 : i32
    %c2_i32_66 = arith.constant 2 : i32
    %224 = arith.muli %c6_i32, %c2_i32_66 : i32
    %225 = arith.index_cast %224 : i32 to index
    %c0_67 = arith.constant 0 : index
    %226 = vector.load %arg12[%225, %c0_67] : memref<16x512xf32, #tpu.memory_space<vmem>>, vector<2x512xf32>
    %227 = arith.truncf %219 : vector<2x128xf32> to vector<2x128xbf16>
    %cst_68 = arith.constant dense<0.000000e+00> : vector<2x512xf32>
    %228 = tpu.matmul %227, %9, %cst_68 {dimension_numbers = #tpu.dot_dimension_numbers<[1], [0], [0], [1], [0, 0, 1, 1], [], []>} : vector<2x128xbf16>, vector<128x512xbf16>, vector<2x512xf32> -> vector<2x512xf32>
    %229 = arith.addf %226, %228 : vector<2x512xf32>
    %230 = vector.extract_strided_slice %229 {offsets = [0, 0], sizes = [2, 128], strides = [1, 1]} : vector<2x512xf32> to vector<2x128xf32>
    %231 = arith.negf %230 : vector<2x128xf32>
    %232 = math.exp %231 : vector<2x128xf32>
    %cst_69 = arith.constant 1.000000e+00 : f32
    %233 = vector.broadcast %cst_69 : f32 to vector<2x128xf32>
    %234 = arith.addf %233, %232 : vector<2x128xf32>
    %235 = arith.divf %233, %234 : vector<2x128xf32>
    %236 = vector.extract_strided_slice %229 {offsets = [0, 128], sizes = [2, 128], strides = [1, 1]} : vector<2x512xf32> to vector<2x128xf32>
    %237 = arith.negf %236 : vector<2x128xf32>
    %238 = math.exp %237 : vector<2x128xf32>
    %cst_70 = arith.constant 1.000000e+00 : f32
    %239 = vector.broadcast %cst_70 : f32 to vector<2x128xf32>
    %240 = arith.addf %239, %238 : vector<2x128xf32>
    %241 = arith.divf %239, %240 : vector<2x128xf32>
    %242 = vector.extract_strided_slice %229 {offsets = [0, 256], sizes = [2, 128], strides = [1, 1]} : vector<2x512xf32> to vector<2x128xf32>
    %243 = math.tanh %242 : vector<2x128xf32>
    %244 = vector.extract_strided_slice %229 {offsets = [0, 384], sizes = [2, 128], strides = [1, 1]} : vector<2x512xf32> to vector<2x128xf32>
    %245 = arith.negf %244 : vector<2x128xf32>
    %246 = math.exp %245 : vector<2x128xf32>
    %cst_71 = arith.constant 1.000000e+00 : f32
    %247 = vector.broadcast %cst_71 : f32 to vector<2x128xf32>
    %248 = arith.addf %247, %246 : vector<2x128xf32>
    %249 = arith.divf %247, %248 : vector<2x128xf32>
    %250 = arith.mulf %241, %217 : vector<2x128xf32>
    %251 = arith.mulf %235, %243 : vector<2x128xf32>
    %252 = arith.addf %250, %251 : vector<2x128xf32>
    %253 = math.tanh %252 : vector<2x128xf32>
    %254 = arith.mulf %249, %253 : vector<2x128xf32>
    %255 = arith.truncf %254 : vector<2x128xf32> to vector<2x128xbf16>
    %c2_i32_72 = arith.constant 2 : i32
    %256 = arith.muli %c6_i32, %c2_i32_72 : i32
    %257 = arith.index_cast %256 : i32 to index
    %c0_73 = arith.constant 0 : index
    %258 = vector.load %arg9[%257, %c0_73] : memref<16x128xbf16, #tpu.memory_space<vmem>>, vector<2x128xbf16>
    tpu.vector_store %arg9[%257, %c0_73], %255 {strides = array<i32>} : memref<16x128xbf16, #tpu.memory_space<vmem>>, vector<2x128xbf16>,
    %c7_i32 = arith.constant 7 : i32
    %c2_i32_74 = arith.constant 2 : i32
    %259 = arith.muli %c7_i32, %c2_i32_74 : i32
    %260 = arith.index_cast %259 : i32 to index
    %c0_75 = arith.constant 0 : index
    %261 = vector.load %arg12[%260, %c0_75] : memref<16x512xf32, #tpu.memory_space<vmem>>, vector<2x512xf32>
    %262 = arith.truncf %254 : vector<2x128xf32> to vector<2x128xbf16>
    %cst_76 = arith.constant dense<0.000000e+00> : vector<2x512xf32>
    %263 = tpu.matmul %262, %9, %cst_76 {dimension_numbers = #tpu.dot_dimension_numbers<[1], [0], [0], [1], [0, 0, 1, 1], [], []>} : vector<2x128xbf16>, vector<128x512xbf16>, vector<2x512xf32> -> vector<2x512xf32>
    %264 = arith.addf %261, %263 : vector<2x512xf32>
    %265 = vector.extract_strided_slice %264 {offsets = [0, 0], sizes = [2, 128], strides = [1, 1]} : vector<2x512xf32> to vector<2x128xf32>
    %266 = arith.negf %265 : vector<2x128xf32>
    %267 = math.exp %266 : vector<2x128xf32>
    %cst_77 = arith.constant 1.000000e+00 : f32
    %268 = vector.broadcast %cst_77 : f32 to vector<2x128xf32>
    %269 = arith.addf %268, %267 : vector<2x128xf32>
    %270 = arith.divf %268, %269 : vector<2x128xf32>
    %271 = vector.extract_strided_slice %264 {offsets = [0, 128], sizes = [2, 128], strides = [1, 1]} : vector<2x512xf32> to vector<2x128xf32>
    %272 = arith.negf %271 : vector<2x128xf32>
    %273 = math.exp %272 : vector<2x128xf32>
    %cst_78 = arith.constant 1.000000e+00 : f32
    %274 = vector.broadcast %cst_78 : f32 to vector<2x128xf32>
    %275 = arith.addf %274, %273 : vector<2x128xf32>
    %276 = arith.divf %274, %275 : vector<2x128xf32>
    %277 = vector.extract_strided_slice %264 {offsets = [0, 256], sizes = [2, 128], strides = [1, 1]} : vector<2x512xf32> to vector<2x128xf32>
    %278 = math.tanh %277 : vector<2x128xf32>
    %279 = vector.extract_strided_slice %264 {offsets = [0, 384], sizes = [2, 128], strides = [1, 1]} : vector<2x512xf32> to vector<2x128xf32>
    %280 = arith.negf %279 : vector<2x128xf32>
    %281 = math.exp %280 : vector<2x128xf32>
    %cst_79 = arith.constant 1.000000e+00 : f32
    %282 = vector.broadcast %cst_79 : f32 to vector<2x128xf32>
    %283 = arith.addf %282, %281 : vector<2x128xf32>
    %284 = arith.divf %282, %283 : vector<2x128xf32>
    %285 = arith.mulf %276, %252 : vector<2x128xf32>
    %286 = arith.mulf %270, %278 : vector<2x128xf32>
    %287 = arith.addf %285, %286 : vector<2x128xf32>
    %288 = math.tanh %287 : vector<2x128xf32>
    %289 = arith.mulf %284, %288 : vector<2x128xf32>
    %290 = arith.truncf %289 : vector<2x128xf32> to vector<2x128xbf16>
    %c2_i32_80 = arith.constant 2 : i32
    %291 = arith.muli %c7_i32, %c2_i32_80 : i32
    %292 = arith.index_cast %291 : i32 to index
    %c0_81 = arith.constant 0 : index
    %293 = vector.load %arg9[%292, %c0_81] : memref<16x128xbf16, #tpu.memory_space<vmem>>, vector<2x128xbf16>
    tpu.vector_store %arg9[%292, %c0_81], %290 {strides = array<i32>} : memref<16x128xbf16, #tpu.memory_space<vmem>>, vector<2x128xbf16>,
    %c8_i32 = arith.constant 8 : i32
    %c0_82 = arith.constant 0 : index
    %c0_83 = arith.constant 0 : index
    %c0_84 = arith.constant 0 : index
    %294 = vector.load %arg10[%c0_82, %c0_83, %c0_84] : memref<2x2x128xf32, #tpu.memory_space<vmem>>, vector<1x2x128xf32>
    %295 = vector.shape_cast %294 : vector<1x2x128xf32> to vector<2x128xf32>
    %296 = vector.shape_cast %289 : vector<2x128xf32> to vector<1x2x128xf32>
    tpu.vector_store %arg10[%c0_82, %c0_83, %c0_84], %296 {strides = array<i32>} : memref<2x2x128xf32, #tpu.memory_space<vmem>>, vector<1x2x128xf32>,
    %c0_85 = arith.constant 0 : index
    %c0_86 = arith.constant 0 : index
    %c0_87 = arith.constant 0 : index
    %297 = vector.load %arg11[%c0_85, %c0_86, %c0_87] : memref<2x2x128xf32, #tpu.memory_space<vmem>>, vector<1x2x128xf32>
    %298 = vector.shape_cast %297 : vector<1x2x128xf32> to vector<2x128xf32>
    %299 = vector.shape_cast %287 : vector<2x128xf32> to vector<1x2x128xf32>
    tpu.vector_store %arg11[%c0_85, %c0_86, %c0_87], %299 {strides = array<i32>} : memref<2x2x128xf32, #tpu.memory_space<vmem>>, vector<1x2x128xf32>,
    %c0_88 = arith.constant 0 : index
    %c0_89 = arith.constant 0 : index
    %300 = vector.load %arg9[%c0_88, %c0_89] : memref<16x128xbf16, #tpu.memory_space<vmem>>, vector<16x128xbf16>
    %c0_90 = arith.constant 0 : index
    %c0_91 = arith.constant 0 : index
    %301 = vector.load %arg6[%c0_90, %c0_91] : memref<128x512xbf16, #tpu.memory_space<vmem>>, vector<128x512xbf16>
    %cst_92 = arith.constant dense<0.000000e+00> : vector<16x512xf32>
    %302 = tpu.matmul %300, %301, %cst_92 {dimension_numbers = #tpu.dot_dimension_numbers<[1], [0], [0], [1], [0, 0, 1, 1], [], []>} : vector<16x128xbf16>, vector<128x512xbf16>, vector<16x512xf32> -> vector<16x512xf32>
    %c0_93 = arith.constant 0 : index
    %c0_94 = arith.constant 0 : index
    %303 = vector.load %arg8[%c0_93, %c0_94] : memref<1x512xf32, #tpu.memory_space<vmem>>, vector<1x512xf32>
    %304 = vector.broadcast %303 : vector<1x512xf32> to vector<16x512xf32>
    %305 = arith.addf %302, %304 : vector<16x512xf32>
    %c0_95 = arith.constant 0 : index
    %c0_96 = arith.constant 0 : index
    %306 = vector.load %arg12[%c0_95, %c0_96] : memref<16x512xf32, #tpu.memory_space<vmem>>, vector<16x512xf32>
    tpu.vector_store %arg12[%c0_95, %c0_96], %305 {strides = array<i32>} : memref<16x512xf32, #tpu.memory_space<vmem>>, vector<16x512xf32>,
    %c0_97 = arith.constant 0 : index
    %c0_98 = arith.constant 0 : index
    %307 = vector.load %arg7[%c0_97, %c0_98] : memref<128x512xbf16, #tpu.memory_space<vmem>>, vector<128x512xbf16>
    %c1 = arith.constant 1 : index
    %c0_99 = arith.constant 0 : index
    %c0_100 = arith.constant 0 : index
    %308 = vector.load %arg1[%c1, %c0_99, %c0_100] : memref<2x2x128xf32, #tpu.memory_space<vmem>>, vector<1x2x128xf32>
    %309 = vector.shape_cast %308 : vector<1x2x128xf32> to vector<2x128xf32>
    %c1_101 = arith.constant 1 : index
    %c0_102 = arith.constant 0 : index
    %c0_103 = arith.constant 0 : index
    %310 = vector.load %arg2[%c1_101, %c0_102, %c0_103] : memref<2x2x128xf32, #tpu.memory_space<vmem>>, vector<1x2x128xf32>
    %311 = vector.shape_cast %310 : vector<1x2x128xf32> to vector<2x128xf32>
    %c0_i32_104 = arith.constant 0 : i32
    %c2_i32_105 = arith.constant 2 : i32
    %312 = arith.muli %c0_i32_104, %c2_i32_105 : i32
    %313 = arith.index_cast %312 : i32 to index
    %c0_106 = arith.constant 0 : index
    %314 = vector.load %arg12[%313, %c0_106] : memref<16x512xf32, #tpu.memory_space<vmem>>, vector<2x512xf32>
    %315 = arith.truncf %309 : vector<2x128xf32> to vector<2x128xbf16>
    %cst_107 = arith.constant dense<0.000000e+00> : vector<2x512xf32>
    %316 = tpu.matmul %315, %307, %cst_107 {dimension_numbers = #tpu.dot_dimension_numbers<[1], [0], [0], [1], [0, 0, 1, 1], [], []>} : vector<2x128xbf16>, vector<128x512xbf16>, vector<2x512xf32> -> vector<2x512xf32>
    %317 = arith.addf %314, %316 : vector<2x512xf32>
    %318 = vector.extract_strided_slice %317 {offsets = [0, 0], sizes = [2, 128], strides = [1, 1]} : vector<2x512xf32> to vector<2x128xf32>
    %319 = arith.negf %318 : vector<2x128xf32>
    %320 = math.exp %319 : vector<2x128xf32>
    %cst_108 = arith.constant 1.000000e+00 : f32
    %321 = vector.broadcast %cst_108 : f32 to vector<2x128xf32>
    %322 = arith.addf %321, %320 : vector<2x128xf32>
    %323 = arith.divf %321, %322 : vector<2x128xf32>
    %324 = vector.extract_strided_slice %317 {offsets = [0, 128], sizes = [2, 128], strides = [1, 1]} : vector<2x512xf32> to vector<2x128xf32>
    %325 = arith.negf %324 : vector<2x128xf32>
    %326 = math.exp %325 : vector<2x128xf32>
    %cst_109 = arith.constant 1.000000e+00 : f32
    %327 = vector.broadcast %cst_109 : f32 to vector<2x128xf32>
    %328 = arith.addf %327, %326 : vector<2x128xf32>
    %329 = arith.divf %327, %328 : vector<2x128xf32>
    %330 = vector.extract_strided_slice %317 {offsets = [0, 256], sizes = [2, 128], strides = [1, 1]} : vector<2x512xf32> to vector<2x128xf32>
    %331 = math.tanh %330 : vector<2x128xf32>
    %332 = vector.extract_strided_slice %317 {offsets = [0, 384], sizes = [2, 128], strides = [1, 1]} : vector<2x512xf32> to vector<2x128xf32>
    %333 = arith.negf %332 : vector<2x128xf32>
    %334 = math.exp %333 : vector<2x128xf32>
    %cst_110 = arith.constant 1.000000e+00 : f32
    %335 = vector.broadcast %cst_110 : f32 to vector<2x128xf32>
    %336 = arith.addf %335, %334 : vector<2x128xf32>
    %337 = arith.divf %335, %336 : vector<2x128xf32>
    %338 = arith.mulf %329, %311 : vector<2x128xf32>
    %339 = arith.mulf %323, %331 : vector<2x128xf32>
    %340 = arith.addf %338, %339 : vector<2x128xf32>
    %341 = math.tanh %340 : vector<2x128xf32>
    %342 = arith.mulf %337, %341 : vector<2x128xf32>
    %343 = arith.truncf %342 : vector<2x128xf32> to vector<2x128xbf16>
    %c2_i32_111 = arith.constant 2 : i32
    %344 = arith.muli %c0_i32_104, %c2_i32_111 : i32
    %345 = arith.index_cast %344 : i32 to index
    %c0_112 = arith.constant 0 : index
    %346 = vector.load %arg9[%345, %c0_112] : memref<16x128xbf16, #tpu.memory_space<vmem>>, vector<2x128xbf16>
    tpu.vector_store %arg9[%345, %c0_112], %343 {strides = array<i32>} : memref<16x128xbf16, #tpu.memory_space<vmem>>, vector<2x128xbf16>,
    %c1_i32_113 = arith.constant 1 : i32
    %c2_i32_114 = arith.constant 2 : i32
    %347 = arith.muli %c1_i32_113, %c2_i32_114 : i32
    %348 = arith.index_cast %347 : i32 to index
    %c0_115 = arith.constant 0 : index
    %349 = vector.load %arg12[%348, %c0_115] : memref<16x512xf32, #tpu.memory_space<vmem>>, vector<2x512xf32>
    %350 = arith.truncf %342 : vector<2x128xf32> to vector<2x128xbf16>
    %cst_116 = arith.constant dense<0.000000e+00> : vector<2x512xf32>
    %351 = tpu.matmul %350, %307, %cst_116 {dimension_numbers = #tpu.dot_dimension_numbers<[1], [0], [0], [1], [0, 0, 1, 1], [], []>} : vector<2x128xbf16>, vector<128x512xbf16>, vector<2x512xf32> -> vector<2x512xf32>
    %352 = arith.addf %349, %351 : vector<2x512xf32>
    %353 = vector.extract_strided_slice %352 {offsets = [0, 0], sizes = [2, 128], strides = [1, 1]} : vector<2x512xf32> to vector<2x128xf32>
    %354 = arith.negf %353 : vector<2x128xf32>
    %355 = math.exp %354 : vector<2x128xf32>
    %cst_117 = arith.constant 1.000000e+00 : f32
    %356 = vector.broadcast %cst_117 : f32 to vector<2x128xf32>
    %357 = arith.addf %356, %355 : vector<2x128xf32>
    %358 = arith.divf %356, %357 : vector<2x128xf32>
    %359 = vector.extract_strided_slice %352 {offsets = [0, 128], sizes = [2, 128], strides = [1, 1]} : vector<2x512xf32> to vector<2x128xf32>
    %360 = arith.negf %359 : vector<2x128xf32>
    %361 = math.exp %360 : vector<2x128xf32>
    %cst_118 = arith.constant 1.000000e+00 : f32
    %362 = vector.broadcast %cst_118 : f32 to vector<2x128xf32>
    %363 = arith.addf %362, %361 : vector<2x128xf32>
    %364 = arith.divf %362, %363 : vector<2x128xf32>
    %365 = vector.extract_strided_slice %352 {offsets = [0, 256], sizes = [2, 128], strides = [1, 1]} : vector<2x512xf32> to vector<2x128xf32>
    %366 = math.tanh %365 : vector<2x128xf32>
    %367 = vector.extract_strided_slice %352 {offsets = [0, 384], sizes = [2, 128], strides = [1, 1]} : vector<2x512xf32> to vector<2x128xf32>
    %368 = arith.negf %367 : vector<2x128xf32>
    %369 = math.exp %368 : vector<2x128xf32>
    %cst_119 = arith.constant 1.000000e+00 : f32
    %370 = vector.broadcast %cst_119 : f32 to vector<2x128xf32>
    %371 = arith.addf %370, %369 : vector<2x128xf32>
    %372 = arith.divf %370, %371 : vector<2x128xf32>
    %373 = arith.mulf %364, %340 : vector<2x128xf32>
    %374 = arith.mulf %358, %366 : vector<2x128xf32>
    %375 = arith.addf %373, %374 : vector<2x128xf32>
    %376 = math.tanh %375 : vector<2x128xf32>
    %377 = arith.mulf %372, %376 : vector<2x128xf32>
    %378 = arith.truncf %377 : vector<2x128xf32> to vector<2x128xbf16>
    %c2_i32_120 = arith.constant 2 : i32
    %379 = arith.muli %c1_i32_113, %c2_i32_120 : i32
    %380 = arith.index_cast %379 : i32 to index
    %c0_121 = arith.constant 0 : index
    %381 = vector.load %arg9[%380, %c0_121] : memref<16x128xbf16, #tpu.memory_space<vmem>>, vector<2x128xbf16>
    tpu.vector_store %arg9[%380, %c0_121], %378 {strides = array<i32>} : memref<16x128xbf16, #tpu.memory_space<vmem>>, vector<2x128xbf16>,
    %c2_i32_122 = arith.constant 2 : i32
    %c2_i32_123 = arith.constant 2 : i32
    %382 = arith.muli %c2_i32_122, %c2_i32_123 : i32
    %383 = arith.index_cast %382 : i32 to index
    %c0_124 = arith.constant 0 : index
    %384 = vector.load %arg12[%383, %c0_124] : memref<16x512xf32, #tpu.memory_space<vmem>>, vector<2x512xf32>
    %385 = arith.truncf %377 : vector<2x128xf32> to vector<2x128xbf16>
    %cst_125 = arith.constant dense<0.000000e+00> : vector<2x512xf32>
    %386 = tpu.matmul %385, %307, %cst_125 {dimension_numbers = #tpu.dot_dimension_numbers<[1], [0], [0], [1], [0, 0, 1, 1], [], []>} : vector<2x128xbf16>, vector<128x512xbf16>, vector<2x512xf32> -> vector<2x512xf32>
    %387 = arith.addf %384, %386 : vector<2x512xf32>
    %388 = vector.extract_strided_slice %387 {offsets = [0, 0], sizes = [2, 128], strides = [1, 1]} : vector<2x512xf32> to vector<2x128xf32>
    %389 = arith.negf %388 : vector<2x128xf32>
    %390 = math.exp %389 : vector<2x128xf32>
    %cst_126 = arith.constant 1.000000e+00 : f32
    %391 = vector.broadcast %cst_126 : f32 to vector<2x128xf32>
    %392 = arith.addf %391, %390 : vector<2x128xf32>
    %393 = arith.divf %391, %392 : vector<2x128xf32>
    %394 = vector.extract_strided_slice %387 {offsets = [0, 128], sizes = [2, 128], strides = [1, 1]} : vector<2x512xf32> to vector<2x128xf32>
    %395 = arith.negf %394 : vector<2x128xf32>
    %396 = math.exp %395 : vector<2x128xf32>
    %cst_127 = arith.constant 1.000000e+00 : f32
    %397 = vector.broadcast %cst_127 : f32 to vector<2x128xf32>
    %398 = arith.addf %397, %396 : vector<2x128xf32>
    %399 = arith.divf %397, %398 : vector<2x128xf32>
    %400 = vector.extract_strided_slice %387 {offsets = [0, 256], sizes = [2, 128], strides = [1, 1]} : vector<2x512xf32> to vector<2x128xf32>
    %401 = math.tanh %400 : vector<2x128xf32>
    %402 = vector.extract_strided_slice %387 {offsets = [0, 384], sizes = [2, 128], strides = [1, 1]} : vector<2x512xf32> to vector<2x128xf32>
    %403 = arith.negf %402 : vector<2x128xf32>
    %404 = math.exp %403 : vector<2x128xf32>
    %cst_128 = arith.constant 1.000000e+00 : f32
    %405 = vector.broadcast %cst_128 : f32 to vector<2x128xf32>
    %406 = arith.addf %405, %404 : vector<2x128xf32>
    %407 = arith.divf %405, %406 : vector<2x128xf32>
    %408 = arith.mulf %399, %375 : vector<2x128xf32>
    %409 = arith.mulf %393, %401 : vector<2x128xf32>
    %410 = arith.addf %408, %409 : vector<2x128xf32>
    %411 = math.tanh %410 : vector<2x128xf32>
    %412 = arith.mulf %407, %411 : vector<2x128xf32>
    %413 = arith.truncf %412 : vector<2x128xf32> to vector<2x128xbf16>
    %c2_i32_129 = arith.constant 2 : i32
    %414 = arith.muli %c2_i32_122, %c2_i32_129 : i32
    %415 = arith.index_cast %414 : i32 to index
    %c0_130 = arith.constant 0 : index
    %416 = vector.load %arg9[%415, %c0_130] : memref<16x128xbf16, #tpu.memory_space<vmem>>, vector<2x128xbf16>
    tpu.vector_store %arg9[%415, %c0_130], %413 {strides = array<i32>} : memref<16x128xbf16, #tpu.memory_space<vmem>>, vector<2x128xbf16>,
    %c3_i32_131 = arith.constant 3 : i32
    %c2_i32_132 = arith.constant 2 : i32
    %417 = arith.muli %c3_i32_131, %c2_i32_132 : i32
    %418 = arith.index_cast %417 : i32 to index
    %c0_133 = arith.constant 0 : index
    %419 = vector.load %arg12[%418, %c0_133] : memref<16x512xf32, #tpu.memory_space<vmem>>, vector<2x512xf32>
    %420 = arith.truncf %412 : vector<2x128xf32> to vector<2x128xbf16>
    %cst_134 = arith.constant dense<0.000000e+00> : vector<2x512xf32>
    %421 = tpu.matmul %420, %307, %cst_134 {dimension_numbers = #tpu.dot_dimension_numbers<[1], [0], [0], [1], [0, 0, 1, 1], [], []>} : vector<2x128xbf16>, vector<128x512xbf16>, vector<2x512xf32> -> vector<2x512xf32>
    %422 = arith.addf %419, %421 : vector<2x512xf32>
    %423 = vector.extract_strided_slice %422 {offsets = [0, 0], sizes = [2, 128], strides = [1, 1]} : vector<2x512xf32> to vector<2x128xf32>
    %424 = arith.negf %423 : vector<2x128xf32>
    %425 = math.exp %424 : vector<2x128xf32>
    %cst_135 = arith.constant 1.000000e+00 : f32
    %426 = vector.broadcast %cst_135 : f32 to vector<2x128xf32>
    %427 = arith.addf %426, %425 : vector<2x128xf32>
    %428 = arith.divf %426, %427 : vector<2x128xf32>
    %429 = vector.extract_strided_slice %422 {offsets = [0, 128], sizes = [2, 128], strides = [1, 1]} : vector<2x512xf32> to vector<2x128xf32>
    %430 = arith.negf %429 : vector<2x128xf32>
    %431 = math.exp %430 : vector<2x128xf32>
    %cst_136 = arith.constant 1.000000e+00 : f32
    %432 = vector.broadcast %cst_136 : f32 to vector<2x128xf32>
    %433 = arith.addf %432, %431 : vector<2x128xf32>
    %434 = arith.divf %432, %433 : vector<2x128xf32>
    %435 = vector.extract_strided_slice %422 {offsets = [0, 256], sizes = [2, 128], strides = [1, 1]} : vector<2x512xf32> to vector<2x128xf32>
    %436 = math.tanh %435 : vector<2x128xf32>
    %437 = vector.extract_strided_slice %422 {offsets = [0, 384], sizes = [2, 128], strides = [1, 1]} : vector<2x512xf32> to vector<2x128xf32>
    %438 = arith.negf %437 : vector<2x128xf32>
    %439 = math.exp %438 : vector<2x128xf32>
    %cst_137 = arith.constant 1.000000e+00 : f32
    %440 = vector.broadcast %cst_137 : f32 to vector<2x128xf32>
    %441 = arith.addf %440, %439 : vector<2x128xf32>
    %442 = arith.divf %440, %441 : vector<2x128xf32>
    %443 = arith.mulf %434, %410 : vector<2x128xf32>
    %444 = arith.mulf %428, %436 : vector<2x128xf32>
    %445 = arith.addf %443, %444 : vector<2x128xf32>
    %446 = math.tanh %445 : vector<2x128xf32>
    %447 = arith.mulf %442, %446 : vector<2x128xf32>
    %448 = arith.truncf %447 : vector<2x128xf32> to vector<2x128xbf16>
    %c2_i32_138 = arith.constant 2 : i32
    %449 = arith.muli %c3_i32_131, %c2_i32_138 : i32
    %450 = arith.index_cast %449 : i32 to index
    %c0_139 = arith.constant 0 : index
    %451 = vector.load %arg9[%450, %c0_139] : memref<16x128xbf16, #tpu.memory_space<vmem>>, vector<2x128xbf16>
    tpu.vector_store %arg9[%450, %c0_139], %448 {strides = array<i32>} : memref<16x128xbf16, #tpu.memory_space<vmem>>, vector<2x128xbf16>,
    %c4_i32_140 = arith.constant 4 : i32
    %c2_i32_141 = arith.constant 2 : i32
    %452 = arith.muli %c4_i32_140, %c2_i32_141 : i32
    %453 = arith.index_cast %452 : i32 to index
    %c0_142 = arith.constant 0 : index
    %454 = vector.load %arg12[%453, %c0_142] : memref<16x512xf32, #tpu.memory_space<vmem>>, vector<2x512xf32>
    %455 = arith.truncf %447 : vector<2x128xf32> to vector<2x128xbf16>
    %cst_143 = arith.constant dense<0.000000e+00> : vector<2x512xf32>
    %456 = tpu.matmul %455, %307, %cst_143 {dimension_numbers = #tpu.dot_dimension_numbers<[1], [0], [0], [1], [0, 0, 1, 1], [], []>} : vector<2x128xbf16>, vector<128x512xbf16>, vector<2x512xf32> -> vector<2x512xf32>
    %457 = arith.addf %454, %456 : vector<2x512xf32>
    %458 = vector.extract_strided_slice %457 {offsets = [0, 0], sizes = [2, 128], strides = [1, 1]} : vector<2x512xf32> to vector<2x128xf32>
    %459 = arith.negf %458 : vector<2x128xf32>
    %460 = math.exp %459 : vector<2x128xf32>
    %cst_144 = arith.constant 1.000000e+00 : f32
    %461 = vector.broadcast %cst_144 : f32 to vector<2x128xf32>
    %462 = arith.addf %461, %460 : vector<2x128xf32>
    %463 = arith.divf %461, %462 : vector<2x128xf32>
    %464 = vector.extract_strided_slice %457 {offsets = [0, 128], sizes = [2, 128], strides = [1, 1]} : vector<2x512xf32> to vector<2x128xf32>
    %465 = arith.negf %464 : vector<2x128xf32>
    %466 = math.exp %465 : vector<2x128xf32>
    %cst_145 = arith.constant 1.000000e+00 : f32
    %467 = vector.broadcast %cst_145 : f32 to vector<2x128xf32>
    %468 = arith.addf %467, %466 : vector<2x128xf32>
    %469 = arith.divf %467, %468 : vector<2x128xf32>
    %470 = vector.extract_strided_slice %457 {offsets = [0, 256], sizes = [2, 128], strides = [1, 1]} : vector<2x512xf32> to vector<2x128xf32>
    %471 = math.tanh %470 : vector<2x128xf32>
    %472 = vector.extract_strided_slice %457 {offsets = [0, 384], sizes = [2, 128], strides = [1, 1]} : vector<2x512xf32> to vector<2x128xf32>
    %473 = arith.negf %472 : vector<2x128xf32>
    %474 = math.exp %473 : vector<2x128xf32>
    %cst_146 = arith.constant 1.000000e+00 : f32
    %475 = vector.broadcast %cst_146 : f32 to vector<2x128xf32>
    %476 = arith.addf %475, %474 : vector<2x128xf32>
    %477 = arith.divf %475, %476 : vector<2x128xf32>
    %478 = arith.mulf %469, %445 : vector<2x128xf32>
    %479 = arith.mulf %463, %471 : vector<2x128xf32>
    %480 = arith.addf %478, %479 : vector<2x128xf32>
    %481 = math.tanh %480 : vector<2x128xf32>
    %482 = arith.mulf %477, %481 : vector<2x128xf32>
    %483 = arith.truncf %482 : vector<2x128xf32> to vector<2x128xbf16>
    %c2_i32_147 = arith.constant 2 : i32
    %484 = arith.muli %c4_i32_140, %c2_i32_147 : i32
    %485 = arith.index_cast %484 : i32 to index
    %c0_148 = arith.constant 0 : index
    %486 = vector.load %arg9[%485, %c0_148] : memref<16x128xbf16, #tpu.memory_space<vmem>>, vector<2x128xbf16>
    tpu.vector_store %arg9[%485, %c0_148], %483 {strides = array<i32>} : memref<16x128xbf16, #tpu.memory_space<vmem>>, vector<2x128xbf16>,
    %c5_i32_149 = arith.constant 5 : i32
    %c2_i32_150 = arith.constant 2 : i32
    %487 = arith.muli %c5_i32_149, %c2_i32_150 : i32
    %488 = arith.index_cast %487 : i32 to index
    %c0_151 = arith.constant 0 : index
    %489 = vector.load %arg12[%488, %c0_151] : memref<16x512xf32, #tpu.memory_space<vmem>>, vector<2x512xf32>
    %490 = arith.truncf %482 : vector<2x128xf32> to vector<2x128xbf16>
    %cst_152 = arith.constant dense<0.000000e+00> : vector<2x512xf32>
    %491 = tpu.matmul %490, %307, %cst_152 {dimension_numbers = #tpu.dot_dimension_numbers<[1], [0], [0], [1], [0, 0, 1, 1], [], []>} : vector<2x128xbf16>, vector<128x512xbf16>, vector<2x512xf32> -> vector<2x512xf32>
    %492 = arith.addf %489, %491 : vector<2x512xf32>
    %493 = vector.extract_strided_slice %492 {offsets = [0, 0], sizes = [2, 128], strides = [1, 1]} : vector<2x512xf32> to vector<2x128xf32>
    %494 = arith.negf %493 : vector<2x128xf32>
    %495 = math.exp %494 : vector<2x128xf32>
    %cst_153 = arith.constant 1.000000e+00 : f32
    %496 = vector.broadcast %cst_153 : f32 to vector<2x128xf32>
    %497 = arith.addf %496, %495 : vector<2x128xf32>
    %498 = arith.divf %496, %497 : vector<2x128xf32>
    %499 = vector.extract_strided_slice %492 {offsets = [0, 128], sizes = [2, 128], strides = [1, 1]} : vector<2x512xf32> to vector<2x128xf32>
    %500 = arith.negf %499 : vector<2x128xf32>
    %501 = math.exp %500 : vector<2x128xf32>
    %cst_154 = arith.constant 1.000000e+00 : f32
    %502 = vector.broadcast %cst_154 : f32 to vector<2x128xf32>
    %503 = arith.addf %502, %501 : vector<2x128xf32>
    %504 = arith.divf %502, %503 : vector<2x128xf32>
    %505 = vector.extract_strided_slice %492 {offsets = [0, 256], sizes = [2, 128], strides = [1, 1]} : vector<2x512xf32> to vector<2x128xf32>
    %506 = math.tanh %505 : vector<2x128xf32>
    %507 = vector.extract_strided_slice %492 {offsets = [0, 384], sizes = [2, 128], strides = [1, 1]} : vector<2x512xf32> to vector<2x128xf32>
    %508 = arith.negf %507 : vector<2x128xf32>
    %509 = math.exp %508 : vector<2x128xf32>
    %cst_155 = arith.constant 1.000000e+00 : f32
    %510 = vector.broadcast %cst_155 : f32 to vector<2x128xf32>
    %511 = arith.addf %510, %509 : vector<2x128xf32>
    %512 = arith.divf %510, %511 : vector<2x128xf32>
    %513 = arith.mulf %504, %480 : vector<2x128xf32>
    %514 = arith.mulf %498, %506 : vector<2x128xf32>
    %515 = arith.addf %513, %514 : vector<2x128xf32>
    %516 = math.tanh %515 : vector<2x128xf32>
    %517 = arith.mulf %512, %516 : vector<2x128xf32>
    %518 = arith.truncf %517 : vector<2x128xf32> to vector<2x128xbf16>
    %c2_i32_156 = arith.constant 2 : i32
    %519 = arith.muli %c5_i32_149, %c2_i32_156 : i32
    %520 = arith.index_cast %519 : i32 to index
    %c0_157 = arith.constant 0 : index
    %521 = vector.load %arg9[%520, %c0_157] : memref<16x128xbf16, #tpu.memory_space<vmem>>, vector<2x128xbf16>
    tpu.vector_store %arg9[%520, %c0_157], %518 {strides = array<i32>} : memref<16x128xbf16, #tpu.memory_space<vmem>>, vector<2x128xbf16>,
    %c6_i32_158 = arith.constant 6 : i32
    %c2_i32_159 = arith.constant 2 : i32
    %522 = arith.muli %c6_i32_158, %c2_i32_159 : i32
    %523 = arith.index_cast %522 : i32 to index
    %c0_160 = arith.constant 0 : index
    %524 = vector.load %arg12[%523, %c0_160] : memref<16x512xf32, #tpu.memory_space<vmem>>, vector<2x512xf32>
    %525 = arith.truncf %517 : vector<2x128xf32> to vector<2x128xbf16>
    %cst_161 = arith.constant dense<0.000000e+00> : vector<2x512xf32>
    %526 = tpu.matmul %525, %307, %cst_161 {dimension_numbers = #tpu.dot_dimension_numbers<[1], [0], [0], [1], [0, 0, 1, 1], [], []>} : vector<2x128xbf16>, vector<128x512xbf16>, vector<2x512xf32> -> vector<2x512xf32>
    %527 = arith.addf %524, %526 : vector<2x512xf32>
    %528 = vector.extract_strided_slice %527 {offsets = [0, 0], sizes = [2, 128], strides = [1, 1]} : vector<2x512xf32> to vector<2x128xf32>
    %529 = arith.negf %528 : vector<2x128xf32>
    %530 = math.exp %529 : vector<2x128xf32>
    %cst_162 = arith.constant 1.000000e+00 : f32
    %531 = vector.broadcast %cst_162 : f32 to vector<2x128xf32>
    %532 = arith.addf %531, %530 : vector<2x128xf32>
    %533 = arith.divf %531, %532 : vector<2x128xf32>
    %534 = vector.extract_strided_slice %527 {offsets = [0, 128], sizes = [2, 128], strides = [1, 1]} : vector<2x512xf32> to vector<2x128xf32>
    %535 = arith.negf %534 : vector<2x128xf32>
    %536 = math.exp %535 : vector<2x128xf32>
    %cst_163 = arith.constant 1.000000e+00 : f32
    %537 = vector.broadcast %cst_163 : f32 to vector<2x128xf32>
    %538 = arith.addf %537, %536 : vector<2x128xf32>
    %539 = arith.divf %537, %538 : vector<2x128xf32>
    %540 = vector.extract_strided_slice %527 {offsets = [0, 256], sizes = [2, 128], strides = [1, 1]} : vector<2x512xf32> to vector<2x128xf32>
    %541 = math.tanh %540 : vector<2x128xf32>
    %542 = vector.extract_strided_slice %527 {offsets = [0, 384], sizes = [2, 128], strides = [1, 1]} : vector<2x512xf32> to vector<2x128xf32>
    %543 = arith.negf %542 : vector<2x128xf32>
    %544 = math.exp %543 : vector<2x128xf32>
    %cst_164 = arith.constant 1.000000e+00 : f32
    %545 = vector.broadcast %cst_164 : f32 to vector<2x128xf32>
    %546 = arith.addf %545, %544 : vector<2x128xf32>
    %547 = arith.divf %545, %546 : vector<2x128xf32>
    %548 = arith.mulf %539, %515 : vector<2x128xf32>
    %549 = arith.mulf %533, %541 : vector<2x128xf32>
    %550 = arith.addf %548, %549 : vector<2x128xf32>
    %551 = math.tanh %550 : vector<2x128xf32>
    %552 = arith.mulf %547, %551 : vector<2x128xf32>
    %553 = arith.truncf %552 : vector<2x128xf32> to vector<2x128xbf16>
    %c2_i32_165 = arith.constant 2 : i32
    %554 = arith.muli %c6_i32_158, %c2_i32_165 : i32
    %555 = arith.index_cast %554 : i32 to index
    %c0_166 = arith.constant 0 : index
    %556 = vector.load %arg9[%555, %c0_166] : memref<16x128xbf16, #tpu.memory_space<vmem>>, vector<2x128xbf16>
    tpu.vector_store %arg9[%555, %c0_166], %553 {strides = array<i32>} : memref<16x128xbf16, #tpu.memory_space<vmem>>, vector<2x128xbf16>,
    %c7_i32_167 = arith.constant 7 : i32
    %c2_i32_168 = arith.constant 2 : i32
    %557 = arith.muli %c7_i32_167, %c2_i32_168 : i32
    %558 = arith.index_cast %557 : i32 to index
    %c0_169 = arith.constant 0 : index
    %559 = vector.load %arg12[%558, %c0_169] : memref<16x512xf32, #tpu.memory_space<vmem>>, vector<2x512xf32>
    %560 = arith.truncf %552 : vector<2x128xf32> to vector<2x128xbf16>
    %cst_170 = arith.constant dense<0.000000e+00> : vector<2x512xf32>
    %561 = tpu.matmul %560, %307, %cst_170 {dimension_numbers = #tpu.dot_dimension_numbers<[1], [0], [0], [1], [0, 0, 1, 1], [], []>} : vector<2x128xbf16>, vector<128x512xbf16>, vector<2x512xf32> -> vector<2x512xf32>
    %562 = arith.addf %559, %561 : vector<2x512xf32>
    %563 = vector.extract_strided_slice %562 {offsets = [0, 0], sizes = [2, 128], strides = [1, 1]} : vector<2x512xf32> to vector<2x128xf32>
    %564 = arith.negf %563 : vector<2x128xf32>
    %565 = math.exp %564 : vector<2x128xf32>
    %cst_171 = arith.constant 1.000000e+00 : f32
    %566 = vector.broadcast %cst_171 : f32 to vector<2x128xf32>
    %567 = arith.addf %566, %565 : vector<2x128xf32>
    %568 = arith.divf %566, %567 : vector<2x128xf32>
    %569 = vector.extract_strided_slice %562 {offsets = [0, 128], sizes = [2, 128], strides = [1, 1]} : vector<2x512xf32> to vector<2x128xf32>
    %570 = arith.negf %569 : vector<2x128xf32>
    %571 = math.exp %570 : vector<2x128xf32>
    %cst_172 = arith.constant 1.000000e+00 : f32
    %572 = vector.broadcast %cst_172 : f32 to vector<2x128xf32>
    %573 = arith.addf %572, %571 : vector<2x128xf32>
    %574 = arith.divf %572, %573 : vector<2x128xf32>
    %575 = vector.extract_strided_slice %562 {offsets = [0, 256], sizes = [2, 128], strides = [1, 1]} : vector<2x512xf32> to vector<2x128xf32>
    %576 = math.tanh %575 : vector<2x128xf32>
    %577 = vector.extract_strided_slice %562 {offsets = [0, 384], sizes = [2, 128], strides = [1, 1]} : vector<2x512xf32> to vector<2x128xf32>
    %578 = arith.negf %577 : vector<2x128xf32>
    %579 = math.exp %578 : vector<2x128xf32>
    %cst_173 = arith.constant 1.000000e+00 : f32
    %580 = vector.broadcast %cst_173 : f32 to vector<2x128xf32>
    %581 = arith.addf %580, %579 : vector<2x128xf32>
    %582 = arith.divf %580, %581 : vector<2x128xf32>
    %583 = arith.mulf %574, %550 : vector<2x128xf32>
    %584 = arith.mulf %568, %576 : vector<2x128xf32>
    %585 = arith.addf %583, %584 : vector<2x128xf32>
    %586 = math.tanh %585 : vector<2x128xf32>
    %587 = arith.mulf %582, %586 : vector<2x128xf32>
    %588 = arith.truncf %587 : vector<2x128xf32> to vector<2x128xbf16>
    %c2_i32_174 = arith.constant 2 : i32
    %589 = arith.muli %c7_i32_167, %c2_i32_174 : i32
    %590 = arith.index_cast %589 : i32 to index
    %c0_175 = arith.constant 0 : index
    %591 = vector.load %arg9[%590, %c0_175] : memref<16x128xbf16, #tpu.memory_space<vmem>>, vector<2x128xbf16>
    tpu.vector_store %arg9[%590, %c0_175], %588 {strides = array<i32>} : memref<16x128xbf16, #tpu.memory_space<vmem>>, vector<2x128xbf16>,
    %c8_i32_176 = arith.constant 8 : i32
    %c1_177 = arith.constant 1 : index
    %c0_178 = arith.constant 0 : index
    %c0_179 = arith.constant 0 : index
    %592 = vector.load %arg10[%c1_177, %c0_178, %c0_179] : memref<2x2x128xf32, #tpu.memory_space<vmem>>, vector<1x2x128xf32>
    %593 = vector.shape_cast %592 : vector<1x2x128xf32> to vector<2x128xf32>
    %594 = vector.shape_cast %587 : vector<2x128xf32> to vector<1x2x128xf32>
    tpu.vector_store %arg10[%c1_177, %c0_178, %c0_179], %594 {strides = array<i32>} : memref<2x2x128xf32, #tpu.memory_space<vmem>>, vector<1x2x128xf32>,
    %c1_180 = arith.constant 1 : index
    %c0_181 = arith.constant 0 : index
    %c0_182 = arith.constant 0 : index
    %595 = vector.load %arg11[%c1_180, %c0_181, %c0_182] : memref<2x2x128xf32, #tpu.memory_space<vmem>>, vector<1x2x128xf32>
    %596 = vector.shape_cast %595 : vector<1x2x128xf32> to vector<2x128xf32>
    %597 = vector.shape_cast %585 : vector<2x128xf32> to vector<1x2x128xf32>
    tpu.vector_store %arg11[%c1_180, %c0_181, %c0_182], %597 {strides = array<i32>} : memref<2x2x128xf32, #tpu.memory_space<vmem>>, vector<1x2x128xf32>,
    return
  }
}

</mosaic_0001>

<llo_original>
// kernel: tpu_custom_call.1
$region0: #{tpu_custom_call.1}
  #allocation0 [shape = 'u32[]', space=smem, size = 0x4, offset = 0x4, fixed_abs, tag = 'smem constant byte address 0x4 - core index']
  #allocation1 [shape = 'u32[144,128]{1,0:T(1,128)}', space=vmem, size = 0x12000, scoped, tag = 'internal scratch']
  #allocation2 [shape = 'f32[16,512]{1,0:T(8,128)}', space=vmem, size = 0x8000, scoped, tag = 'scratch operand']
  %s0 = inlined_call_operand.hbm [shape: bf16[16,128], index: 0, kind: input, shape index: {}]
  %s1 = inlined_call_operand.hbm [shape: f32[2,2,128], index: 1, kind: input, shape index: {}]
  %s2 = inlined_call_operand.hbm [shape: f32[2,2,128], index: 2, kind: input, shape index: {}]
  %s3 = inlined_call_operand.hbm [shape: bf16[128,512], index: 3, kind: input, shape index: {}]
  %s4 = inlined_call_operand.hbm [shape: bf16[128,512], index: 4, kind: input, shape index: {}]
  %s5 = inlined_call_operand.vmem [shape: f32[1,512], index: 5, kind: input, shape index: {}]
  %s6 = inlined_call_operand.hbm [shape: bf16[128,512], index: 6, kind: input, shape index: {}]
  %s7 = inlined_call_operand.hbm [shape: bf16[128,512], index: 7, kind: input, shape index: {}]
  %s8 = inlined_call_operand.vmem [shape: f32[1,512], index: 8, kind: input, shape index: {}]
  %s9 = inlined_call_operand.hbm [shape: bf16[16,128], index: 9, kind: output, shape index: {0}]
  %s10 = inlined_call_operand.hbm [shape: f32[2,2,128], index: 10, kind: output, shape index: {1}]
  %s11 = inlined_call_operand.hbm [shape: f32[2,2,128], index: 11, kind: output, shape index: {2}]
  %12 = xla_tuple %s9, %s10, %s11
  %s13 = sld [smem:[#allocation0]]
  $region90: #{tpu_custom_call.1} parent=0
    _
  %s15 = ssub.s32 1, %s13
  %s16 = scalar_select 0, %s15, %s13
  $region1: #{tpu_custom_call.1} parent=0
    #allocation3 [shape = 'u8[4096]{0}', space=vmem, size = 0x1000, scoped, tag = 'input window, operand 0, single buffered']
    #allocation4 [shape = 's32[1]{0}', space=sflag, size = 0x4, scoped, tag = 'scoped memory for tpu_custom_call.1']
    #allocation5 [shape = 's32[1]{0}', space=sflag, size = 0x4, scoped, tag = 'scoped memory for tpu_custom_call.1']
    #allocation6 [shape = 'u8[2048]{0}', space=vmem, size = 0x800, scoped, tag = 'input window, operand 1, single buffered']
    #allocation7 [shape = 's32[1]{0}', space=sflag, size = 0x4, scoped, tag = 'scoped memory for tpu_custom_call.1']
    #allocation8 [shape = 'u8[2048]{0}', space=vmem, size = 0x800, scoped, tag = 'input window, operand 2, single buffered']
    #allocation9 [shape = 'u8[131072]{0}', space=vmem, size = 0x20000, scoped, tag = 'input window, operand 3, single buffered']
    #allocation10 [shape = 's32[1]{0}', space=sflag, size = 0x4, scoped, tag = 'scoped memory for tpu_custom_call.1']
    #allocation11 [shape = 'u8[131072]{0}', space=vmem, size = 0x20000, scoped, tag = 'input window, operand 4, single buffered']
    #allocation12 [shape = 'u8[131072]{0}', space=vmem, size = 0x20000, scoped, tag = 'input window, operand 6, single buffered']
    #allocation13 [shape = 's32[1]{0}', space=sflag, size = 0x4, scoped, tag = 'scoped memory for tpu_custom_call.1']
    #allocation14 [shape = 'u8[131072]{0}', space=vmem, size = 0x20000, scoped, tag = 'input window, operand 7, single buffered']
    #allocation15 [shape = 'u8[4096]{0}', space=vmem, size = 0x1000, scoped, tag = 'output window, operand 0, single buffered']
    #allocation16 [shape = 'u8[2048]{0}', space=vmem, size = 0x800, scoped, tag = 'output window, operand 1, single buffered']
    #allocation17 [shape = 's32[1]{0}', space=sflag, size = 0x4, scoped, tag = 'scoped memory for tpu_custom_call.1']
    #allocation18 [shape = 'u8[2048]{0}', space=vmem, size = 0x800, scoped, tag = 'output window, operand 2, single buffered']
    %17 = vsyncpa [#allocation4], 0
    %18 = vsyncpa [#allocation7], 0
    %19 = vsyncpa [#allocation10], 0
    %20 = vsyncpa [#allocation13], 0
    %21 = vsyncpa [#allocation5], 0
    %22 = vsyncpa [#allocation17], 0
    // Predicated region
    $region2: #{tpu_custom_call.1} parent=1 // pred_check
      _
    $region3: #{tpu_custom_call.1} parent=1 // pred_check_branch
      %24 = sbr.rel (0) target = $region5
    $region4: #{tpu_custom_call.1} parent=1 // pred_region
      %s26 = ssub.s32 128, 128
      %27 = vsyncadd [#allocation4], %s26
      %s28 = sshll.u32 [#allocation3], 4
      %s29 = int_to_ptr.vmem [resolvable:$true] %s28
      %34 = dma.hbm_to_vmem [thread:$0]  %s0, 128, %s29, [#allocation4], 64, 64, 4
    $region5: #{tpu_custom_call.1} parent=1 // pred_fallthru
      _
    // Predicated region
    $region6: #{tpu_custom_call.1} parent=1 // pred_check
      _
    $region7: #{tpu_custom_call.1} parent=1 // pred_check_branch
      %36 = sbr.rel (0) target = $region9
    $region8: #{tpu_custom_call.1} parent=1 // pred_region
      %s38 = ssub.s32 64, 64
      %39 = vsyncadd [#allocation7], %s38
      %s40 = sshll.u32 [#allocation6], 4
      %s41 = int_to_ptr.vmem [resolvable:$true] %s40
      %46 = dma.hbm_to_vmem [thread:$0]  %s1, 64, %s41, [#allocation7], 32, 32, 2
    $region9: #{tpu_custom_call.1} parent=1 // pred_fallthru
      _
    // Predicated region
    $region10: #{tpu_custom_call.1} parent=1 // pred_check
      _
    $region11: #{tpu_custom_call.1} parent=1 // pred_check_branch
      %48 = sbr.rel (0) target = $region13
    $region12: #{tpu_custom_call.1} parent=1 // pred_region
      %s50 = ssub.s32 64, 64
      %51 = vsyncadd [#allocation7], %s50
      %s52 = sshll.u32 [#allocation8], 4
      %s53 = int_to_ptr.vmem [resolvable:$true] %s52
      %58 = dma.hbm_to_vmem [thread:$0]  %s2, 64, %s53, [#allocation7], 32, 32, 2
    $region13: #{tpu_custom_call.1} parent=1 // pred_fallthru
      _
    // Predicated region
    $region14: #{tpu_custom_call.1} parent=1 // pred_check
      _
    $region15: #{tpu_custom_call.1} parent=1 // pred_check_branch
      %60 = sbr.rel (0) target = $region17
    $region16: #{tpu_custom_call.1} parent=1 // pred_region
      %s62 = ssub.s32 4096, 4096
      %63 = vsyncadd [#allocation10], %s62
      %s64 = sshll.u32 [#allocation9], 4
      %s65 = int_to_ptr.vmem [resolvable:$true] %s64
      %70 = dma.hbm_to_vmem [thread:$0]  %s3, 4096, %s65, [#allocation10], 256, 256, 16
    $region17: #{tpu_custom_call.1} parent=1 // pred_fallthru
      _
    // Predicated region
    $region18: #{tpu_custom_call.1} parent=1 // pred_check
      _
    $region19: #{tpu_custom_call.1} parent=1 // pred_check_branch
      %72 = sbr.rel (0) target = $region21
    $region20: #{tpu_custom_call.1} parent=1 // pred_region
      %s74 = ssub.s32 4096, 4096
      %75 = vsyncadd [#allocation10], %s74
      %s76 = sshll.u32 [#allocation11], 4
      %s77 = int_to_ptr.vmem [resolvable:$true] %s76
      %82 = dma.hbm_to_vmem [thread:$0]  %s4, 4096, %s77, [#allocation10], 256, 256, 16
    $region21: #{tpu_custom_call.1} parent=1 // pred_fallthru
      _
    // Predicated region
    $region22: #{tpu_custom_call.1} parent=1 // pred_check
      _
    $region23: #{tpu_custom_call.1} parent=1 // pred_check_branch
      %84 = sbr.rel (0) target = $region25
    $region24: #{tpu_custom_call.1} parent=1 // pred_region
      _
    $region25: #{tpu_custom_call.1} parent=1 // pred_fallthru
      _
    // Predicated region
    $region26: #{tpu_custom_call.1} parent=1 // pred_check
      _
    $region27: #{tpu_custom_call.1} parent=1 // pred_check_branch
      %86 = sbr.rel (0) target = $region29
    $region28: #{tpu_custom_call.1} parent=1 // pred_region
      %s88 = ssub.s32 4096, 4096
      %89 = vsyncadd [#allocation13], %s88
      %s90 = sshll.u32 [#allocation12], 4
      %s91 = int_to_ptr.vmem [resolvable:$true] %s90
      %96 = dma.hbm_to_vmem [thread:$0]  %s6, 4096, %s91, [#allocation13], 256, 256, 16
    $region29: #{tpu_custom_call.1} parent=1 // pred_fallthru
      _
    // Predicated region
    $region30: #{tpu_custom_call.1} parent=1 // pred_check
      _
    $region31: #{tpu_custom_call.1} parent=1 // pred_check_branch
      %98 = sbr.rel (0) target = $region33
    $region32: #{tpu_custom_call.1} parent=1 // pred_region
      %s100 = ssub.s32 4096, 4096
      %101 = vsyncadd [#allocation13], %s100
      %s102 = sshll.u32 [#allocation14], 4
      %s103 = int_to_ptr.vmem [resolvable:$true] %s102
      %108 = dma.hbm_to_vmem [thread:$0]  %s7, 4096, %s103, [#allocation13], 256, 256, 16
    $region33: #{tpu_custom_call.1} parent=1 // pred_fallthru
      _
    // Predicated region
    $region34: #{tpu_custom_call.1} parent=1 // pred_check
      _
    $region35: #{tpu_custom_call.1} parent=1 // pred_check_branch
      %110 = sbr.rel (0) target = $region37
    $region36: #{tpu_custom_call.1} parent=1 // pred_region
      _
    $region37: #{tpu_custom_call.1} parent=1 // pred_fallthru
      _
    // Predicated region
    $region38: #{tpu_custom_call.1} parent=1 // pred_check
      _
    $region39: #{tpu_custom_call.1} parent=1 // pred_check_branch
      %112 = sbr.rel (0) target = $region41
    $region40: #{tpu_custom_call.1} parent=1 // pred_region
      %113 = dma.done [#allocation4], 128
    $region41: #{tpu_custom_call.1} parent=1 // pred_fallthru
      _
    // Predicated region
    $region42: #{tpu_custom_call.1} parent=1 // pred_check
      _
    $region43: #{tpu_custom_call.1} parent=1 // pred_check_branch
      %115 = sbr.rel (0) target = $region45
    $region44: #{tpu_custom_call.1} parent=1 // pred_region
      %116 = dma.done [#allocation7], 64
    $region45: #{tpu_custom_call.1} parent=1 // pred_fallthru
      _
    // Predicated region
    $region46: #{tpu_custom_call.1} parent=1 // pred_check
      _
    $region47: #{tpu_custom_call.1} parent=1 // pred_check_branch
      %118 = sbr.rel (0) target = $region49
    $region48: #{tpu_custom_call.1} parent=1 // pred_region
      %119 = dma.done [#allocation7], 64
    $region49: #{tpu_custom_call.1} parent=1 // pred_fallthru
      _
    // Predicated region
    $region50: #{tpu_custom_call.1} parent=1 // pred_check
      _
    $region51: #{tpu_custom_call.1} parent=1 // pred_check_branch
      %121 = sbr.rel (0) target = $region53
    $region52: #{tpu_custom_call.1} parent=1 // pred_region
      %122 = dma.done [#allocation10], 4096
    $region53: #{tpu_custom_call.1} parent=1 // pred_fallthru
      _
    // Predicated region
    $region54: #{tpu_custom_call.1} parent=1 // pred_check
      _
    $region55: #{tpu_custom_call.1} parent=1 // pred_check_branch
      %124 = sbr.rel (0) target = $region57
    $region56: #{tpu_custom_call.1} parent=1 // pred_region
      %125 = dma.done [#allocation10], 4096
    $region57: #{tpu_custom_call.1} parent=1 // pred_fallthru
      _
    // Predicated region
    $region58: #{tpu_custom_call.1} parent=1 // pred_check
      _
    $region59: #{tpu_custom_call.1} parent=1 // pred_check_branch
      %127 = sbr.rel (0) target = $region61
    $region60: #{tpu_custom_call.1} parent=1 // pred_region
      %128 = dma.done [#allocation13], 4096
    $region61: #{tpu_custom_call.1} parent=1 // pred_fallthru
      _
    // Predicated region
    $region62: #{tpu_custom_call.1} parent=1 // pred_check
      _
    $region63: #{tpu_custom_call.1} parent=1 // pred_check_branch
      %130 = sbr.rel (0) target = $region65
    $region64: #{tpu_custom_call.1} parent=1 // pred_region
      %131 = dma.done [#allocation13], 4096
    $region65: #{tpu_custom_call.1} parent=1 // pred_fallthru
      _
    %133 = vst [vmem:[#allocation15] sm:$0xf] 0
    %134 = vst [vmem:[#allocation15 + $0x4] sm:$0xf] 0
    %v135 = vld [vmem:[#allocation3] sm:$0xf]
    %v136 = vld [vmem:[#allocation3 + $0x4] sm:$0xf]
    %v137 = vld [vmem:[#allocation9] sm:$0xff]
    %v138 = vld [vmem:[#allocation9 + $0x8] sm:$0xff]
    %v139 = vld [vmem:[#allocation9 + $0x10] sm:$0xff]
    %v140 = vld [vmem:[#allocation9 + $0x18] sm:$0xff]
    %v141 = vld [vmem:[#allocation9 + $0x20] sm:$0xff]
    %v142 = vld [vmem:[#allocation9 + $0x28] sm:$0xff]
    %v143 = vld [vmem:[#allocation9 + $0x30] sm:$0xff]
    %v144 = vld [vmem:[#allocation9 + $0x38] sm:$0xff]
    %v145 = vld [vmem:[#allocation9 + $0x40] sm:$0xff]
    %v146 = vld [vmem:[#allocation9 + $0x48] sm:$0xff]
    %v147 = vld [vmem:[#allocation9 + $0x50] sm:$0xff]
    %v148 = vld [vmem:[#allocation9 + $0x58] sm:$0xff]
    %v149 = vld [vmem:[#allocation9 + $0x60] sm:$0xff]
    %v150 = vld [vmem:[#allocation9 + $0x68] sm:$0xff]
    %v151 = vld [vmem:[#allocation9 + $0x70] sm:$0xff]
    %v152 = vld [vmem:[#allocation9 + $0x78] sm:$0xff]
    %v153 = vld [vmem:[#allocation9 + $0x80] sm:$0xff]
    %v154 = vld [vmem:[#allocation9 + $0x88] sm:$0xff]
    %v155 = vld [vmem:[#allocation9 + $0x90] sm:$0xff]
    %v156 = vld [vmem:[#allocation9 + $0x98] sm:$0xff]
    %v157 = vld [vmem:[#allocation9 + $0xa0] sm:$0xff]
    %v158 = vld [vmem:[#allocation9 + $0xa8] sm:$0xff]
    %v159 = vld [vmem:[#allocation9 + $0xb0] sm:$0xff]
    %v160 = vld [vmem:[#allocation9 + $0xb8] sm:$0xff]
    %v161 = vld [vmem:[#allocation9 + $0xc0] sm:$0xff]
    %v162 = vld [vmem:[#allocation9 + $0xc8] sm:$0xff]
    %v163 = vld [vmem:[#allocation9 + $0xd0] sm:$0xff]
    %v164 = vld [vmem:[#allocation9 + $0xd8] sm:$0xff]
    %v165 = vld [vmem:[#allocation9 + $0xe0] sm:$0xff]
    %v166 = vld [vmem:[#allocation9 + $0xe8] sm:$0xff]
    %v167 = vld [vmem:[#allocation9 + $0xf0] sm:$0xff]
    %v168 = vld [vmem:[#allocation9 + $0xf8] sm:$0xff]
    %v169 = vld [vmem:[%s5] sm:$0xf]
    %v171 = vlaneseq
    %v172 = vshrl.u32 %v171, 7
    %v173 = vsub.s32 0, %v172
    %v174 = vrot.slane %v169, %v173
    %v175 = vlaneseq
    %v176 = vshrl.u32 %v175, 7
    %v177 = vsub.s32 1, %v176
    %v178 = vrot.slane %v169, %v177
    %v179 = vlaneseq
    %v180 = vshrl.u32 %v179, 7
    %v181 = vsub.s32 2, %v180
    %v182 = vrot.slane %v169, %v181
    %v183 = vlaneseq
    %v184 = vshrl.u32 %v183, 7
    %v185 = vsub.s32 3, %v184
    %v186 = vrot.slane %v169, %v185
    %v193 = vunpack.c.l.b16 %v135
    %v194 = vunpack.c.l.b16 %v136
    %v195 = vpack.c.b16 %v194, %v193
    %v229 = vunpack.c.l.b16 %v137
    %v230 = vunpack.c.h.b16 %v137
    %v231 = vunpack.c.l.b16 %v138
    %v232 = vunpack.c.h.b16 %v138
    %v233 = vunpack.c.l.b16 %v139
    %v234 = vunpack.c.h.b16 %v139
    %v235 = vunpack.c.l.b16 %v140
    %v236 = vunpack.c.h.b16 %v140
    %v237 = vunpack.c.l.b16 %v141
    %v238 = vunpack.c.h.b16 %v141
    %v239 = vunpack.c.l.b16 %v142
    %v240 = vunpack.c.h.b16 %v142
    %v241 = vunpack.c.l.b16 %v143
    %v242 = vunpack.c.h.b16 %v143
    %v243 = vunpack.c.l.b16 %v144
    %v244 = vunpack.c.h.b16 %v144
    %v245 = vunpack.c.l.b16 %v145
    %v246 = vunpack.c.h.b16 %v145
    %v247 = vunpack.c.l.b16 %v146
    %v248 = vunpack.c.h.b16 %v146
    %v249 = vunpack.c.l.b16 %v147
    %v250 = vunpack.c.h.b16 %v147
    %v251 = vunpack.c.l.b16 %v148
    %v252 = vunpack.c.h.b16 %v148
    %v253 = vunpack.c.l.b16 %v149
    %v254 = vunpack.c.h.b16 %v149
    %v255 = vunpack.c.l.b16 %v150
    %v256 = vunpack.c.h.b16 %v150
    %v257 = vunpack.c.l.b16 %v151
    %v258 = vunpack.c.h.b16 %v151
    %v259 = vunpack.c.l.b16 %v152
    %v260 = vunpack.c.h.b16 %v152
    %v261 = vunpack.c.l.b16 %v153
    %v262 = vunpack.c.h.b16 %v153
    %v263 = vunpack.c.l.b16 %v154
    %v264 = vunpack.c.h.b16 %v154
    %v265 = vunpack.c.l.b16 %v155
    %v266 = vunpack.c.h.b16 %v155
    %v267 = vunpack.c.l.b16 %v156
    %v268 = vunpack.c.h.b16 %v156
    %v269 = vunpack.c.l.b16 %v157
    %v270 = vunpack.c.h.b16 %v157
    %v271 = vunpack.c.l.b16 %v158
    %v272 = vunpack.c.h.b16 %v158
    %v273 = vunpack.c.l.b16 %v159
    %v274 = vunpack.c.h.b16 %v159
    %v275 = vunpack.c.l.b16 %v160
    %v276 = vunpack.c.h.b16 %v160
    %v277 = vunpack.c.l.b16 %v161
    %v278 = vunpack.c.h.b16 %v161
    %v279 = vunpack.c.l.b16 %v162
    %v280 = vunpack.c.h.b16 %v162
    %v281 = vunpack.c.l.b16 %v163
    %v282 = vunpack.c.h.b16 %v163
    %v283 = vunpack.c.l.b16 %v164
    %v284 = vunpack.c.h.b16 %v164
    %v285 = vunpack.c.l.b16 %v165
    %v286 = vunpack.c.h.b16 %v165
    %v287 = vunpack.c.l.b16 %v166
    %v288 = vunpack.c.h.b16 %v166
    %v289 = vunpack.c.l.b16 %v167
    %v290 = vunpack.c.h.b16 %v167
    %v291 = vunpack.c.l.b16 %v168
    %v292 = vunpack.c.h.b16 %v168
    %v293 = vpack.c.b16 %v233, %v229
    %v294 = vpack.c.b16 %v234, %v230
    %v295 = vpack.c.b16 %v235, %v231
    %v296 = vpack.c.b16 %v236, %v232
    %v297 = vpack.c.b16 %v241, %v237
    %v298 = vpack.c.b16 %v242, %v238
    %v299 = vpack.c.b16 %v243, %v239
    %v300 = vpack.c.b16 %v244, %v240
    %v301 = vpack.c.b16 %v249, %v245
    %v302 = vpack.c.b16 %v250, %v246
    %v303 = vpack.c.b16 %v251, %v247
    %v304 = vpack.c.b16 %v252, %v248
    %v305 = vpack.c.b16 %v257, %v253
    %v306 = vpack.c.b16 %v258, %v254
    %v307 = vpack.c.b16 %v259, %v255
    %v308 = vpack.c.b16 %v260, %v256
    %v309 = vpack.c.b16 %v265, %v261
    %v310 = vpack.c.b16 %v266, %v262
    %v311 = vpack.c.b16 %v267, %v263
    %v312 = vpack.c.b16 %v268, %v264
    %v313 = vpack.c.b16 %v273, %v269
    %v314 = vpack.c.b16 %v274, %v270
    %v315 = vpack.c.b16 %v275, %v271
    %v316 = vpack.c.b16 %v276, %v272
    %v317 = vpack.c.b16 %v281, %v277
    %v318 = vpack.c.b16 %v282, %v278
    %v319 = vpack.c.b16 %v283, %v279
    %v320 = vpack.c.b16 %v284, %v280
    %v321 = vpack.c.b16 %v289, %v285
    %v322 = vpack.c.b16 %v290, %v286
    %v323 = vpack.c.b16 %v291, %v287
    %v324 = vpack.c.b16 %v292, %v288
    %357 = vmatprep.subr.bf16.mxu0 %v322
    %358 = vmatpush1.bf16.msra.mxu0 %v321
    %359 = vmatprep.subr.bf16.mxu0 %v318
    %360 = vmatpush1.bf16.msra.mxu0 %v317
    %361 = vmatprep.subr.bf16.mxu0 %v314
    %362 = vmatpush1.bf16.msra.mxu0 %v313
    %363 = vmatprep.subr.bf16.mxu0 %v310
    %364 = vmatpush1.bf16.msra.mxu0 %v309
    %365 = vmatprep.subr.bf16.mxu0 %v306
    %366 = vmatpush1.bf16.msra.mxu0 %v305
    %367 = vmatprep.subr.bf16.mxu0 %v302
    %368 = vmatpush1.bf16.msra.mxu0 %v301
    %369 = vmatprep.subr.bf16.mxu0 %v298
    %370 = vmatpush1.bf16.msra.mxu0 %v297
    %371 = vmatprep.subr.bf16.mxu0 %v294
    %372 = vmatpush1.bf16.msra.mxu0 %v293
    %373 = vmatprep.subr.bf16.mxu0 0
    %374 = vmatpush2.bf16.msra.mxu0 0
    %375 = vmatprep.subr.bf16.mxu0 0
    %376 = vmatpush2.bf16.msra.mxu0 0
    %377 = vmatprep.subr.bf16.mxu0 0
    %378 = vmatpush2.bf16.msra.mxu0 0
    %379 = vmatprep.subr.bf16.mxu0 0
    %380 = vmatpush2.bf16.msra.mxu0 0
    %381 = vmatprep.subr.bf16.mxu0 0
    %382 = vmatpush2.bf16.msra.mxu0 0
    %383 = vmatprep.subr.bf16.mxu0 0
    %384 = vmatpush2.bf16.msra.mxu0 0
    %385 = vmatprep.subr.bf16.mxu0 0
    %386 = vmatpush2.bf16.msra.mxu0 0
    %387 = vmatprep.subr.bf16.mxu0 0
    %388 = vmatpush2.bf16.msra.mxu0 0
    %389 = vmatprep.mubr.bf16.mxu0 0
    %390 = vmatmul.mubr.bf16.gmra.mxu0 %v195
    %v391 = vpop.f32.mrf.mxu0
    %v392 = vadd.f32 %v174, %v391
    %v393 = vpop.f32.mrf.mxu0
    %v394 = vadd.f32 %v178, %v393
    %v395 = vpop.f32.mrf.mxu0
    %v396 = vadd.f32 %v174, %v395
    %v397 = vpop.f32.mrf.mxu0
    %v398 = vadd.f32 %v178, %v397
    %399 = vdwg.mxu0
    %400 = vmatprep.subr.bf16.mxu0 %v324
    %401 = vmatpush1.bf16.msra.mxu0 %v323
    %402 = vmatprep.subr.bf16.mxu0 %v320
    %403 = vmatpush1.bf16.msra.mxu0 %v319
    %404 = vmatprep.subr.bf16.mxu0 %v316
    %405 = vmatpush1.bf16.msra.mxu0 %v315
    %406 = vmatprep.subr.bf16.mxu0 %v312
    %407 = vmatpush1.bf16.msra.mxu0 %v311
    %408 = vmatprep.subr.bf16.mxu0 %v308
    %409 = vmatpush1.bf16.msra.mxu0 %v307
    %410 = vmatprep.subr.bf16.mxu0 %v304
    %411 = vmatpush1.bf16.msra.mxu0 %v303
    %412 = vmatprep.subr.bf16.mxu0 %v300
    %413 = vmatpush1.bf16.msra.mxu0 %v299
    %414 = vmatprep.subr.bf16.mxu0 %v296
    %415 = vmatpush1.bf16.msra.mxu0 %v295
    %416 = vmatprep.subr.bf16.mxu0 0
    %417 = vmatpush2.bf16.msra.mxu0 0
    %418 = vmatprep.subr.bf16.mxu0 0
    %419 = vmatpush2.bf16.msra.mxu0 0
    %420 = vmatprep.subr.bf16.mxu0 0
    %421 = vmatpush2.bf16.msra.mxu0 0
    %422 = vmatprep.subr.bf16.mxu0 0
    %423 = vmatpush2.bf16.msra.mxu0 0
    %424 = vmatprep.subr.bf16.mxu0 0
    %425 = vmatpush2.bf16.msra.mxu0 0
    %426 = vmatprep.subr.bf16.mxu0 0
    %427 = vmatpush2.bf16.msra.mxu0 0
    %428 = vmatprep.subr.bf16.mxu0 0
    %429 = vmatpush2.bf16.msra.mxu0 0
    %430 = vmatprep.subr.bf16.mxu0 0
    %431 = vmatpush2.bf16.msra.mxu0 0
    %432 = vmatprep.mubr.bf16.mxu0 0
    %433 = vmatmul.mubr.bf16.gmra.mxu0 %v195
    %v434 = vpop.f32.mrf.mxu0
    %v435 = vadd.f32 %v182, %v434
    %v436 = vpop.f32.mrf.mxu0
    %v437 = vadd.f32 %v186, %v436
    %v438 = vpop.f32.mrf.mxu0
    %v439 = vadd.f32 %v182, %v438
    %v440 = vpop.f32.mrf.mxu0
    %v441 = vadd.f32 %v186, %v440
    %442 = vdwg.mxu0
    %443 = vst [vmem:[#allocation2] sm:$0xff] %v392
    %444 = vst [vmem:[#allocation2 + $0x8] sm:$0xff] %v394
    %445 = vst [vmem:[#allocation2 + $0x10] sm:$0xff] %v435
    %446 = vst [vmem:[#allocation2 + $0x18] sm:$0xff] %v437
    %447 = vst [vmem:[#allocation2 + $0x20] sm:$0xff] %v396
    %448 = vst [vmem:[#allocation2 + $0x28] sm:$0xff] %v398
    %449 = vst [vmem:[#allocation2 + $0x30] sm:$0xff] %v439
    %450 = vst [vmem:[#allocation2 + $0x38] sm:$0xff] %v441
    %v451 = vld [vmem:[#allocation11] sm:$0xff]
    %v452 = vld [vmem:[#allocation11 + $0x8] sm:$0xff]
    %v453 = vld [vmem:[#allocation11 + $0x10] sm:$0xff]
    %v454 = vld [vmem:[#allocation11 + $0x18] sm:$0xff]
    %v455 = vld [vmem:[#allocation11 + $0x20] sm:$0xff]
    %v456 = vld [vmem:[#allocation11 + $0x28] sm:$0xff]
    %v457 = vld [vmem:[#allocation11 + $0x30] sm:$0xff]
    %v458 = vld [vmem:[#allocation11 + $0x38] sm:$0xff]
    %v459 = vld [vmem:[#allocation11 + $0x40] sm:$0xff]
    %v460 = vld [vmem:[#allocation11 + $0x48] sm:$0xff]
    %v461 = vld [vmem:[#allocation11 + $0x50] sm:$0xff]
    %v462 = vld [vmem:[#allocation11 + $0x58] sm:$0xff]
    %v463 = vld [vmem:[#allocation11 + $0x60] sm:$0xff]
    %v464 = vld [vmem:[#allocation11 + $0x68] sm:$0xff]
    %v465 = vld [vmem:[#allocation11 + $0x70] sm:$0xff]
    %v466 = vld [vmem:[#allocation11 + $0x78] sm:$0xff]
    %v467 = vld [vmem:[#allocation11 + $0x80] sm:$0xff]
    %v468 = vld [vmem:[#allocation11 + $0x88] sm:$0xff]
    %v469 = vld [vmem:[#allocation11 + $0x90] sm:$0xff]
    %v470 = vld [vmem:[#allocation11 + $0x98] sm:$0xff]
    %v471 = vld [vmem:[#allocation11 + $0xa0] sm:$0xff]
    %v472 = vld [vmem:[#allocation11 + $0xa8] sm:$0xff]
    %v473 = vld [vmem:[#allocation11 + $0xb0] sm:$0xff]
    %v474 = vld [vmem:[#allocation11 + $0xb8] sm:$0xff]
    %v475 = vld [vmem:[#allocation11 + $0xc0] sm:$0xff]
    %v476 = vld [vmem:[#allocation11 + $0xc8] sm:$0xff]
    %v477 = vld [vmem:[#allocation11 + $0xd0] sm:$0xff]
    %v478 = vld [vmem:[#allocation11 + $0xd8] sm:$0xff]
    %v479 = vld [vmem:[#allocation11 + $0xe0] sm:$0xff]
    %v480 = vld [vmem:[#allocation11 + $0xe8] sm:$0xff]
    %v481 = vld [vmem:[#allocation11 + $0xf0] sm:$0xff]
    %v482 = vld [vmem:[#allocation11 + $0xf8] sm:$0xff]
    %v483 = vld [vmem:[#allocation6] sm:$0x3]
    %v484 = vld [vmem:[#allocation8] sm:$0x3]
    %v485 = vld [vmem:[#allocation2] sm:$0x3]
    %v486 = vld [vmem:[#allocation2 + $0x8] sm:$0x3]
    %v487 = vld [vmem:[#allocation2 + $0x10] sm:$0x3]
    %v488 = vld [vmem:[#allocation2 + $0x18] sm:$0x3]
    %v489 = vpack.c.bf16 %v483, %v483
    %v522 = vunpack.c.l.b16 %v451
    %v523 = vunpack.c.h.b16 %v451
    %v524 = vunpack.c.l.b16 %v452
    %v525 = vunpack.c.h.b16 %v452
    %v526 = vunpack.c.l.b16 %v453
    %v527 = vunpack.c.h.b16 %v453
    %v528 = vunpack.c.l.b16 %v454
    %v529 = vunpack.c.h.b16 %v454
    %v530 = vunpack.c.l.b16 %v455
    %v531 = vunpack.c.h.b16 %v455
    %v532 = vunpack.c.l.b16 %v456
    %v533 = vunpack.c.h.b16 %v456
    %v534 = vunpack.c.l.b16 %v457
    %v535 = vunpack.c.h.b16 %v457
    %v536 = vunpack.c.l.b16 %v458
    %v537 = vunpack.c.h.b16 %v458
    %v538 = vunpack.c.l.b16 %v459
    %v539 = vunpack.c.h.b16 %v459
    %v540 = vunpack.c.l.b16 %v460
    %v541 = vunpack.c.h.b16 %v460
    %v542 = vunpack.c.l.b16 %v461
    %v543 = vunpack.c.h.b16 %v461
    %v544 = vunpack.c.l.b16 %v462
    %v545 = vunpack.c.h.b16 %v462
    %v546 = vunpack.c.l.b16 %v463
    %v547 = vunpack.c.h.b16 %v463
    %v548 = vunpack.c.l.b16 %v464
    %v549 = vunpack.c.h.b16 %v464
    %v550 = vunpack.c.l.b16 %v465
    %v551 = vunpack.c.h.b16 %v465
    %v552 = vunpack.c.l.b16 %v466
    %v553 = vunpack.c.h.b16 %v466
    %v554 = vunpack.c.l.b16 %v467
    %v555 = vunpack.c.h.b16 %v467
    %v556 = vunpack.c.l.b16 %v468
    %v557 = vunpack.c.h.b16 %v468
    %v558 = vunpack.c.l.b16 %v469
    %v559 = vunpack.c.h.b16 %v469
    %v560 = vunpack.c.l.b16 %v470
    %v561 = vunpack.c.h.b16 %v470
    %v562 = vunpack.c.l.b16 %v471
    %v563 = vunpack.c.h.b16 %v471
    %v564 = vunpack.c.l.b16 %v472
    %v565 = vunpack.c.h.b16 %v472
    %v566 = vunpack.c.l.b16 %v473
    %v567 = vunpack.c.h.b16 %v473
    %v568 = vunpack.c.l.b16 %v474
    %v569 = vunpack.c.h.b16 %v474
    %v570 = vunpack.c.l.b16 %v475
    %v571 = vunpack.c.h.b16 %v475
    %v572 = vunpack.c.l.b16 %v476
    %v573 = vunpack.c.h.b16 %v476
    %v574 = vunpack.c.l.b16 %v477
    %v575 = vunpack.c.h.b16 %v477
    %v576 = vunpack.c.l.b16 %v478
    %v577 = vunpack.c.h.b16 %v478
    %v578 = vunpack.c.l.b16 %v479
    %v579 = vunpack.c.h.b16 %v479
    %v580 = vunpack.c.l.b16 %v480
    %v581 = vunpack.c.h.b16 %v480
    %v582 = vunpack.c.l.b16 %v481
    %v583 = vunpack.c.h.b16 %v481
    %v584 = vunpack.c.l.b16 %v482
    %v585 = vunpack.c.h.b16 %v482
    %v586 = vpack.c.b16 %v526, %v522
    %v587 = vpack.c.b16 %v527, %v523
    %v588 = vpack.c.b16 %v528, %v524
    %v589 = vpack.c.b16 %v529, %v525
    %v590 = vpack.c.b16 %v534, %v530
    %v591 = vpack.c.b16 %v535, %v531
    %v592 = vpack.c.b16 %v536, %v532
    %v593 = vpack.c.b16 %v537, %v533
    %v594 = vpack.c.b16 %v542, %v538
    %v595 = vpack.c.b16 %v543, %v539
    %v596 = vpack.c.b16 %v544, %v540
    %v597 = vpack.c.b16 %v545, %v541
    %v598 = vpack.c.b16 %v550, %v546
    %v599 = vpack.c.b16 %v551, %v547
    %v600 = vpack.c.b16 %v552, %v548
    %v601 = vpack.c.b16 %v553, %v549
    %v602 = vpack.c.b16 %v558, %v554
    %v603 = vpack.c.b16 %v559, %v555
    %v604 = vpack.c.b16 %v560, %v556
    %v605 = vpack.c.b16 %v561, %v557
    %v606 = vpack.c.b16 %v566, %v562
    %v607 = vpack.c.b16 %v567, %v563
    %v608 = vpack.c.b16 %v568, %v564
    %v609 = vpack.c.b16 %v569, %v565
    %v610 = vpack.c.b16 %v574, %v570
    %v611 = vpack.c.b16 %v575, %v571
    %v612 = vpack.c.b16 %v576, %v572
    %v613 = vpack.c.b16 %v577, %v573
    %v614 = vpack.c.b16 %v582, %v578
    %v615 = vpack.c.b16 %v583, %v579
    %v616 = vpack.c.b16 %v584, %v580
    %v617 = vpack.c.b16 %v585, %v581
    %650 = vmatprep.subr.bf16.mxu0 %v615
    %651 = vmatpush1.bf16.msra.mxu0 %v614
    %652 = vmatprep.subr.bf16.mxu0 %v611
    %653 = vmatpush1.bf16.msra.mxu0 %v610
    %654 = vmatprep.subr.bf16.mxu0 %v607
    %655 = vmatpush1.bf16.msra.mxu0 %v606
    %656 = vmatprep.subr.bf16.mxu0 %v603
    %657 = vmatpush1.bf16.msra.mxu0 %v602
    %658 = vmatprep.subr.bf16.mxu0 %v599
    %659 = vmatpush1.bf16.msra.mxu0 %v598
    %660 = vmatprep.subr.bf16.mxu0 %v595
    %661 = vmatpush1.bf16.msra.mxu0 %v594
    %662 = vmatprep.subr.bf16.mxu0 %v591
    %663 = vmatpush1.bf16.msra.mxu0 %v590
    %664 = vmatprep.subr.bf16.mxu0 %v587
    %665 = vmatpush1.bf16.msra.mxu0 %v586
    %666 = vmatprep.subr.bf16.mxu0 0
    %667 = vmatpush2.bf16.msra.mxu0 0
    %668 = vmatprep.subr.bf16.mxu0 0
    %669 = vmatpush2.bf16.msra.mxu0 0
    %670 = vmatprep.subr.bf16.mxu0 0
    %671 = vmatpush2.bf16.msra.mxu0 0
    %672 = vmatprep.subr.bf16.mxu0 0
    %673 = vmatpush2.bf16.msra.mxu0 0
    %674 = vmatprep.subr.bf16.mxu0 0
    %675 = vmatpush2.bf16.msra.mxu0 0
    %676 = vmatprep.subr.bf16.mxu0 0
    %677 = vmatpush2.bf16.msra.mxu0 0
    %678 = vmatprep.subr.bf16.mxu0 0
    %679 = vmatpush2.bf16.msra.mxu0 0
    %680 = vmatprep.subr.bf16.mxu0 0
    %681 = vmatpush2.bf16.msra.mxu0 0
    %682 = vmatprep.mubr.bf16.mxu0 0
    %683 = vmatmul.mubr.bf16.gmra.mxu0 %v489
    %v684 = vpop.f32.mrf.mxu0
    %v685 = vadd.f32 0.0, %v684
    %v686 = vpop.f32.mrf.mxu0
    %v687 = vadd.f32 0.0, %v686
    %v688 = vpop.f32.mrf.mxu0
    %v689 = vpop.f32.mrf.mxu0
    %690 = vdwg.mxu0
    %691 = vmatprep.subr.bf16.mxu0 %v617
    %692 = vmatpush1.bf16.msra.mxu0 %v616
    %693 = vmatprep.subr.bf16.mxu0 %v613
    %694 = vmatpush1.bf16.msra.mxu0 %v612
    %695 = vmatprep.subr.bf16.mxu0 %v609
    %696 = vmatpush1.bf16.msra.mxu0 %v608
    %697 = vmatprep.subr.bf16.mxu0 %v605
    %698 = vmatpush1.bf16.msra.mxu0 %v604
    %699 = vmatprep.subr.bf16.mxu0 %v601
    %700 = vmatpush1.bf16.msra.mxu0 %v600
    %701 = vmatprep.subr.bf16.mxu0 %v597
    %702 = vmatpush1.bf16.msra.mxu0 %v596
    %703 = vmatprep.subr.bf16.mxu0 %v593
    %704 = vmatpush1.bf16.msra.mxu0 %v592
    %705 = vmatprep.subr.bf16.mxu0 %v589
    %706 = vmatpush1.bf16.msra.mxu0 %v588
    %707 = vmatprep.subr.bf16.mxu0 0
    %708 = vmatpush2.bf16.msra.mxu0 0
    %709 = vmatprep.subr.bf16.mxu0 0
    %710 = vmatpush2.bf16.msra.mxu0 0
    %711 = vmatprep.subr.bf16.mxu0 0
    %712 = vmatpush2.bf16.msra.mxu0 0
    %713 = vmatprep.subr.bf16.mxu0 0
    %714 = vmatpush2.bf16.msra.mxu0 0
    %715 = vmatprep.subr.bf16.mxu0 0
    %716 = vmatpush2.bf16.msra.mxu0 0
    %717 = vmatprep.subr.bf16.mxu0 0
    %718 = vmatpush2.bf16.msra.mxu0 0
    %719 = vmatprep.subr.bf16.mxu0 0
    %720 = vmatpush2.bf16.msra.mxu0 0
    %721 = vmatprep.subr.bf16.mxu0 0
    %722 = vmatpush2.bf16.msra.mxu0 0
    %723 = vmatprep.mubr.bf16.mxu0 0
    %724 = vmatmul.mubr.bf16.gmra.mxu0 %v489
    %v725 = vpop.f32.mrf.mxu0
    %v726 = vadd.f32 0.0, %v725
    %v727 = vpop.f32.mrf.mxu0
    %v728 = vadd.f32 0.0, %v727
    %v729 = vpop.f32.mrf.mxu0
    %v730 = vpop.f32.mrf.mxu0
    %731 = vdwg.mxu0
    %v732 = vadd.f32 %v485, %v685
    %v733 = vadd.f32 %v486, %v687
    %v734 = vadd.f32 %v487, %v726
    %v735 = vadd.f32 %v488, %v728
    %v736 = vxor.u32 %v732, 2147483648
    %v737 = vmul.f32 %v736, 1.442695
    %v738 = vpow.pop %v737
    %v739 = vadd.f32 %v738, 1.0
    %v740 = vrcp.pop %v739
    %v741 = vmul.f32 1.0, %v740
    %v742 = vxor.u32 %v733, 2147483648
    %v743 = vmul.f32 %v742, 1.442695
    %v744 = vpow.pop %v743
    %v745 = vadd.f32 %v744, 1.0
    %v746 = vrcp.pop %v745
    %v747 = vmul.f32 1.0, %v746
    %v748 = vtanh.pop %v734
    %v749 = vxor.u32 %v735, 2147483648
    %v750 = vmul.f32 %v749, 1.442695
    %v751 = vpow.pop %v750
    %v752 = vadd.f32 %v751, 1.0
    %v753 = vrcp.pop %v752
    %v754 = vmul.f32 1.0, %v753
    %v755 = vmul.f32 %v747, %v484
    %v756 = vmul.f32 %v741, %v748
    %v757 = vadd.f32 %v755, %v756
    %v758 = vtanh.pop %v757
    %v759 = vmul.f32 %v754, %v758
    %v760 = vpack.c.bf16 %v759, %v759
    %761 = vst [vmem:[#allocation15] sm:$0x1] %v760
    %v762 = vld [vmem:[#allocation2] sm:$0xc]
    %v763 = vld [vmem:[#allocation2 + $0x8] sm:$0xc]
    %v764 = vld [vmem:[#allocation2 + $0x10] sm:$0xc]
    %v765 = vld [vmem:[#allocation2 + $0x18] sm:$0xc]
    %766 = vmatprep.subr.bf16.mxu0 %v615
    %767 = vmatpush1.bf16.msra.mxu0 %v614
    %768 = vmatprep.subr.bf16.mxu0 %v611
    %769 = vmatpush1.bf16.msra.mxu0 %v610
    %770 = vmatprep.subr.bf16.mxu0 %v607
    %771 = vmatpush1.bf16.msra.mxu0 %v606
    %772 = vmatprep.subr.bf16.mxu0 %v603
    %773 = vmatpush1.bf16.msra.mxu0 %v602
    %774 = vmatprep.subr.bf16.mxu0 %v599
    %775 = vmatpush1.bf16.msra.mxu0 %v598
    %776 = vmatprep.subr.bf16.mxu0 %v595
    %777 = vmatpush1.bf16.msra.mxu0 %v594
    %778 = vmatprep.subr.bf16.mxu0 %v591
    %779 = vmatpush1.bf16.msra.mxu0 %v590
    %780 = vmatprep.subr.bf16.mxu0 %v587
    %781 = vmatpush1.bf16.msra.mxu0 %v586
    %782 = vmatprep.subr.bf16.mxu0 0
    %783 = vmatpush2.bf16.msra.mxu0 0
    %784 = vmatprep.subr.bf16.mxu0 0
    %785 = vmatpush2.bf16.msra.mxu0 0
    %786 = vmatprep.subr.bf16.mxu0 0
    %787 = vmatpush2.bf16.msra.mxu0 0
    %788 = vmatprep.subr.bf16.mxu0 0
    %789 = vmatpush2.bf16.msra.mxu0 0
    %790 = vmatprep.subr.bf16.mxu0 0
    %791 = vmatpush2.bf16.msra.mxu0 0
    %792 = vmatprep.subr.bf16.mxu0 0
    %793 = vmatpush2.bf16.msra.mxu0 0
    %794 = vmatprep.subr.bf16.mxu0 0
    %795 = vmatpush2.bf16.msra.mxu0 0
    %796 = vmatprep.subr.bf16.mxu0 0
    %797 = vmatpush2.bf16.msra.mxu0 0
    %798 = vmatprep.mubr.bf16.mxu0 0
    %799 = vmatmul.mubr.bf16.gmra.mxu0 %v760
    %v800 = vpop.f32.mrf.mxu0
    %v801 = vadd.f32 0.0, %v800
    %v802 = vpop.f32.mrf.mxu0
    %v803 = vadd.f32 0.0, %v802
    %v804 = vpop.f32.mrf.mxu0
    %v805 = vpop.f32.mrf.mxu0
    %806 = vdwg.mxu0
    %807 = vmatprep.subr.bf16.mxu0 %v617
    %808 = vmatpush1.bf16.msra.mxu0 %v616
    %809 = vmatprep.subr.bf16.mxu0 %v613
    %810 = vmatpush1.bf16.msra.mxu0 %v612
    %811 = vmatprep.subr.bf16.mxu0 %v609
    %812 = vmatpush1.bf16.msra.mxu0 %v608
    %813 = vmatprep.subr.bf16.mxu0 %v605
    %814 = vmatpush1.bf16.msra.mxu0 %v604
    %815 = vmatprep.subr.bf16.mxu0 %v601
    %816 = vmatpush1.bf16.msra.mxu0 %v600
    %817 = vmatprep.subr.bf16.mxu0 %v597
    %818 = vmatpush1.bf16.msra.mxu0 %v596
    %819 = vmatprep.subr.bf16.mxu0 %v593
    %820 = vmatpush1.bf16.msra.mxu0 %v592
    %821 = vmatprep.subr.bf16.mxu0 %v589
    %822 = vmatpush1.bf16.msra.mxu0 %v588
    %823 = vmatprep.subr.bf16.mxu0 0
    %824 = vmatpush2.bf16.msra.mxu0 0
    %825 = vmatprep.subr.bf16.mxu0 0
    %826 = vmatpush2.bf16.msra.mxu0 0
    %827 = vmatprep.subr.bf16.mxu0 0
    %828 = vmatpush2.bf16.msra.mxu0 0
    %829 = vmatprep.subr.bf16.mxu0 0
    %830 = vmatpush2.bf16.msra.mxu0 0
    %831 = vmatprep.subr.bf16.mxu0 0
    %832 = vmatpush2.bf16.msra.mxu0 0
    %833 = vmatprep.subr.bf16.mxu0 0
    %834 = vmatpush2.bf16.msra.mxu0 0
    %835 = vmatprep.subr.bf16.mxu0 0
    %836 = vmatpush2.bf16.msra.mxu0 0
    %837 = vmatprep.subr.bf16.mxu0 0
    %838 = vmatpush2.bf16.msra.mxu0 0
    %839 = vmatprep.mubr.bf16.mxu0 0
    %840 = vmatmul.mubr.bf16.gmra.mxu0 %v760
    %v841 = vpop.f32.mrf.mxu0
    %v842 = vadd.f32 0.0, %v841
    %v843 = vpop.f32.mrf.mxu0
    %v844 = vadd.f32 0.0, %v843
    %v845 = vpop.f32.mrf.mxu0
    %v846 = vpop.f32.mrf.mxu0
    %847 = vdwg.mxu0
    %v852 = vrot.slane %v801, 6
    %v853 = vrot.slane %v803, 6
    %v854 = vrot.slane %v842, 6
    %v855 = vrot.slane %v844, 6
    %v860 = vadd.f32 %v762, %v852
    %v861 = vadd.f32 %v763, %v853
    %v862 = vadd.f32 %v764, %v854
    %v863 = vadd.f32 %v765, %v855
    %v864 = vxor.u32 %v860, 2147483648
    %v865 = vmul.f32 %v864, 1.442695
    %v866 = vpow.pop %v865
    %v867 = vadd.f32 %v866, 1.0
    %v868 = vrcp.pop %v867
    %v869 = vmul.f32 1.0, %v868
    %v870 = vxor.u32 %v861, 2147483648
    %v871 = vmul.f32 %v870, 1.442695
    %v872 = vpow.pop %v871
    %v873 = vadd.f32 %v872, 1.0
    %v874 = vrcp.pop %v873
    %v875 = vmul.f32 1.0, %v874
    %v876 = vtanh.pop %v862
    %v877 = vxor.u32 %v863, 2147483648
    %v878 = vmul.f32 %v877, 1.442695
    %v879 = vpow.pop %v878
    %v880 = vadd.f32 %v879, 1.0
    %v881 = vrcp.pop %v880
    %v882 = vmul.f32 1.0, %v881
    %v884 = vrot.slane %v757, 6
    %v886 = vmul.f32 %v875, %v884
    %v887 = vmul.f32 %v869, %v876
    %v888 = vadd.f32 %v886, %v887
    %v889 = vtanh.pop %v888
    %v890 = vmul.f32 %v882, %v889
    %v891 = vpack.c.bf16 %v890, %v890
    %892 = vst [vmem:[#allocation15] sm:$0x2] %v891
    %v893 = vld [vmem:[#allocation2] sm:$0x30]
    %v894 = vld [vmem:[#allocation2 + $0x8] sm:$0x30]
    %v895 = vld [vmem:[#allocation2 + $0x10] sm:$0x30]
    %v896 = vld [vmem:[#allocation2 + $0x18] sm:$0x30]
    %v898 = vrot.slane %v891, 1
    %900 = vmatprep.subr.bf16.mxu0 %v615
    %901 = vmatpush1.bf16.msra.mxu0 %v614
    %902 = vmatprep.subr.bf16.mxu0 %v611
    %903 = vmatpush1.bf16.msra.mxu0 %v610
    %904 = vmatprep.subr.bf16.mxu0 %v607
    %905 = vmatpush1.bf16.msra.mxu0 %v606
    %906 = vmatprep.subr.bf16.mxu0 %v603
    %907 = vmatpush1.bf16.msra.mxu0 %v602
    %908 = vmatprep.subr.bf16.mxu0 %v599
    %909 = vmatpush1.bf16.msra.mxu0 %v598
    %910 = vmatprep.subr.bf16.mxu0 %v595
    %911 = vmatpush1.bf16.msra.mxu0 %v594
    %912 = vmatprep.subr.bf16.mxu0 %v591
    %913 = vmatpush1.bf16.msra.mxu0 %v590
    %914 = vmatprep.subr.bf16.mxu0 %v587
    %915 = vmatpush1.bf16.msra.mxu0 %v586
    %916 = vmatprep.subr.bf16.mxu0 0
    %917 = vmatpush2.bf16.msra.mxu0 0
    %918 = vmatprep.subr.bf16.mxu0 0
    %919 = vmatpush2.bf16.msra.mxu0 0
    %920 = vmatprep.subr.bf16.mxu0 0
    %921 = vmatpush2.bf16.msra.mxu0 0
    %922 = vmatprep.subr.bf16.mxu0 0
    %923 = vmatpush2.bf16.msra.mxu0 0
    %924 = vmatprep.subr.bf16.mxu0 0
    %925 = vmatpush2.bf16.msra.mxu0 0
    %926 = vmatprep.subr.bf16.mxu0 0
    %927 = vmatpush2.bf16.msra.mxu0 0
    %928 = vmatprep.subr.bf16.mxu0 0
    %929 = vmatpush2.bf16.msra.mxu0 0
    %930 = vmatprep.subr.bf16.mxu0 0
    %931 = vmatpush2.bf16.msra.mxu0 0
    %932 = vmatprep.mubr.bf16.mxu0 0
    %933 = vmatmul.mubr.bf16.gmra.mxu0 %v898
    %v934 = vpop.f32.mrf.mxu0
    %v935 = vadd.f32 0.0, %v934
    %v936 = vpop.f32.mrf.mxu0
    %v937 = vadd.f32 0.0, %v936
    %v938 = vpop.f32.mrf.mxu0
    %v939 = vpop.f32.mrf.mxu0
    %940 = vdwg.mxu0
    %941 = vmatprep.subr.bf16.mxu0 %v617
    %942 = vmatpush1.bf16.msra.mxu0 %v616
    %943 = vmatprep.subr.bf16.mxu0 %v613
    %944 = vmatpush1.bf16.msra.mxu0 %v612
    %945 = vmatprep.subr.bf16.mxu0 %v609
    %946 = vmatpush1.bf16.msra.mxu0 %v608
    %947 = vmatprep.subr.bf16.mxu0 %v605
    %948 = vmatpush1.bf16.msra.mxu0 %v604
    %949 = vmatprep.subr.bf16.mxu0 %v601
    %950 = vmatpush1.bf16.msra.mxu0 %v600
    %951 = vmatprep.subr.bf16.mxu0 %v597
    %952 = vmatpush1.bf16.msra.mxu0 %v596
    %953 = vmatprep.subr.bf16.mxu0 %v593
    %954 = vmatpush1.bf16.msra.mxu0 %v592
    %955 = vmatprep.subr.bf16.mxu0 %v589
    %956 = vmatpush1.bf16.msra.mxu0 %v588
    %957 = vmatprep.subr.bf16.mxu0 0
    %958 = vmatpush2.bf16.msra.mxu0 0
    %959 = vmatprep.subr.bf16.mxu0 0
    %960 = vmatpush2.bf16.msra.mxu0 0
    %961 = vmatprep.subr.bf16.mxu0 0
    %962 = vmatpush2.bf16.msra.mxu0 0
    %963 = vmatprep.subr.bf16.mxu0 0
    %964 = vmatpush2.bf16.msra.mxu0 0
    %965 = vmatprep.subr.bf16.mxu0 0
    %966 = vmatpush2.bf16.msra.mxu0 0
    %967 = vmatprep.subr.bf16.mxu0 0
    %968 = vmatpush2.bf16.msra.mxu0 0
    %969 = vmatprep.subr.bf16.mxu0 0
    %970 = vmatpush2.bf16.msra.mxu0 0
    %971 = vmatprep.subr.bf16.mxu0 0
    %972 = vmatpush2.bf16.msra.mxu0 0
    %973 = vmatprep.mubr.bf16.mxu0 0
    %974 = vmatmul.mubr.bf16.gmra.mxu0 %v898
    %v975 = vpop.f32.mrf.mxu0
    %v976 = vadd.f32 0.0, %v975
    %v977 = vpop.f32.mrf.mxu0
    %v978 = vadd.f32 0.0, %v977
    %v979 = vpop.f32.mrf.mxu0
    %v980 = vpop.f32.mrf.mxu0
    %981 = vdwg.mxu0
    %v986 = vrot.slane %v935, 4
    %v987 = vrot.slane %v937, 4
    %v988 = vrot.slane %v976, 4
    %v989 = vrot.slane %v978, 4
    %v994 = vadd.f32 %v893, %v986
    %v995 = vadd.f32 %v894, %v987
    %v996 = vadd.f32 %v895, %v988
    %v997 = vadd.f32 %v896, %v989
    %v998 = vxor.u32 %v994, 2147483648
    %v999 = vmul.f32 %v998, 1.442695
    %v1000 = vpow.pop %v999
    %v1001 = vadd.f32 %v1000, 1.0
    %v1002 = vrcp.pop %v1001
    %v1003 = vmul.f32 1.0, %v1002
    %v1004 = vxor.u32 %v995, 2147483648
    %v1005 = vmul.f32 %v1004, 1.442695
    %v1006 = vpow.pop %v1005
    %v1007 = vadd.f32 %v1006, 1.0
    %v1008 = vrcp.pop %v1007
    %v1009 = vmul.f32 1.0, %v1008
    %v1010 = vtanh.pop %v996
    %v1011 = vxor.u32 %v997, 2147483648
    %v1012 = vmul.f32 %v1011, 1.442695
    %v1013 = vpow.pop %v1012
    %v1014 = vadd.f32 %v1013, 1.0
    %v1015 = vrcp.pop %v1014
    %v1016 = vmul.f32 1.0, %v1015
    %v1018 = vrot.slane %v888, 6
    %v1020 = vmul.f32 %v1009, %v1018
    %v1021 = vmul.f32 %v1003, %v1010
    %v1022 = vadd.f32 %v1020, %v1021
    %v1023 = vtanh.pop %v1022
    %v1024 = vmul.f32 %v1016, %v1023
    %v1025 = vpack.c.bf16 %v1024, %v1024
    %1026 = vst [vmem:[#allocation15] sm:$0x4] %v1025
    %v1027 = vld [vmem:[#allocation2] sm:$0xc0]
    %v1028 = vld [vmem:[#allocation2 + $0x8] sm:$0xc0]
    %v1029 = vld [vmem:[#allocation2 + $0x10] sm:$0xc0]
    %v1030 = vld [vmem:[#allocation2 + $0x18] sm:$0xc0]
    %v1032 = vrot.slane %v1025, 2
    %1034 = vmatprep.subr.bf16.mxu0 %v615
    %1035 = vmatpush1.bf16.msra.mxu0 %v614
    %1036 = vmatprep.subr.bf16.mxu0 %v611
    %1037 = vmatpush1.bf16.msra.mxu0 %v610
    %1038 = vmatprep.subr.bf16.mxu0 %v607
    %1039 = vmatpush1.bf16.msra.mxu0 %v606
    %1040 = vmatprep.subr.bf16.mxu0 %v603
    %1041 = vmatpush1.bf16.msra.mxu0 %v602
    %1042 = vmatprep.subr.bf16.mxu0 %v599
    %1043 = vmatpush1.bf16.msra.mxu0 %v598
    %1044 = vmatprep.subr.bf16.mxu0 %v595
    %1045 = vmatpush1.bf16.msra.mxu0 %v594
    %1046 = vmatprep.subr.bf16.mxu0 %v591
    %1047 = vmatpush1.bf16.msra.mxu0 %v590
    %1048 = vmatprep.subr.bf16.mxu0 %v587
    %1049 = vmatpush1.bf16.msra.mxu0 %v586
    %1050 = vmatprep.subr.bf16.mxu0 0
    %1051 = vmatpush2.bf16.msra.mxu0 0
    %1052 = vmatprep.subr.bf16.mxu0 0
    %1053 = vmatpush2.bf16.msra.mxu0 0
    %1054 = vmatprep.subr.bf16.mxu0 0
    %1055 = vmatpush2.bf16.msra.mxu0 0
    %1056 = vmatprep.subr.bf16.mxu0 0
    %1057 = vmatpush2.bf16.msra.mxu0 0
    %1058 = vmatprep.subr.bf16.mxu0 0
    %1059 = vmatpush2.bf16.msra.mxu0 0
    %1060 = vmatprep.subr.bf16.mxu0 0
    %1061 = vmatpush2.bf16.msra.mxu0 0
    %1062 = vmatprep.subr.bf16.mxu0 0
    %1063 = vmatpush2.bf16.msra.mxu0 0
    %1064 = vmatprep.subr.bf16.mxu0 0
    %1065 = vmatpush2.bf16.msra.mxu0 0
    %1066 = vmatprep.mubr.bf16.mxu0 0
    %1067 = vmatmul.mubr.bf16.gmra.mxu0 %v1032
    %v1068 = vpop.f32.mrf.mxu0
    %v1069 = vadd.f32 0.0, %v1068
    %v1070 = vpop.f32.mrf.mxu0
    %v1071 = vadd.f32 0.0, %v1070
    %v1072 = vpop.f32.mrf.mxu0
    %v1073 = vpop.f32.mrf.mxu0
    %1074 = vdwg.mxu0
    %1075 = vmatprep.subr.bf16.mxu0 %v617
    %1076 = vmatpush1.bf16.msra.mxu0 %v616
    %1077 = vmatprep.subr.bf16.mxu0 %v613
    %1078 = vmatpush1.bf16.msra.mxu0 %v612
    %1079 = vmatprep.subr.bf16.mxu0 %v609
    %1080 = vmatpush1.bf16.msra.mxu0 %v608
    %1081 = vmatprep.subr.bf16.mxu0 %v605
    %1082 = vmatpush1.bf16.msra.mxu0 %v604
    %1083 = vmatprep.subr.bf16.mxu0 %v601
    %1084 = vmatpush1.bf16.msra.mxu0 %v600
    %1085 = vmatprep.subr.bf16.mxu0 %v597
    %1086 = vmatpush1.bf16.msra.mxu0 %v596
    %1087 = vmatprep.subr.bf16.mxu0 %v593
    %1088 = vmatpush1.bf16.msra.mxu0 %v592
    %1089 = vmatprep.subr.bf16.mxu0 %v589
    %1090 = vmatpush1.bf16.msra.mxu0 %v588
    %1091 = vmatprep.subr.bf16.mxu0 0
    %1092 = vmatpush2.bf16.msra.mxu0 0
    %1093 = vmatprep.subr.bf16.mxu0 0
    %1094 = vmatpush2.bf16.msra.mxu0 0
    %1095 = vmatprep.subr.bf16.mxu0 0
    %1096 = vmatpush2.bf16.msra.mxu0 0
    %1097 = vmatprep.subr.bf16.mxu0 0
    %1098 = vmatpush2.bf16.msra.mxu0 0
    %1099 = vmatprep.subr.bf16.mxu0 0
    %1100 = vmatpush2.bf16.msra.mxu0 0
    %1101 = vmatprep.subr.bf16.mxu0 0
    %1102 = vmatpush2.bf16.msra.mxu0 0
    %1103 = vmatprep.subr.bf16.mxu0 0
    %1104 = vmatpush2.bf16.msra.mxu0 0
    %1105 = vmatprep.subr.bf16.mxu0 0
    %1106 = vmatpush2.bf16.msra.mxu0 0
    %1107 = vmatprep.mubr.bf16.mxu0 0
    %1108 = vmatmul.mubr.bf16.gmra.mxu0 %v1032
    %v1109 = vpop.f32.mrf.mxu0
    %v1110 = vadd.f32 0.0, %v1109
    %v1111 = vpop.f32.mrf.mxu0
    %v1112 = vadd.f32 0.0, %v1111
    %v1113 = vpop.f32.mrf.mxu0
    %v1114 = vpop.f32.mrf.mxu0
    %1115 = vdwg.mxu0
    %v1120 = vrot.slane %v1069, 2
    %v1121 = vrot.slane %v1071, 2
    %v1122 = vrot.slane %v1110, 2
    %v1123 = vrot.slane %v1112, 2
    %v1128 = vadd.f32 %v1027, %v1120
    %v1129 = vadd.f32 %v1028, %v1121
    %v1130 = vadd.f32 %v1029, %v1122
    %v1131 = vadd.f32 %v1030, %v1123
    %v1132 = vxor.u32 %v1128, 2147483648
    %v1133 = vmul.f32 %v1132, 1.442695
    %v1134 = vpow.pop %v1133
    %v1135 = vadd.f32 %v1134, 1.0
    %v1136 = vrcp.pop %v1135
    %v1137 = vmul.f32 1.0, %v1136
    %v1138 = vxor.u32 %v1129, 2147483648
    %v1139 = vmul.f32 %v1138, 1.442695
    %v1140 = vpow.pop %v1139
    %v1141 = vadd.f32 %v1140, 1.0
    %v1142 = vrcp.pop %v1141
    %v1143 = vmul.f32 1.0, %v1142
    %v1144 = vtanh.pop %v1130
    %v1145 = vxor.u32 %v1131, 2147483648
    %v1146 = vmul.f32 %v1145, 1.442695
    %v1147 = vpow.pop %v1146
    %v1148 = vadd.f32 %v1147, 1.0
    %v1149 = vrcp.pop %v1148
    %v1150 = vmul.f32 1.0, %v1149
    %v1152 = vrot.slane %v1022, 6
    %v1154 = vmul.f32 %v1143, %v1152
    %v1155 = vmul.f32 %v1137, %v1144
    %v1156 = vadd.f32 %v1154, %v1155
    %v1157 = vtanh.pop %v1156
    %v1158 = vmul.f32 %v1150, %v1157
    %v1159 = vpack.c.bf16 %v1158, %v1158
    %1160 = vst [vmem:[#allocation15] sm:$0x8] %v1159
    %v1161 = vld [vmem:[#allocation2 + $0x20] sm:$0x3]
    %v1162 = vld [vmem:[#allocation2 + $0x28] sm:$0x3]
    %v1163 = vld [vmem:[#allocation2 + $0x30] sm:$0x3]
    %v1164 = vld [vmem:[#allocation2 + $0x38] sm:$0x3]
    %v1166 = vrot.slane %v1159, 3
    %1168 = vmatprep.subr.bf16.mxu0 %v615
    %1169 = vmatpush1.bf16.msra.mxu0 %v614
    %1170 = vmatprep.subr.bf16.mxu0 %v611
    %1171 = vmatpush1.bf16.msra.mxu0 %v610
    %1172 = vmatprep.subr.bf16.mxu0 %v607
    %1173 = vmatpush1.bf16.msra.mxu0 %v606
    %1174 = vmatprep.subr.bf16.mxu0 %v603
    %1175 = vmatpush1.bf16.msra.mxu0 %v602
    %1176 = vmatprep.subr.bf16.mxu0 %v599
    %1177 = vmatpush1.bf16.msra.mxu0 %v598
    %1178 = vmatprep.subr.bf16.mxu0 %v595
    %1179 = vmatpush1.bf16.msra.mxu0 %v594
    %1180 = vmatprep.subr.bf16.mxu0 %v591
    %1181 = vmatpush1.bf16.msra.mxu0 %v590
    %1182 = vmatprep.subr.bf16.mxu0 %v587
    %1183 = vmatpush1.bf16.msra.mxu0 %v586
    %1184 = vmatprep.subr.bf16.mxu0 0
    %1185 = vmatpush2.bf16.msra.mxu0 0
    %1186 = vmatprep.subr.bf16.mxu0 0
    %1187 = vmatpush2.bf16.msra.mxu0 0
    %1188 = vmatprep.subr.bf16.mxu0 0
    %1189 = vmatpush2.bf16.msra.mxu0 0
    %1190 = vmatprep.subr.bf16.mxu0 0
    %1191 = vmatpush2.bf16.msra.mxu0 0
    %1192 = vmatprep.subr.bf16.mxu0 0
    %1193 = vmatpush2.bf16.msra.mxu0 0
    %1194 = vmatprep.subr.bf16.mxu0 0
    %1195 = vmatpush2.bf16.msra.mxu0 0
    %1196 = vmatprep.subr.bf16.mxu0 0
    %1197 = vmatpush2.bf16.msra.mxu0 0
    %1198 = vmatprep.subr.bf16.mxu0 0
    %1199 = vmatpush2.bf16.msra.mxu0 0
    %1200 = vmatprep.mubr.bf16.mxu0 0
    %1201 = vmatmul.mubr.bf16.gmra.mxu0 %v1166
    %v1202 = vpop.f32.mrf.mxu0
    %v1203 = vadd.f32 0.0, %v1202
    %v1204 = vpop.f32.mrf.mxu0
    %v1205 = vadd.f32 0.0, %v1204
    %v1206 = vpop.f32.mrf.mxu0
    %v1207 = vpop.f32.mrf.mxu0
    %1208 = vdwg.mxu0
    %1209 = vmatprep.subr.bf16.mxu0 %v617
    %1210 = vmatpush1.bf16.msra.mxu0 %v616
    %1211 = vmatprep.subr.bf16.mxu0 %v613
    %1212 = vmatpush1.bf16.msra.mxu0 %v612
    %1213 = vmatprep.subr.bf16.mxu0 %v609
    %1214 = vmatpush1.bf16.msra.mxu0 %v608
    %1215 = vmatprep.subr.bf16.mxu0 %v605
    %1216 = vmatpush1.bf16.msra.mxu0 %v604
    %1217 = vmatprep.subr.bf16.mxu0 %v601
    %1218 = vmatpush1.bf16.msra.mxu0 %v600
    %1219 = vmatprep.subr.bf16.mxu0 %v597
    %1220 = vmatpush1.bf16.msra.mxu0 %v596
    %1221 = vmatprep.subr.bf16.mxu0 %v593
    %1222 = vmatpush1.bf16.msra.mxu0 %v592
    %1223 = vmatprep.subr.bf16.mxu0 %v589
    %1224 = vmatpush1.bf16.msra.mxu0 %v588
    %1225 = vmatprep.subr.bf16.mxu0 0
    %1226 = vmatpush2.bf16.msra.mxu0 0
    %1227 = vmatprep.subr.bf16.mxu0 0
    %1228 = vmatpush2.bf16.msra.mxu0 0
    %1229 = vmatprep.subr.bf16.mxu0 0
    %1230 = vmatpush2.bf16.msra.mxu0 0
    %1231 = vmatprep.subr.bf16.mxu0 0
    %1232 = vmatpush2.bf16.msra.mxu0 0
    %1233 = vmatprep.subr.bf16.mxu0 0
    %1234 = vmatpush2.bf16.msra.mxu0 0
    %1235 = vmatprep.subr.bf16.mxu0 0
    %1236 = vmatpush2.bf16.msra.mxu0 0
    %1237 = vmatprep.subr.bf16.mxu0 0
    %1238 = vmatpush2.bf16.msra.mxu0 0
    %1239 = vmatprep.subr.bf16.mxu0 0
    %1240 = vmatpush2.bf16.msra.mxu0 0
    %1241 = vmatprep.mubr.bf16.mxu0 0
    %1242 = vmatmul.mubr.bf16.gmra.mxu0 %v1166
    %v1243 = vpop.f32.mrf.mxu0
    %v1244 = vadd.f32 0.0, %v1243
    %v1245 = vpop.f32.mrf.mxu0
    %v1246 = vadd.f32 0.0, %v1245
    %v1247 = vpop.f32.mrf.mxu0
    %v1248 = vpop.f32.mrf.mxu0
    %1249 = vdwg.mxu0
    %v1250 = vadd.f32 %v1161, %v1203
    %v1251 = vadd.f32 %v1162, %v1205
    %v1252 = vadd.f32 %v1163, %v1244
    %v1253 = vadd.f32 %v1164, %v1246
    %v1254 = vxor.u32 %v1250, 2147483648
    %v1255 = vmul.f32 %v1254, 1.442695
    %v1256 = vpow.pop %v1255
    %v1257 = vadd.f32 %v1256, 1.0
    %v1258 = vrcp.pop %v1257
    %v1259 = vmul.f32 1.0, %v1258
    %v1260 = vxor.u32 %v1251, 2147483648
    %v1261 = vmul.f32 %v1260, 1.442695
    %v1262 = vpow.pop %v1261
    %v1263 = vadd.f32 %v1262, 1.0
    %v1264 = vrcp.pop %v1263
    %v1265 = vmul.f32 1.0, %v1264
    %v1266 = vtanh.pop %v1252
    %v1267 = vxor.u32 %v1253, 2147483648
    %v1268 = vmul.f32 %v1267, 1.442695
    %v1269 = vpow.pop %v1268
    %v1270 = vadd.f32 %v1269, 1.0
    %v1271 = vrcp.pop %v1270
    %v1272 = vmul.f32 1.0, %v1271
    %v1274 = vrot.slane %v1156, 6
    %v1276 = vmul.f32 %v1265, %v1274
    %v1277 = vmul.f32 %v1259, %v1266
    %v1278 = vadd.f32 %v1276, %v1277
    %v1279 = vtanh.pop %v1278
    %v1280 = vmul.f32 %v1272, %v1279
    %v1281 = vpack.c.bf16 %v1280, %v1280
    %1282 = vst [vmem:[#allocation15 + $0x4] sm:$0x1] %v1281
    %v1283 = vld [vmem:[#allocation2 + $0x20] sm:$0xc]
    %v1284 = vld [vmem:[#allocation2 + $0x28] sm:$0xc]
    %v1285 = vld [vmem:[#allocation2 + $0x30] sm:$0xc]
    %v1286 = vld [vmem:[#allocation2 + $0x38] sm:$0xc]
    %1287 = vmatprep.subr.bf16.mxu0 %v615
    %1288 = vmatpush1.bf16.msra.mxu0 %v614
    %1289 = vmatprep.subr.bf16.mxu0 %v611
    %1290 = vmatpush1.bf16.msra.mxu0 %v610
    %1291 = vmatprep.subr.bf16.mxu0 %v607
    %1292 = vmatpush1.bf16.msra.mxu0 %v606
    %1293 = vmatprep.subr.bf16.mxu0 %v603
    %1294 = vmatpush1.bf16.msra.mxu0 %v602
    %1295 = vmatprep.subr.bf16.mxu0 %v599
    %1296 = vmatpush1.bf16.msra.mxu0 %v598
    %1297 = vmatprep.subr.bf16.mxu0 %v595
    %1298 = vmatpush1.bf16.msra.mxu0 %v594
    %1299 = vmatprep.subr.bf16.mxu0 %v591
    %1300 = vmatpush1.bf16.msra.mxu0 %v590
    %1301 = vmatprep.subr.bf16.mxu0 %v587
    %1302 = vmatpush1.bf16.msra.mxu0 %v586
    %1303 = vmatprep.subr.bf16.mxu0 0
    %1304 = vmatpush2.bf16.msra.mxu0 0
    %1305 = vmatprep.subr.bf16.mxu0 0
    %1306 = vmatpush2.bf16.msra.mxu0 0
    %1307 = vmatprep.subr.bf16.mxu0 0
    %1308 = vmatpush2.bf16.msra.mxu0 0
    %1309 = vmatprep.subr.bf16.mxu0 0
    %1310 = vmatpush2.bf16.msra.mxu0 0
    %1311 = vmatprep.subr.bf16.mxu0 0
    %1312 = vmatpush2.bf16.msra.mxu0 0
    %1313 = vmatprep.subr.bf16.mxu0 0
    %1314 = vmatpush2.bf16.msra.mxu0 0
    %1315 = vmatprep.subr.bf16.mxu0 0
    %1316 = vmatpush2.bf16.msra.mxu0 0
    %1317 = vmatprep.subr.bf16.mxu0 0
    %1318 = vmatpush2.bf16.msra.mxu0 0
    %1319 = vmatprep.mubr.bf16.mxu0 0
    %1320 = vmatmul.mubr.bf16.gmra.mxu0 %v1281
    %v1321 = vpop.f32.mrf.mxu0
    %v1322 = vadd.f32 0.0, %v1321
    %v1323 = vpop.f32.mrf.mxu0
    %v1324 = vadd.f32 0.0, %v1323
    %v1325 = vpop.f32.mrf.mxu0
    %v1326 = vpop.f32.mrf.mxu0
    %1327 = vdwg.mxu0
    %1328 = vmatprep.subr.bf16.mxu0 %v617
    %1329 = vmatpush1.bf16.msra.mxu0 %v616
    %1330 = vmatprep.subr.bf16.mxu0 %v613
    %1331 = vmatpush1.bf16.msra.mxu0 %v612
    %1332 = vmatprep.subr.bf16.mxu0 %v609
    %1333 = vmatpush1.bf16.msra.mxu0 %v608
    %1334 = vmatprep.subr.bf16.mxu0 %v605
    %1335 = vmatpush1.bf16.msra.mxu0 %v604
    %1336 = vmatprep.subr.bf16.mxu0 %v601
    %1337 = vmatpush1.bf16.msra.mxu0 %v600
    %1338 = vmatprep.subr.bf16.mxu0 %v597
    %1339 = vmatpush1.bf16.msra.mxu0 %v596
    %1340 = vmatprep.subr.bf16.mxu0 %v593
    %1341 = vmatpush1.bf16.msra.mxu0 %v592
    %1342 = vmatprep.subr.bf16.mxu0 %v589
    %1343 = vmatpush1.bf16.msra.mxu0 %v588
    %1344 = vmatprep.subr.bf16.mxu0 0
    %1345 = vmatpush2.bf16.msra.mxu0 0
    %1346 = vmatprep.subr.bf16.mxu0 0
    %1347 = vmatpush2.bf16.msra.mxu0 0
    %1348 = vmatprep.subr.bf16.mxu0 0
    %1349 = vmatpush2.bf16.msra.mxu0 0
    %1350 = vmatprep.subr.bf16.mxu0 0
    %1351 = vmatpush2.bf16.msra.mxu0 0
    %1352 = vmatprep.subr.bf16.mxu0 0
    %1353 = vmatpush2.bf16.msra.mxu0 0
    %1354 = vmatprep.subr.bf16.mxu0 0
    %1355 = vmatpush2.bf16.msra.mxu0 0
    %1356 = vmatprep.subr.bf16.mxu0 0
    %1357 = vmatpush2.bf16.msra.mxu0 0
    %1358 = vmatprep.subr.bf16.mxu0 0
    %1359 = vmatpush2.bf16.msra.mxu0 0
    %1360 = vmatprep.mubr.bf16.mxu0 0
    %1361 = vmatmul.mubr.bf16.gmra.mxu0 %v1281
    %v1362 = vpop.f32.mrf.mxu0
    %v1363 = vadd.f32 0.0, %v1362
    %v1364 = vpop.f32.mrf.mxu0
    %v1365 = vadd.f32 0.0, %v1364
    %v1366 = vpop.f32.mrf.mxu0
    %v1367 = vpop.f32.mrf.mxu0
    %1368 = vdwg.mxu0
    %v1373 = vrot.slane %v1322, 6
    %v1374 = vrot.slane %v1324, 6
    %v1375 = vrot.slane %v1363, 6
    %v1376 = vrot.slane %v1365, 6
    %v1381 = vadd.f32 %v1283, %v1373
    %v1382 = vadd.f32 %v1284, %v1374
    %v1383 = vadd.f32 %v1285, %v1375
    %v1384 = vadd.f32 %v1286, %v1376
    %v1385 = vxor.u32 %v1381, 2147483648
    %v1386 = vmul.f32 %v1385, 1.442695
    %v1387 = vpow.pop %v1386
    %v1388 = vadd.f32 %v1387, 1.0
    %v1389 = vrcp.pop %v1388
    %v1390 = vmul.f32 1.0, %v1389
    %v1391 = vxor.u32 %v1382, 2147483648
    %v1392 = vmul.f32 %v1391, 1.442695
    %v1393 = vpow.pop %v1392
    %v1394 = vadd.f32 %v1393, 1.0
    %v1395 = vrcp.pop %v1394
    %v1396 = vmul.f32 1.0, %v1395
    %v1397 = vtanh.pop %v1383
    %v1398 = vxor.u32 %v1384, 2147483648
    %v1399 = vmul.f32 %v1398, 1.442695
    %v1400 = vpow.pop %v1399
    %v1401 = vadd.f32 %v1400, 1.0
    %v1402 = vrcp.pop %v1401
    %v1403 = vmul.f32 1.0, %v1402
    %v1405 = vrot.slane %v1278, 6
    %v1407 = vmul.f32 %v1396, %v1405
    %v1408 = vmul.f32 %v1390, %v1397
    %v1409 = vadd.f32 %v1407, %v1408
    %v1410 = vtanh.pop %v1409
    %v1411 = vmul.f32 %v1403, %v1410
    %v1412 = vpack.c.bf16 %v1411, %v1411
    %1413 = vst [vmem:[#allocation15 + $0x4] sm:$0x2] %v1412
    %v1414 = vld [vmem:[#allocation2 + $0x20] sm:$0x30]
    %v1415 = vld [vmem:[#allocation2 + $0x28] sm:$0x30]
    %v1416 = vld [vmem:[#allocation2 + $0x30] sm:$0x30]
    %v1417 = vld [vmem:[#allocation2 + $0x38] sm:$0x30]
    %v1419 = vrot.slane %v1412, 1
    %1421 = vmatprep.subr.bf16.mxu0 %v615
    %1422 = vmatpush1.bf16.msra.mxu0 %v614
    %1423 = vmatprep.subr.bf16.mxu0 %v611
    %1424 = vmatpush1.bf16.msra.mxu0 %v610
    %1425 = vmatprep.subr.bf16.mxu0 %v607
    %1426 = vmatpush1.bf16.msra.mxu0 %v606
    %1427 = vmatprep.subr.bf16.mxu0 %v603
    %1428 = vmatpush1.bf16.msra.mxu0 %v602
    %1429 = vmatprep.subr.bf16.mxu0 %v599
    %1430 = vmatpush1.bf16.msra.mxu0 %v598
    %1431 = vmatprep.subr.bf16.mxu0 %v595
    %1432 = vmatpush1.bf16.msra.mxu0 %v594
    %1433 = vmatprep.subr.bf16.mxu0 %v591
    %1434 = vmatpush1.bf16.msra.mxu0 %v590
    %1435 = vmatprep.subr.bf16.mxu0 %v587
    %1436 = vmatpush1.bf16.msra.mxu0 %v586
    %1437 = vmatprep.subr.bf16.mxu0 0
    %1438 = vmatpush2.bf16.msra.mxu0 0
    %1439 = vmatprep.subr.bf16.mxu0 0
    %1440 = vmatpush2.bf16.msra.mxu0 0
    %1441 = vmatprep.subr.bf16.mxu0 0
    %1442 = vmatpush2.bf16.msra.mxu0 0
    %1443 = vmatprep.subr.bf16.mxu0 0
    %1444 = vmatpush2.bf16.msra.mxu0 0
    %1445 = vmatprep.subr.bf16.mxu0 0
    %1446 = vmatpush2.bf16.msra.mxu0 0
    %1447 = vmatprep.subr.bf16.mxu0 0
    %1448 = vmatpush2.bf16.msra.mxu0 0
    %1449 = vmatprep.subr.bf16.mxu0 0
    %1450 = vmatpush2.bf16.msra.mxu0 0
    %1451 = vmatprep.subr.bf16.mxu0 0
    %1452 = vmatpush2.bf16.msra.mxu0 0
    %1453 = vmatprep.mubr.bf16.mxu0 0
    %1454 = vmatmul.mubr.bf16.gmra.mxu0 %v1419
    %v1455 = vpop.f32.mrf.mxu0
    %v1456 = vadd.f32 0.0, %v1455
    %v1457 = vpop.f32.mrf.mxu0
    %v1458 = vadd.f32 0.0, %v1457
    %v1459 = vpop.f32.mrf.mxu0
    %v1460 = vpop.f32.mrf.mxu0
    %1461 = vdwg.mxu0
    %1462 = vmatprep.subr.bf16.mxu0 %v617
    %1463 = vmatpush1.bf16.msra.mxu0 %v616
    %1464 = vmatprep.subr.bf16.mxu0 %v613
    %1465 = vmatpush1.bf16.msra.mxu0 %v612
    %1466 = vmatprep.subr.bf16.mxu0 %v609
    %1467 = vmatpush1.bf16.msra.mxu0 %v608
    %1468 = vmatprep.subr.bf16.mxu0 %v605
    %1469 = vmatpush1.bf16.msra.mxu0 %v604
    %1470 = vmatprep.subr.bf16.mxu0 %v601
    %1471 = vmatpush1.bf16.msra.mxu0 %v600
    %1472 = vmatprep.subr.bf16.mxu0 %v597
    %1473 = vmatpush1.bf16.msra.mxu0 %v596
    %1474 = vmatprep.subr.bf16.mxu0 %v593
    %1475 = vmatpush1.bf16.msra.mxu0 %v592
    %1476 = vmatprep.subr.bf16.mxu0 %v589
    %1477 = vmatpush1.bf16.msra.mxu0 %v588
    %1478 = vmatprep.subr.bf16.mxu0 0
    %1479 = vmatpush2.bf16.msra.mxu0 0
    %1480 = vmatprep.subr.bf16.mxu0 0
    %1481 = vmatpush2.bf16.msra.mxu0 0
    %1482 = vmatprep.subr.bf16.mxu0 0
    %1483 = vmatpush2.bf16.msra.mxu0 0
    %1484 = vmatprep.subr.bf16.mxu0 0
    %1485 = vmatpush2.bf16.msra.mxu0 0
    %1486 = vmatprep.subr.bf16.mxu0 0
    %1487 = vmatpush2.bf16.msra.mxu0 0
    %1488 = vmatprep.subr.bf16.mxu0 0
    %1489 = vmatpush2.bf16.msra.mxu0 0
    %1490 = vmatprep.subr.bf16.mxu0 0
    %1491 = vmatpush2.bf16.msra.mxu0 0
    %1492 = vmatprep.subr.bf16.mxu0 0
    %1493 = vmatpush2.bf16.msra.mxu0 0
    %1494 = vmatprep.mubr.bf16.mxu0 0
    %1495 = vmatmul.mubr.bf16.gmra.mxu0 %v1419
    %v1496 = vpop.f32.mrf.mxu0
    %v1497 = vadd.f32 0.0, %v1496
    %v1498 = vpop.f32.mrf.mxu0
    %v1499 = vadd.f32 0.0, %v1498
    %v1500 = vpop.f32.mrf.mxu0
    %v1501 = vpop.f32.mrf.mxu0
    %1502 = vdwg.mxu0
    %v1507 = vrot.slane %v1456, 4
    %v1508 = vrot.slane %v1458, 4
    %v1509 = vrot.slane %v1497, 4
    %v1510 = vrot.slane %v1499, 4
    %v1515 = vadd.f32 %v1414, %v1507
    %v1516 = vadd.f32 %v1415, %v1508
    %v1517 = vadd.f32 %v1416, %v1509
    %v1518 = vadd.f32 %v1417, %v1510
    %v1519 = vxor.u32 %v1515, 2147483648
    %v1520 = vmul.f32 %v1519, 1.442695
    %v1521 = vpow.pop %v1520
    %v1522 = vadd.f32 %v1521, 1.0
    %v1523 = vrcp.pop %v1522
    %v1524 = vmul.f32 1.0, %v1523
    %v1525 = vxor.u32 %v1516, 2147483648
    %v1526 = vmul.f32 %v1525, 1.442695
    %v1527 = vpow.pop %v1526
    %v1528 = vadd.f32 %v1527, 1.0
    %v1529 = vrcp.pop %v1528
    %v1530 = vmul.f32 1.0, %v1529
    %v1531 = vtanh.pop %v1517
    %v1532 = vxor.u32 %v1518, 2147483648
    %v1533 = vmul.f32 %v1532, 1.442695
    %v1534 = vpow.pop %v1533
    %v1535 = vadd.f32 %v1534, 1.0
    %v1536 = vrcp.pop %v1535
    %v1537 = vmul.f32 1.0, %v1536
    %v1539 = vrot.slane %v1409, 6
    %v1541 = vmul.f32 %v1530, %v1539
    %v1542 = vmul.f32 %v1524, %v1531
    %v1543 = vadd.f32 %v1541, %v1542
    %v1544 = vtanh.pop %v1543
    %v1545 = vmul.f32 %v1537, %v1544
    %v1546 = vpack.c.bf16 %v1545, %v1545
    %1547 = vst [vmem:[#allocation15 + $0x4] sm:$0x4] %v1546
    %v1548 = vld [vmem:[#allocation2 + $0x20] sm:$0xc0]
    %v1549 = vld [vmem:[#allocation2 + $0x28] sm:$0xc0]
    %v1550 = vld [vmem:[#allocation2 + $0x30] sm:$0xc0]
    %v1551 = vld [vmem:[#allocation2 + $0x38] sm:$0xc0]
    %v1553 = vrot.slane %v1546, 2
    %1555 = vmatprep.subr.bf16.mxu0 %v615
    %1556 = vmatpush1.bf16.msra.mxu0 %v614
    %1557 = vmatprep.subr.bf16.mxu0 %v611
    %1558 = vmatpush1.bf16.msra.mxu0 %v610
    %1559 = vmatprep.subr.bf16.mxu0 %v607
    %1560 = vmatpush1.bf16.msra.mxu0 %v606
    %1561 = vmatprep.subr.bf16.mxu0 %v603
    %1562 = vmatpush1.bf16.msra.mxu0 %v602
    %1563 = vmatprep.subr.bf16.mxu0 %v599
    %1564 = vmatpush1.bf16.msra.mxu0 %v598
    %1565 = vmatprep.subr.bf16.mxu0 %v595
    %1566 = vmatpush1.bf16.msra.mxu0 %v594
    %1567 = vmatprep.subr.bf16.mxu0 %v591
    %1568 = vmatpush1.bf16.msra.mxu0 %v590
    %1569 = vmatprep.subr.bf16.mxu0 %v587
    %1570 = vmatpush1.bf16.msra.mxu0 %v586
    %1571 = vmatprep.subr.bf16.mxu0 0
    %1572 = vmatpush2.bf16.msra.mxu0 0
    %1573 = vmatprep.subr.bf16.mxu0 0
    %1574 = vmatpush2.bf16.msra.mxu0 0
    %1575 = vmatprep.subr.bf16.mxu0 0
    %1576 = vmatpush2.bf16.msra.mxu0 0
    %1577 = vmatprep.subr.bf16.mxu0 0
    %1578 = vmatpush2.bf16.msra.mxu0 0
    %1579 = vmatprep.subr.bf16.mxu0 0
    %1580 = vmatpush2.bf16.msra.mxu0 0
    %1581 = vmatprep.subr.bf16.mxu0 0
    %1582 = vmatpush2.bf16.msra.mxu0 0
    %1583 = vmatprep.subr.bf16.mxu0 0
    %1584 = vmatpush2.bf16.msra.mxu0 0
    %1585 = vmatprep.subr.bf16.mxu0 0
    %1586 = vmatpush2.bf16.msra.mxu0 0
    %1587 = vmatprep.mubr.bf16.mxu0 0
    %1588 = vmatmul.mubr.bf16.gmra.mxu0 %v1553
    %v1589 = vpop.f32.mrf.mxu0
    %v1590 = vadd.f32 0.0, %v1589
    %v1591 = vpop.f32.mrf.mxu0
    %v1592 = vadd.f32 0.0, %v1591
    %v1593 = vpop.f32.mrf.mxu0
    %v1594 = vpop.f32.mrf.mxu0
    %1595 = vdwg.mxu0
    %1596 = vmatprep.subr.bf16.mxu0 %v617
    %1597 = vmatpush1.bf16.msra.mxu0 %v616
    %1598 = vmatprep.subr.bf16.mxu0 %v613
    %1599 = vmatpush1.bf16.msra.mxu0 %v612
    %1600 = vmatprep.subr.bf16.mxu0 %v609
    %1601 = vmatpush1.bf16.msra.mxu0 %v608
    %1602 = vmatprep.subr.bf16.mxu0 %v605
    %1603 = vmatpush1.bf16.msra.mxu0 %v604
    %1604 = vmatprep.subr.bf16.mxu0 %v601
    %1605 = vmatpush1.bf16.msra.mxu0 %v600
    %1606 = vmatprep.subr.bf16.mxu0 %v597
    %1607 = vmatpush1.bf16.msra.mxu0 %v596
    %1608 = vmatprep.subr.bf16.mxu0 %v593
    %1609 = vmatpush1.bf16.msra.mxu0 %v592
    %1610 = vmatprep.subr.bf16.mxu0 %v589
    %1611 = vmatpush1.bf16.msra.mxu0 %v588
    %1612 = vmatprep.subr.bf16.mxu0 0
    %1613 = vmatpush2.bf16.msra.mxu0 0
    %1614 = vmatprep.subr.bf16.mxu0 0
    %1615 = vmatpush2.bf16.msra.mxu0 0
    %1616 = vmatprep.subr.bf16.mxu0 0
    %1617 = vmatpush2.bf16.msra.mxu0 0
    %1618 = vmatprep.subr.bf16.mxu0 0
    %1619 = vmatpush2.bf16.msra.mxu0 0
    %1620 = vmatprep.subr.bf16.mxu0 0
    %1621 = vmatpush2.bf16.msra.mxu0 0
    %1622 = vmatprep.subr.bf16.mxu0 0
    %1623 = vmatpush2.bf16.msra.mxu0 0
    %1624 = vmatprep.subr.bf16.mxu0 0
    %1625 = vmatpush2.bf16.msra.mxu0 0
    %1626 = vmatprep.subr.bf16.mxu0 0
    %1627 = vmatpush2.bf16.msra.mxu0 0
    %1628 = vmatprep.mubr.bf16.mxu0 0
    %1629 = vmatmul.mubr.bf16.gmra.mxu0 %v1553
    %v1630 = vpop.f32.mrf.mxu0
    %v1631 = vadd.f32 0.0, %v1630
    %v1632 = vpop.f32.mrf.mxu0
    %v1633 = vadd.f32 0.0, %v1632
    %v1634 = vpop.f32.mrf.mxu0
    %v1635 = vpop.f32.mrf.mxu0
    %1636 = vdwg.mxu0
    %v1641 = vrot.slane %v1590, 2
    %v1642 = vrot.slane %v1592, 2
    %v1643 = vrot.slane %v1631, 2
    %v1644 = vrot.slane %v1633, 2
    %v1649 = vadd.f32 %v1548, %v1641
    %v1650 = vadd.f32 %v1549, %v1642
    %v1651 = vadd.f32 %v1550, %v1643
    %v1652 = vadd.f32 %v1551, %v1644
    %v1653 = vxor.u32 %v1649, 2147483648
    %v1654 = vmul.f32 %v1653, 1.442695
    %v1655 = vpow.pop %v1654
    %v1656 = vadd.f32 %v1655, 1.0
    %v1657 = vrcp.pop %v1656
    %v1658 = vmul.f32 1.0, %v1657
    %v1659 = vxor.u32 %v1650, 2147483648
    %v1660 = vmul.f32 %v1659, 1.442695
    %v1661 = vpow.pop %v1660
    %v1662 = vadd.f32 %v1661, 1.0
    %v1663 = vrcp.pop %v1662
    %v1664 = vmul.f32 1.0, %v1663
    %v1665 = vtanh.pop %v1651
    %v1666 = vxor.u32 %v1652, 2147483648
    %v1667 = vmul.f32 %v1666, 1.442695
    %v1668 = vpow.pop %v1667
    %v1669 = vadd.f32 %v1668, 1.0
    %v1670 = vrcp.pop %v1669
    %v1671 = vmul.f32 1.0, %v1670
    %v1673 = vrot.slane %v1543, 6
    %v1675 = vmul.f32 %v1664, %v1673
    %v1676 = vmul.f32 %v1658, %v1665
    %v1677 = vadd.f32 %v1675, %v1676
    %v1678 = vtanh.pop %v1677
    %v1679 = vmul.f32 %v1671, %v1678
    %v1680 = vpack.c.bf16 %v1679, %v1679
    %1681 = vst [vmem:[#allocation15 + $0x4] sm:$0x8] %v1680
    %1682 = vst [vmem:[#allocation16 - $0x6] sm:$0xc0] %v1679
    %1683 = vst [vmem:[#allocation18 - $0x6] sm:$0xc0] %v1677
    %v1684 = vld [vmem:[#allocation15] sm:$0xf]
    %v1685 = vld [vmem:[#allocation15 + $0x4] sm:$0xf]
    %v1686 = vld [vmem:[#allocation12] sm:$0xff]
    %v1687 = vld [vmem:[#allocation12 + $0x8] sm:$0xff]
    %v1688 = vld [vmem:[#allocation12 + $0x10] sm:$0xff]
    %v1689 = vld [vmem:[#allocation12 + $0x18] sm:$0xff]
    %v1690 = vld [vmem:[#allocation12 + $0x20] sm:$0xff]
    %v1691 = vld [vmem:[#allocation12 + $0x28] sm:$0xff]
    %v1692 = vld [vmem:[#allocation12 + $0x30] sm:$0xff]
    %v1693 = vld [vmem:[#allocation12 + $0x38] sm:$0xff]
    %v1694 = vld [vmem:[#allocation12 + $0x40] sm:$0xff]
    %v1695 = vld [vmem:[#allocation12 + $0x48] sm:$0xff]
    %v1696 = vld [vmem:[#allocation12 + $0x50] sm:$0xff]
    %v1697 = vld [vmem:[#allocation12 + $0x58] sm:$0xff]
    %v1698 = vld [vmem:[#allocation12 + $0x60] sm:$0xff]
    %v1699 = vld [vmem:[#allocation12 + $0x68] sm:$0xff]
    %v1700 = vld [vmem:[#allocation12 + $0x70] sm:$0xff]
    %v1701 = vld [vmem:[#allocation12 + $0x78] sm:$0xff]
    %v1702 = vld [vmem:[#allocation12 + $0x80] sm:$0xff]
    %v1703 = vld [vmem:[#allocation12 + $0x88] sm:$0xff]
    %v1704 = vld [vmem:[#allocation12 + $0x90] sm:$0xff]
    %v1705 = vld [vmem:[#allocation12 + $0x98] sm:$0xff]
    %v1706 = vld [vmem:[#allocation12 + $0xa0] sm:$0xff]
    %v1707 = vld [vmem:[#allocation12 + $0xa8] sm:$0xff]
    %v1708 = vld [vmem:[#allocation12 + $0xb0] sm:$0xff]
    %v1709 = vld [vmem:[#allocation12 + $0xb8] sm:$0xff]
    %v1710 = vld [vmem:[#allocation12 + $0xc0] sm:$0xff]
    %v1711 = vld [vmem:[#allocation12 + $0xc8] sm:$0xff]
    %v1712 = vld [vmem:[#allocation12 + $0xd0] sm:$0xff]
    %v1713 = vld [vmem:[#allocation12 + $0xd8] sm:$0xff]
    %v1714 = vld [vmem:[#allocation12 + $0xe0] sm:$0xff]
    %v1715 = vld [vmem:[#allocation12 + $0xe8] sm:$0xff]
    %v1716 = vld [vmem:[#allocation12 + $0xf0] sm:$0xff]
    %v1717 = vld [vmem:[#allocation12 + $0xf8] sm:$0xff]
    %v1718 = vld [vmem:[%s8] sm:$0xf]
    %v1720 = vlaneseq
    %v1721 = vshrl.u32 %v1720, 7
    %v1722 = vsub.s32 0, %v1721
    %v1723 = vrot.slane %v1718, %v1722
    %v1724 = vlaneseq
    %v1725 = vshrl.u32 %v1724, 7
    %v1726 = vsub.s32 1, %v1725
    %v1727 = vrot.slane %v1718, %v1726
    %v1728 = vlaneseq
    %v1729 = vshrl.u32 %v1728, 7
    %v1730 = vsub.s32 2, %v1729
    %v1731 = vrot.slane %v1718, %v1730
    %v1732 = vlaneseq
    %v1733 = vshrl.u32 %v1732, 7
    %v1734 = vsub.s32 3, %v1733
    %v1735 = vrot.slane %v1718, %v1734
    %v1742 = vunpack.c.l.b16 %v1684
    %v1743 = vunpack.c.l.b16 %v1685
    %v1744 = vpack.c.b16 %v1743, %v1742
    %v1778 = vunpack.c.l.b16 %v1686
    %v1779 = vunpack.c.h.b16 %v1686
    %v1780 = vunpack.c.l.b16 %v1687
    %v1781 = vunpack.c.h.b16 %v1687
    %v1782 = vunpack.c.l.b16 %v1688
    %v1783 = vunpack.c.h.b16 %v1688
    %v1784 = vunpack.c.l.b16 %v1689
    %v1785 = vunpack.c.h.b16 %v1689
    %v1786 = vunpack.c.l.b16 %v1690
    %v1787 = vunpack.c.h.b16 %v1690
    %v1788 = vunpack.c.l.b16 %v1691
    %v1789 = vunpack.c.h.b16 %v1691
    %v1790 = vunpack.c.l.b16 %v1692
    %v1791 = vunpack.c.h.b16 %v1692
    %v1792 = vunpack.c.l.b16 %v1693
    %v1793 = vunpack.c.h.b16 %v1693
    %v1794 = vunpack.c.l.b16 %v1694
    %v1795 = vunpack.c.h.b16 %v1694
    %v1796 = vunpack.c.l.b16 %v1695
    %v1797 = vunpack.c.h.b16 %v1695
    %v1798 = vunpack.c.l.b16 %v1696
    %v1799 = vunpack.c.h.b16 %v1696
    %v1800 = vunpack.c.l.b16 %v1697
    %v1801 = vunpack.c.h.b16 %v1697
    %v1802 = vunpack.c.l.b16 %v1698
    %v1803 = vunpack.c.h.b16 %v1698
    %v1804 = vunpack.c.l.b16 %v1699
    %v1805 = vunpack.c.h.b16 %v1699
    %v1806 = vunpack.c.l.b16 %v1700
    %v1807 = vunpack.c.h.b16 %v1700
    %v1808 = vunpack.c.l.b16 %v1701
    %v1809 = vunpack.c.h.b16 %v1701
    %v1810 = vunpack.c.l.b16 %v1702
    %v1811 = vunpack.c.h.b16 %v1702
    %v1812 = vunpack.c.l.b16 %v1703
    %v1813 = vunpack.c.h.b16 %v1703
    %v1814 = vunpack.c.l.b16 %v1704
    %v1815 = vunpack.c.h.b16 %v1704
    %v1816 = vunpack.c.l.b16 %v1705
    %v1817 = vunpack.c.h.b16 %v1705
    %v1818 = vunpack.c.l.b16 %v1706
    %v1819 = vunpack.c.h.b16 %v1706
    %v1820 = vunpack.c.l.b16 %v1707
    %v1821 = vunpack.c.h.b16 %v1707
    %v1822 = vunpack.c.l.b16 %v1708
    %v1823 = vunpack.c.h.b16 %v1708
    %v1824 = vunpack.c.l.b16 %v1709
    %v1825 = vunpack.c.h.b16 %v1709
    %v1826 = vunpack.c.l.b16 %v1710
    %v1827 = vunpack.c.h.b16 %v1710
    %v1828 = vunpack.c.l.b16 %v1711
    %v1829 = vunpack.c.h.b16 %v1711
    %v1830 = vunpack.c.l.b16 %v1712
    %v1831 = vunpack.c.h.b16 %v1712
    %v1832 = vunpack.c.l.b16 %v1713
    %v1833 = vunpack.c.h.b16 %v1713
    %v1834 = vunpack.c.l.b16 %v1714
    %v1835 = vunpack.c.h.b16 %v1714
    %v1836 = vunpack.c.l.b16 %v1715
    %v1837 = vunpack.c.h.b16 %v1715
    %v1838 = vunpack.c.l.b16 %v1716
    %v1839 = vunpack.c.h.b16 %v1716
    %v1840 = vunpack.c.l.b16 %v1717
    %v1841 = vunpack.c.h.b16 %v1717
    %v1842 = vpack.c.b16 %v1782, %v1778
    %v1843 = vpack.c.b16 %v1783, %v1779
    %v1844 = vpack.c.b16 %v1784, %v1780
    %v1845 = vpack.c.b16 %v1785, %v1781
    %v1846 = vpack.c.b16 %v1790, %v1786
    %v1847 = vpack.c.b16 %v1791, %v1787
    %v1848 = vpack.c.b16 %v1792, %v1788
    %v1849 = vpack.c.b16 %v1793, %v1789
    %v1850 = vpack.c.b16 %v1798, %v1794
    %v1851 = vpack.c.b16 %v1799, %v1795
    %v1852 = vpack.c.b16 %v1800, %v1796
    %v1853 = vpack.c.b16 %v1801, %v1797
    %v1854 = vpack.c.b16 %v1806, %v1802
    %v1855 = vpack.c.b16 %v1807, %v1803
    %v1856 = vpack.c.b16 %v1808, %v1804
    %v1857 = vpack.c.b16 %v1809, %v1805
    %v1858 = vpack.c.b16 %v1814, %v1810
    %v1859 = vpack.c.b16 %v1815, %v1811
    %v1860 = vpack.c.b16 %v1816, %v1812
    %v1861 = vpack.c.b16 %v1817, %v1813
    %v1862 = vpack.c.b16 %v1822, %v1818
    %v1863 = vpack.c.b16 %v1823, %v1819
    %v1864 = vpack.c.b16 %v1824, %v1820
    %v1865 = vpack.c.b16 %v1825, %v1821
    %v1866 = vpack.c.b16 %v1830, %v1826
    %v1867 = vpack.c.b16 %v1831, %v1827
    %v1868 = vpack.c.b16 %v1832, %v1828
    %v1869 = vpack.c.b16 %v1833, %v1829
    %v1870 = vpack.c.b16 %v1838, %v1834
    %v1871 = vpack.c.b16 %v1839, %v1835
    %v1872 = vpack.c.b16 %v1840, %v1836
    %v1873 = vpack.c.b16 %v1841, %v1837
    %1906 = vmatprep.subr.bf16.mxu0 %v1871
    %1907 = vmatpush1.bf16.msra.mxu0 %v1870
    %1908 = vmatprep.subr.bf16.mxu0 %v1867
    %1909 = vmatpush1.bf16.msra.mxu0 %v1866
    %1910 = vmatprep.subr.bf16.mxu0 %v1863
    %1911 = vmatpush1.bf16.msra.mxu0 %v1862
    %1912 = vmatprep.subr.bf16.mxu0 %v1859
    %1913 = vmatpush1.bf16.msra.mxu0 %v1858
    %1914 = vmatprep.subr.bf16.mxu0 %v1855
    %1915 = vmatpush1.bf16.msra.mxu0 %v1854
    %1916 = vmatprep.subr.bf16.mxu0 %v1851
    %1917 = vmatpush1.bf16.msra.mxu0 %v1850
    %1918 = vmatprep.subr.bf16.mxu0 %v1847
    %1919 = vmatpush1.bf16.msra.mxu0 %v1846
    %1920 = vmatprep.subr.bf16.mxu0 %v1843
    %1921 = vmatpush1.bf16.msra.mxu0 %v1842
    %1922 = vmatprep.subr.bf16.mxu0 0
    %1923 = vmatpush2.bf16.msra.mxu0 0
    %1924 = vmatprep.subr.bf16.mxu0 0
    %1925 = vmatpush2.bf16.msra.mxu0 0
    %1926 = vmatprep.subr.bf16.mxu0 0
    %1927 = vmatpush2.bf16.msra.mxu0 0
    %1928 = vmatprep.subr.bf16.mxu0 0
    %1929 = vmatpush2.bf16.msra.mxu0 0
    %1930 = vmatprep.subr.bf16.mxu0 0
    %1931 = vmatpush2.bf16.msra.mxu0 0
    %1932 = vmatprep.subr.bf16.mxu0 0
    %1933 = vmatpush2.bf16.msra.mxu0 0
    %1934 = vmatprep.subr.bf16.mxu0 0
    %1935 = vmatpush2.bf16.msra.mxu0 0
    %1936 = vmatprep.subr.bf16.mxu0 0
    %1937 = vmatpush2.bf16.msra.mxu0 0
    %1938 = vmatprep.mubr.bf16.mxu0 0
    %1939 = vmatmul.mubr.bf16.gmra.mxu0 %v1744
    %v1940 = vpop.f32.mrf.mxu0
    %v1941 = vadd.f32 %v1723, %v1940
    %v1942 = vpop.f32.mrf.mxu0
    %v1943 = vadd.f32 %v1727, %v1942
    %v1944 = vpop.f32.mrf.mxu0
    %v1945 = vadd.f32 %v1723, %v1944
    %v1946 = vpop.f32.mrf.mxu0
    %v1947 = vadd.f32 %v1727, %v1946
    %1948 = vdwg.mxu0
    %1949 = vmatprep.subr.bf16.mxu0 %v1873
    %1950 = vmatpush1.bf16.msra.mxu0 %v1872
    %1951 = vmatprep.subr.bf16.mxu0 %v1869
    %1952 = vmatpush1.bf16.msra.mxu0 %v1868
    %1953 = vmatprep.subr.bf16.mxu0 %v1865
    %1954 = vmatpush1.bf16.msra.mxu0 %v1864
    %1955 = vmatprep.subr.bf16.mxu0 %v1861
    %1956 = vmatpush1.bf16.msra.mxu0 %v1860
    %1957 = vmatprep.subr.bf16.mxu0 %v1857
    %1958 = vmatpush1.bf16.msra.mxu0 %v1856
    %1959 = vmatprep.subr.bf16.mxu0 %v1853
    %1960 = vmatpush1.bf16.msra.mxu0 %v1852
    %1961 = vmatprep.subr.bf16.mxu0 %v1849
    %1962 = vmatpush1.bf16.msra.mxu0 %v1848
    %1963 = vmatprep.subr.bf16.mxu0 %v1845
    %1964 = vmatpush1.bf16.msra.mxu0 %v1844
    %1965 = vmatprep.subr.bf16.mxu0 0
    %1966 = vmatpush2.bf16.msra.mxu0 0
    %1967 = vmatprep.subr.bf16.mxu0 0
    %1968 = vmatpush2.bf16.msra.mxu0 0
    %1969 = vmatprep.subr.bf16.mxu0 0
    %1970 = vmatpush2.bf16.msra.mxu0 0
    %1971 = vmatprep.subr.bf16.mxu0 0
    %1972 = vmatpush2.bf16.msra.mxu0 0
    %1973 = vmatprep.subr.bf16.mxu0 0
    %1974 = vmatpush2.bf16.msra.mxu0 0
    %1975 = vmatprep.subr.bf16.mxu0 0
    %1976 = vmatpush2.bf16.msra.mxu0 0
    %1977 = vmatprep.subr.bf16.mxu0 0
    %1978 = vmatpush2.bf16.msra.mxu0 0
    %1979 = vmatprep.subr.bf16.mxu0 0
    %1980 = vmatpush2.bf16.msra.mxu0 0
    %1981 = vmatprep.mubr.bf16.mxu0 0
    %1982 = vmatmul.mubr.bf16.gmra.mxu0 %v1744
    %v1983 = vpop.f32.mrf.mxu0
    %v1984 = vadd.f32 %v1731, %v1983
    %v1985 = vpop.f32.mrf.mxu0
    %v1986 = vadd.f32 %v1735, %v1985
    %v1987 = vpop.f32.mrf.mxu0
    %v1988 = vadd.f32 %v1731, %v1987
    %v1989 = vpop.f32.mrf.mxu0
    %v1990 = vadd.f32 %v1735, %v1989
    %1991 = vdwg.mxu0
    %1992 = vst [vmem:[#allocation2] sm:$0xff] %v1941
    %1993 = vst [vmem:[#allocation2 + $0x8] sm:$0xff] %v1943
    %1994 = vst [vmem:[#allocation2 + $0x10] sm:$0xff] %v1984
    %1995 = vst [vmem:[#allocation2 + $0x18] sm:$0xff] %v1986
    %1996 = vst [vmem:[#allocation2 + $0x20] sm:$0xff] %v1945
    %1997 = vst [vmem:[#allocation2 + $0x28] sm:$0xff] %v1947
    %1998 = vst [vmem:[#allocation2 + $0x30] sm:$0xff] %v1988
    %1999 = vst [vmem:[#allocation2 + $0x38] sm:$0xff] %v1990
    %v2000 = vld [vmem:[#allocation14] sm:$0xff]
    %v2001 = vld [vmem:[#allocation14 + $0x8] sm:$0xff]
    %v2002 = vld [vmem:[#allocation14 + $0x10] sm:$0xff]
    %v2003 = vld [vmem:[#allocation14 + $0x18] sm:$0xff]
    %v2004 = vld [vmem:[#allocation14 + $0x20] sm:$0xff]
    %v2005 = vld [vmem:[#allocation14 + $0x28] sm:$0xff]
    %v2006 = vld [vmem:[#allocation14 + $0x30] sm:$0xff]
    %v2007 = vld [vmem:[#allocation14 + $0x38] sm:$0xff]
    %v2008 = vld [vmem:[#allocation14 + $0x40] sm:$0xff]
    %v2009 = vld [vmem:[#allocation14 + $0x48] sm:$0xff]
    %v2010 = vld [vmem:[#allocation14 + $0x50] sm:$0xff]
    %v2011 = vld [vmem:[#allocation14 + $0x58] sm:$0xff]
    %v2012 = vld [vmem:[#allocation14 + $0x60] sm:$0xff]
    %v2013 = vld [vmem:[#allocation14 + $0x68] sm:$0xff]
    %v2014 = vld [vmem:[#allocation14 + $0x70] sm:$0xff]
    %v2015 = vld [vmem:[#allocation14 + $0x78] sm:$0xff]
    %v2016 = vld [vmem:[#allocation14 + $0x80] sm:$0xff]
    %v2017 = vld [vmem:[#allocation14 + $0x88] sm:$0xff]
    %v2018 = vld [vmem:[#allocation14 + $0x90] sm:$0xff]
    %v2019 = vld [vmem:[#allocation14 + $0x98] sm:$0xff]
    %v2020 = vld [vmem:[#allocation14 + $0xa0] sm:$0xff]
    %v2021 = vld [vmem:[#allocation14 + $0xa8] sm:$0xff]
    %v2022 = vld [vmem:[#allocation14 + $0xb0] sm:$0xff]
    %v2023 = vld [vmem:[#allocation14 + $0xb8] sm:$0xff]
    %v2024 = vld [vmem:[#allocation14 + $0xc0] sm:$0xff]
    %v2025 = vld [vmem:[#allocation14 + $0xc8] sm:$0xff]
    %v2026 = vld [vmem:[#allocation14 + $0xd0] sm:$0xff]
    %v2027 = vld [vmem:[#allocation14 + $0xd8] sm:$0xff]
    %v2028 = vld [vmem:[#allocation14 + $0xe0] sm:$0xff]
    %v2029 = vld [vmem:[#allocation14 + $0xe8] sm:$0xff]
    %v2030 = vld [vmem:[#allocation14 + $0xf0] sm:$0xff]
    %v2031 = vld [vmem:[#allocation14 + $0xf8] sm:$0xff]
    %s2032 = scalar_lea.vmem [#allocation6], 2
    %v2033 = vld [vmem:[%s2032] sm:$0x3]
    %s2034 = scalar_lea.vmem [#allocation8], 2
    %v2035 = vld [vmem:[%s2034] sm:$0x3]
    %v2036 = vld [vmem:[#allocation2] sm:$0x3]
    %v2037 = vld [vmem:[#allocation2 + $0x8] sm:$0x3]
    %v2038 = vld [vmem:[#allocation2 + $0x10] sm:$0x3]
    %v2039 = vld [vmem:[#allocation2 + $0x18] sm:$0x3]
    %v2040 = vpack.c.bf16 %v2033, %v2033
    %v2073 = vunpack.c.l.b16 %v2000
    %v2074 = vunpack.c.h.b16 %v2000
    %v2075 = vunpack.c.l.b16 %v2001
    %v2076 = vunpack.c.h.b16 %v2001
    %v2077 = vunpack.c.l.b16 %v2002
    %v2078 = vunpack.c.h.b16 %v2002
    %v2079 = vunpack.c.l.b16 %v2003
    %v2080 = vunpack.c.h.b16 %v2003
    %v2081 = vunpack.c.l.b16 %v2004
    %v2082 = vunpack.c.h.b16 %v2004
    %v2083 = vunpack.c.l.b16 %v2005
    %v2084 = vunpack.c.h.b16 %v2005
    %v2085 = vunpack.c.l.b16 %v2006
    %v2086 = vunpack.c.h.b16 %v2006
    %v2087 = vunpack.c.l.b16 %v2007
    %v2088 = vunpack.c.h.b16 %v2007
    %v2089 = vunpack.c.l.b16 %v2008
    %v2090 = vunpack.c.h.b16 %v2008
    %v2091 = vunpack.c.l.b16 %v2009
    %v2092 = vunpack.c.h.b16 %v2009
    %v2093 = vunpack.c.l.b16 %v2010
    %v2094 = vunpack.c.h.b16 %v2010
    %v2095 = vunpack.c.l.b16 %v2011
    %v2096 = vunpack.c.h.b16 %v2011
    %v2097 = vunpack.c.l.b16 %v2012
    %v2098 = vunpack.c.h.b16 %v2012
    %v2099 = vunpack.c.l.b16 %v2013
    %v2100 = vunpack.c.h.b16 %v2013
    %v2101 = vunpack.c.l.b16 %v2014
    %v2102 = vunpack.c.h.b16 %v2014
    %v2103 = vunpack.c.l.b16 %v2015
    %v2104 = vunpack.c.h.b16 %v2015
    %v2105 = vunpack.c.l.b16 %v2016
    %v2106 = vunpack.c.h.b16 %v2016
    %v2107 = vunpack.c.l.b16 %v2017
    %v2108 = vunpack.c.h.b16 %v2017
    %v2109 = vunpack.c.l.b16 %v2018
    %v2110 = vunpack.c.h.b16 %v2018
    %v2111 = vunpack.c.l.b16 %v2019
    %v2112 = vunpack.c.h.b16 %v2019
    %v2113 = vunpack.c.l.b16 %v2020
    %v2114 = vunpack.c.h.b16 %v2020
    %v2115 = vunpack.c.l.b16 %v2021
    %v2116 = vunpack.c.h.b16 %v2021
    %v2117 = vunpack.c.l.b16 %v2022
    %v2118 = vunpack.c.h.b16 %v2022
    %v2119 = vunpack.c.l.b16 %v2023
    %v2120 = vunpack.c.h.b16 %v2023
    %v2121 = vunpack.c.l.b16 %v2024
    %v2122 = vunpack.c.h.b16 %v2024
    %v2123 = vunpack.c.l.b16 %v2025
    %v2124 = vunpack.c.h.b16 %v2025
    %v2125 = vunpack.c.l.b16 %v2026
    %v2126 = vunpack.c.h.b16 %v2026
    %v2127 = vunpack.c.l.b16 %v2027
    %v2128 = vunpack.c.h.b16 %v2027
    %v2129 = vunpack.c.l.b16 %v2028
    %v2130 = vunpack.c.h.b16 %v2028
    %v2131 = vunpack.c.l.b16 %v2029
    %v2132 = vunpack.c.h.b16 %v2029
    %v2133 = vunpack.c.l.b16 %v2030
    %v2134 = vunpack.c.h.b16 %v2030
    %v2135 = vunpack.c.l.b16 %v2031
    %v2136 = vunpack.c.h.b16 %v2031
    %v2137 = vpack.c.b16 %v2077, %v2073
    %v2138 = vpack.c.b16 %v2078, %v2074
    %v2139 = vpack.c.b16 %v2079, %v2075
    %v2140 = vpack.c.b16 %v2080, %v2076
    %v2141 = vpack.c.b16 %v2085, %v2081
    %v2142 = vpack.c.b16 %v2086, %v2082
    %v2143 = vpack.c.b16 %v2087, %v2083
    %v2144 = vpack.c.b16 %v2088, %v2084
    %v2145 = vpack.c.b16 %v2093, %v2089
    %v2146 = vpack.c.b16 %v2094, %v2090
    %v2147 = vpack.c.b16 %v2095, %v2091
    %v2148 = vpack.c.b16 %v2096, %v2092
    %v2149 = vpack.c.b16 %v2101, %v2097
    %v2150 = vpack.c.b16 %v2102, %v2098
    %v2151 = vpack.c.b16 %v2103, %v2099
    %v2152 = vpack.c.b16 %v2104, %v2100
    %v2153 = vpack.c.b16 %v2109, %v2105
    %v2154 = vpack.c.b16 %v2110, %v2106
    %v2155 = vpack.c.b16 %v2111, %v2107
    %v2156 = vpack.c.b16 %v2112, %v2108
    %v2157 = vpack.c.b16 %v2117, %v2113
    %v2158 = vpack.c.b16 %v2118, %v2114
    %v2159 = vpack.c.b16 %v2119, %v2115
    %v2160 = vpack.c.b16 %v2120, %v2116
    %v2161 = vpack.c.b16 %v2125, %v2121
    %v2162 = vpack.c.b16 %v2126, %v2122
    %v2163 = vpack.c.b16 %v2127, %v2123
    %v2164 = vpack.c.b16 %v2128, %v2124
    %v2165 = vpack.c.b16 %v2133, %v2129
    %v2166 = vpack.c.b16 %v2134, %v2130
    %v2167 = vpack.c.b16 %v2135, %v2131
    %v2168 = vpack.c.b16 %v2136, %v2132
    %2201 = vmatprep.subr.bf16.mxu0 %v2166
    %2202 = vmatpush1.bf16.msra.mxu0 %v2165
    %2203 = vmatprep.subr.bf16.mxu0 %v2162
    %2204 = vmatpush1.bf16.msra.mxu0 %v2161
    %2205 = vmatprep.subr.bf16.mxu0 %v2158
    %2206 = vmatpush1.bf16.msra.mxu0 %v2157
    %2207 = vmatprep.subr.bf16.mxu0 %v2154
    %2208 = vmatpush1.bf16.msra.mxu0 %v2153
    %2209 = vmatprep.subr.bf16.mxu0 %v2150
    %2210 = vmatpush1.bf16.msra.mxu0 %v2149
    %2211 = vmatprep.subr.bf16.mxu0 %v2146
    %2212 = vmatpush1.bf16.msra.mxu0 %v2145
    %2213 = vmatprep.subr.bf16.mxu0 %v2142
    %2214 = vmatpush1.bf16.msra.mxu0 %v2141
    %2215 = vmatprep.subr.bf16.mxu0 %v2138
    %2216 = vmatpush1.bf16.msra.mxu0 %v2137
    %2217 = vmatprep.subr.bf16.mxu0 0
    %2218 = vmatpush2.bf16.msra.mxu0 0
    %2219 = vmatprep.subr.bf16.mxu0 0
    %2220 = vmatpush2.bf16.msra.mxu0 0
    %2221 = vmatprep.subr.bf16.mxu0 0
    %2222 = vmatpush2.bf16.msra.mxu0 0
    %2223 = vmatprep.subr.bf16.mxu0 0
    %2224 = vmatpush2.bf16.msra.mxu0 0
    %2225 = vmatprep.subr.bf16.mxu0 0
    %2226 = vmatpush2.bf16.msra.mxu0 0
    %2227 = vmatprep.subr.bf16.mxu0 0
    %2228 = vmatpush2.bf16.msra.mxu0 0
    %2229 = vmatprep.subr.bf16.mxu0 0
    %2230 = vmatpush2.bf16.msra.mxu0 0
    %2231 = vmatprep.subr.bf16.mxu0 0
    %2232 = vmatpush2.bf16.msra.mxu0 0
    %2233 = vmatprep.mubr.bf16.mxu0 0
    %2234 = vmatmul.mubr.bf16.gmra.mxu0 %v2040
    %v2235 = vpop.f32.mrf.mxu0
    %v2236 = vadd.f32 0.0, %v2235
    %v2237 = vpop.f32.mrf.mxu0
    %v2238 = vadd.f32 0.0, %v2237
    %v2239 = vpop.f32.mrf.mxu0
    %v2240 = vpop.f32.mrf.mxu0
    %2241 = vdwg.mxu0
    %2242 = vmatprep.subr.bf16.mxu0 %v2168
    %2243 = vmatpush1.bf16.msra.mxu0 %v2167
    %2244 = vmatprep.subr.bf16.mxu0 %v2164
    %2245 = vmatpush1.bf16.msra.mxu0 %v2163
    %2246 = vmatprep.subr.bf16.mxu0 %v2160
    %2247 = vmatpush1.bf16.msra.mxu0 %v2159
    %2248 = vmatprep.subr.bf16.mxu0 %v2156
    %2249 = vmatpush1.bf16.msra.mxu0 %v2155
    %2250 = vmatprep.subr.bf16.mxu0 %v2152
    %2251 = vmatpush1.bf16.msra.mxu0 %v2151
    %2252 = vmatprep.subr.bf16.mxu0 %v2148
    %2253 = vmatpush1.bf16.msra.mxu0 %v2147
    %2254 = vmatprep.subr.bf16.mxu0 %v2144
    %2255 = vmatpush1.bf16.msra.mxu0 %v2143
    %2256 = vmatprep.subr.bf16.mxu0 %v2140
    %2257 = vmatpush1.bf16.msra.mxu0 %v2139
    %2258 = vmatprep.subr.bf16.mxu0 0
    %2259 = vmatpush2.bf16.msra.mxu0 0
    %2260 = vmatprep.subr.bf16.mxu0 0
    %2261 = vmatpush2.bf16.msra.mxu0 0
    %2262 = vmatprep.subr.bf16.mxu0 0
    %2263 = vmatpush2.bf16.msra.mxu0 0
    %2264 = vmatprep.subr.bf16.mxu0 0
    %2265 = vmatpush2.bf16.msra.mxu0 0
    %2266 = vmatprep.subr.bf16.mxu0 0
    %2267 = vmatpush2.bf16.msra.mxu0 0
    %2268 = vmatprep.subr.bf16.mxu0 0
    %2269 = vmatpush2.bf16.msra.mxu0 0
    %2270 = vmatprep.subr.bf16.mxu0 0
    %2271 = vmatpush2.bf16.msra.mxu0 0
    %2272 = vmatprep.subr.bf16.mxu0 0
    %2273 = vmatpush2.bf16.msra.mxu0 0
    %2274 = vmatprep.mubr.bf16.mxu0 0
    %2275 = vmatmul.mubr.bf16.gmra.mxu0 %v2040
    %v2276 = vpop.f32.mrf.mxu0
    %v2277 = vadd.f32 0.0, %v2276
    %v2278 = vpop.f32.mrf.mxu0
    %v2279 = vadd.f32 0.0, %v2278
    %v2280 = vpop.f32.mrf.mxu0
    %v2281 = vpop.f32.mrf.mxu0
    %2282 = vdwg.mxu0
    %v2283 = vadd.f32 %v2036, %v2236
    %v2284 = vadd.f32 %v2037, %v2238
    %v2285 = vadd.f32 %v2038, %v2277
    %v2286 = vadd.f32 %v2039, %v2279
    %v2287 = vxor.u32 %v2283, 2147483648
    %v2288 = vmul.f32 %v2287, 1.442695
    %v2289 = vpow.pop %v2288
    %v2290 = vadd.f32 %v2289, 1.0
    %v2291 = vrcp.pop %v2290
    %v2292 = vmul.f32 1.0, %v2291
    %v2293 = vxor.u32 %v2284, 2147483648
    %v2294 = vmul.f32 %v2293, 1.442695
    %v2295 = vpow.pop %v2294
    %v2296 = vadd.f32 %v2295, 1.0
    %v2297 = vrcp.pop %v2296
    %v2298 = vmul.f32 1.0, %v2297
    %v2299 = vtanh.pop %v2285
    %v2300 = vxor.u32 %v2286, 2147483648
    %v2301 = vmul.f32 %v2300, 1.442695
    %v2302 = vpow.pop %v2301
    %v2303 = vadd.f32 %v2302, 1.0
    %v2304 = vrcp.pop %v2303
    %v2305 = vmul.f32 1.0, %v2304
    %v2306 = vmul.f32 %v2298, %v2035
    %v2307 = vmul.f32 %v2292, %v2299
    %v2308 = vadd.f32 %v2306, %v2307
    %v2309 = vtanh.pop %v2308
    %v2310 = vmul.f32 %v2305, %v2309
    %v2311 = vpack.c.bf16 %v2310, %v2310
    %2312 = vst [vmem:[#allocation15] sm:$0x1] %v2311
    %v2313 = vld [vmem:[#allocation2] sm:$0xc]
    %v2314 = vld [vmem:[#allocation2 + $0x8] sm:$0xc]
    %v2315 = vld [vmem:[#allocation2 + $0x10] sm:$0xc]
    %v2316 = vld [vmem:[#allocation2 + $0x18] sm:$0xc]
    %2317 = vmatprep.subr.bf16.mxu0 %v2166
    %2318 = vmatpush1.bf16.msra.mxu0 %v2165
    %2319 = vmatprep.subr.bf16.mxu0 %v2162
    %2320 = vmatpush1.bf16.msra.mxu0 %v2161
    %2321 = vmatprep.subr.bf16.mxu0 %v2158
    %2322 = vmatpush1.bf16.msra.mxu0 %v2157
    %2323 = vmatprep.subr.bf16.mxu0 %v2154
    %2324 = vmatpush1.bf16.msra.mxu0 %v2153
    %2325 = vmatprep.subr.bf16.mxu0 %v2150
    %2326 = vmatpush1.bf16.msra.mxu0 %v2149
    %2327 = vmatprep.subr.bf16.mxu0 %v2146
    %2328 = vmatpush1.bf16.msra.mxu0 %v2145
    %2329 = vmatprep.subr.bf16.mxu0 %v2142
    %2330 = vmatpush1.bf16.msra.mxu0 %v2141
    %2331 = vmatprep.subr.bf16.mxu0 %v2138
    %2332 = vmatpush1.bf16.msra.mxu0 %v2137
    %2333 = vmatprep.subr.bf16.mxu0 0
    %2334 = vmatpush2.bf16.msra.mxu0 0
    %2335 = vmatprep.subr.bf16.mxu0 0
    %2336 = vmatpush2.bf16.msra.mxu0 0
    %2337 = vmatprep.subr.bf16.mxu0 0
    %2338 = vmatpush2.bf16.msra.mxu0 0
    %2339 = vmatprep.subr.bf16.mxu0 0
    %2340 = vmatpush2.bf16.msra.mxu0 0
    %2341 = vmatprep.subr.bf16.mxu0 0
    %2342 = vmatpush2.bf16.msra.mxu0 0
    %2343 = vmatprep.subr.bf16.mxu0 0
    %2344 = vmatpush2.bf16.msra.mxu0 0
    %2345 = vmatprep.subr.bf16.mxu0 0
    %2346 = vmatpush2.bf16.msra.mxu0 0
    %2347 = vmatprep.subr.bf16.mxu0 0
    %2348 = vmatpush2.bf16.msra.mxu0 0
    %2349 = vmatprep.mubr.bf16.mxu0 0
    %2350 = vmatmul.mubr.bf16.gmra.mxu0 %v2311
    %v2351 = vpop.f32.mrf.mxu0
    %v2352 = vadd.f32 0.0, %v2351
    %v2353 = vpop.f32.mrf.mxu0
    %v2354 = vadd.f32 0.0, %v2353
    %v2355 = vpop.f32.mrf.mxu0
    %v2356 = vpop.f32.mrf.mxu0
    %2357 = vdwg.mxu0
    %2358 = vmatprep.subr.bf16.mxu0 %v2168
    %2359 = vmatpush1.bf16.msra.mxu0 %v2167
    %2360 = vmatprep.subr.bf16.mxu0 %v2164
    %2361 = vmatpush1.bf16.msra.mxu0 %v2163
    %2362 = vmatprep.subr.bf16.mxu0 %v2160
    %2363 = vmatpush1.bf16.msra.mxu0 %v2159
    %2364 = vmatprep.subr.bf16.mxu0 %v2156
    %2365 = vmatpush1.bf16.msra.mxu0 %v2155
    %2366 = vmatprep.subr.bf16.mxu0 %v2152
    %2367 = vmatpush1.bf16.msra.mxu0 %v2151
    %2368 = vmatprep.subr.bf16.mxu0 %v2148
    %2369 = vmatpush1.bf16.msra.mxu0 %v2147
    %2370 = vmatprep.subr.bf16.mxu0 %v2144
    %2371 = vmatpush1.bf16.msra.mxu0 %v2143
    %2372 = vmatprep.subr.bf16.mxu0 %v2140
    %2373 = vmatpush1.bf16.msra.mxu0 %v2139
    %2374 = vmatprep.subr.bf16.mxu0 0
    %2375 = vmatpush2.bf16.msra.mxu0 0
    %2376 = vmatprep.subr.bf16.mxu0 0
    %2377 = vmatpush2.bf16.msra.mxu0 0
    %2378 = vmatprep.subr.bf16.mxu0 0
    %2379 = vmatpush2.bf16.msra.mxu0 0
    %2380 = vmatprep.subr.bf16.mxu0 0
    %2381 = vmatpush2.bf16.msra.mxu0 0
    %2382 = vmatprep.subr.bf16.mxu0 0
    %2383 = vmatpush2.bf16.msra.mxu0 0
    %2384 = vmatprep.subr.bf16.mxu0 0
    %2385 = vmatpush2.bf16.msra.mxu0 0
    %2386 = vmatprep.subr.bf16.mxu0 0
    %2387 = vmatpush2.bf16.msra.mxu0 0
    %2388 = vmatprep.subr.bf16.mxu0 0
    %2389 = vmatpush2.bf16.msra.mxu0 0
    %2390 = vmatprep.mubr.bf16.mxu0 0
    %2391 = vmatmul.mubr.bf16.gmra.mxu0 %v2311
    %v2392 = vpop.f32.mrf.mxu0
    %v2393 = vadd.f32 0.0, %v2392
    %v2394 = vpop.f32.mrf.mxu0
    %v2395 = vadd.f32 0.0, %v2394
    %v2396 = vpop.f32.mrf.mxu0
    %v2397 = vpop.f32.mrf.mxu0
    %2398 = vdwg.mxu0
    %v2403 = vrot.slane %v2352, 6
    %v2404 = vrot.slane %v2354, 6
    %v2405 = vrot.slane %v2393, 6
    %v2406 = vrot.slane %v2395, 6
    %v2411 = vadd.f32 %v2313, %v2403
    %v2412 = vadd.f32 %v2314, %v2404
    %v2413 = vadd.f32 %v2315, %v2405
    %v2414 = vadd.f32 %v2316, %v2406
    %v2415 = vxor.u32 %v2411, 2147483648
    %v2416 = vmul.f32 %v2415, 1.442695
    %v2417 = vpow.pop %v2416
    %v2418 = vadd.f32 %v2417, 1.0
    %v2419 = vrcp.pop %v2418
    %v2420 = vmul.f32 1.0, %v2419
    %v2421 = vxor.u32 %v2412, 2147483648
    %v2422 = vmul.f32 %v2421, 1.442695
    %v2423 = vpow.pop %v2422
    %v2424 = vadd.f32 %v2423, 1.0
    %v2425 = vrcp.pop %v2424
    %v2426 = vmul.f32 1.0, %v2425
    %v2427 = vtanh.pop %v2413
    %v2428 = vxor.u32 %v2414, 2147483648
    %v2429 = vmul.f32 %v2428, 1.442695
    %v2430 = vpow.pop %v2429
    %v2431 = vadd.f32 %v2430, 1.0
    %v2432 = vrcp.pop %v2431
    %v2433 = vmul.f32 1.0, %v2432
    %v2435 = vrot.slane %v2308, 6
    %v2437 = vmul.f32 %v2426, %v2435
    %v2438 = vmul.f32 %v2420, %v2427
    %v2439 = vadd.f32 %v2437, %v2438
    %v2440 = vtanh.pop %v2439
    %v2441 = vmul.f32 %v2433, %v2440
    %v2442 = vpack.c.bf16 %v2441, %v2441
    %2443 = vst [vmem:[#allocation15] sm:$0x2] %v2442
    %v2444 = vld [vmem:[#allocation2] sm:$0x30]
    %v2445 = vld [vmem:[#allocation2 + $0x8] sm:$0x30]
    %v2446 = vld [vmem:[#allocation2 + $0x10] sm:$0x30]
    %v2447 = vld [vmem:[#allocation2 + $0x18] sm:$0x30]
    %v2449 = vrot.slane %v2442, 1
    %2451 = vmatprep.subr.bf16.mxu0 %v2166
    %2452 = vmatpush1.bf16.msra.mxu0 %v2165
    %2453 = vmatprep.subr.bf16.mxu0 %v2162
    %2454 = vmatpush1.bf16.msra.mxu0 %v2161
    %2455 = vmatprep.subr.bf16.mxu0 %v2158
    %2456 = vmatpush1.bf16.msra.mxu0 %v2157
    %2457 = vmatprep.subr.bf16.mxu0 %v2154
    %2458 = vmatpush1.bf16.msra.mxu0 %v2153
    %2459 = vmatprep.subr.bf16.mxu0 %v2150
    %2460 = vmatpush1.bf16.msra.mxu0 %v2149
    %2461 = vmatprep.subr.bf16.mxu0 %v2146
    %2462 = vmatpush1.bf16.msra.mxu0 %v2145
    %2463 = vmatprep.subr.bf16.mxu0 %v2142
    %2464 = vmatpush1.bf16.msra.mxu0 %v2141
    %2465 = vmatprep.subr.bf16.mxu0 %v2138
    %2466 = vmatpush1.bf16.msra.mxu0 %v2137
    %2467 = vmatprep.subr.bf16.mxu0 0
    %2468 = vmatpush2.bf16.msra.mxu0 0
    %2469 = vmatprep.subr.bf16.mxu0 0
    %2470 = vmatpush2.bf16.msra.mxu0 0
    %2471 = vmatprep.subr.bf16.mxu0 0
    %2472 = vmatpush2.bf16.msra.mxu0 0
    %2473 = vmatprep.subr.bf16.mxu0 0
    %2474 = vmatpush2.bf16.msra.mxu0 0
    %2475 = vmatprep.subr.bf16.mxu0 0
    %2476 = vmatpush2.bf16.msra.mxu0 0
    %2477 = vmatprep.subr.bf16.mxu0 0
    %2478 = vmatpush2.bf16.msra.mxu0 0
    %2479 = vmatprep.subr.bf16.mxu0 0
    %2480 = vmatpush2.bf16.msra.mxu0 0
    %2481 = vmatprep.subr.bf16.mxu0 0
    %2482 = vmatpush2.bf16.msra.mxu0 0
    %2483 = vmatprep.mubr.bf16.mxu0 0
    %2484 = vmatmul.mubr.bf16.gmra.mxu0 %v2449
    %v2485 = vpop.f32.mrf.mxu0
    %v2486 = vadd.f32 0.0, %v2485
    %v2487 = vpop.f32.mrf.mxu0
    %v2488 = vadd.f32 0.0, %v2487
    %v2489 = vpop.f32.mrf.mxu0
    %v2490 = vpop.f32.mrf.mxu0
    %2491 = vdwg.mxu0
    %2492 = vmatprep.subr.bf16.mxu0 %v2168
    %2493 = vmatpush1.bf16.msra.mxu0 %v2167
    %2494 = vmatprep.subr.bf16.mxu0 %v2164
    %2495 = vmatpush1.bf16.msra.mxu0 %v2163
    %2496 = vmatprep.subr.bf16.mxu0 %v2160
    %2497 = vmatpush1.bf16.msra.mxu0 %v2159
    %2498 = vmatprep.subr.bf16.mxu0 %v2156
    %2499 = vmatpush1.bf16.msra.mxu0 %v2155
    %2500 = vmatprep.subr.bf16.mxu0 %v2152
    %2501 = vmatpush1.bf16.msra.mxu0 %v2151
    %2502 = vmatprep.subr.bf16.mxu0 %v2148
    %2503 = vmatpush1.bf16.msra.mxu0 %v2147
    %2504 = vmatprep.subr.bf16.mxu0 %v2144
    %2505 = vmatpush1.bf16.msra.mxu0 %v2143
    %2506 = vmatprep.subr.bf16.mxu0 %v2140
    %2507 = vmatpush1.bf16.msra.mxu0 %v2139
    %2508 = vmatprep.subr.bf16.mxu0 0
    %2509 = vmatpush2.bf16.msra.mxu0 0
    %2510 = vmatprep.subr.bf16.mxu0 0
    %2511 = vmatpush2.bf16.msra.mxu0 0
    %2512 = vmatprep.subr.bf16.mxu0 0
    %2513 = vmatpush2.bf16.msra.mxu0 0
    %2514 = vmatprep.subr.bf16.mxu0 0
    %2515 = vmatpush2.bf16.msra.mxu0 0
    %2516 = vmatprep.subr.bf16.mxu0 0
    %2517 = vmatpush2.bf16.msra.mxu0 0
    %2518 = vmatprep.subr.bf16.mxu0 0
    %2519 = vmatpush2.bf16.msra.mxu0 0
    %2520 = vmatprep.subr.bf16.mxu0 0
    %2521 = vmatpush2.bf16.msra.mxu0 0
    %2522 = vmatprep.subr.bf16.mxu0 0
    %2523 = vmatpush2.bf16.msra.mxu0 0
    %2524 = vmatprep.mubr.bf16.mxu0 0
    %2525 = vmatmul.mubr.bf16.gmra.mxu0 %v2449
    %v2526 = vpop.f32.mrf.mxu0
    %v2527 = vadd.f32 0.0, %v2526
    %v2528 = vpop.f32.mrf.mxu0
    %v2529 = vadd.f32 0.0, %v2528
    %v2530 = vpop.f32.mrf.mxu0
    %v2531 = vpop.f32.mrf.mxu0
    %2532 = vdwg.mxu0
    %v2537 = vrot.slane %v2486, 4
    %v2538 = vrot.slane %v2488, 4
    %v2539 = vrot.slane %v2527, 4
    %v2540 = vrot.slane %v2529, 4
    %v2545 = vadd.f32 %v2444, %v2537
    %v2546 = vadd.f32 %v2445, %v2538
    %v2547 = vadd.f32 %v2446, %v2539
    %v2548 = vadd.f32 %v2447, %v2540
    %v2549 = vxor.u32 %v2545, 2147483648
    %v2550 = vmul.f32 %v2549, 1.442695
    %v2551 = vpow.pop %v2550
    %v2552 = vadd.f32 %v2551, 1.0
    %v2553 = vrcp.pop %v2552
    %v2554 = vmul.f32 1.0, %v2553
    %v2555 = vxor.u32 %v2546, 2147483648
    %v2556 = vmul.f32 %v2555, 1.442695
    %v2557 = vpow.pop %v2556
    %v2558 = vadd.f32 %v2557, 1.0
    %v2559 = vrcp.pop %v2558
    %v2560 = vmul.f32 1.0, %v2559
    %v2561 = vtanh.pop %v2547
    %v2562 = vxor.u32 %v2548, 2147483648
    %v2563 = vmul.f32 %v2562, 1.442695
    %v2564 = vpow.pop %v2563
    %v2565 = vadd.f32 %v2564, 1.0
    %v2566 = vrcp.pop %v2565
    %v2567 = vmul.f32 1.0, %v2566
    %v2569 = vrot.slane %v2439, 6
    %v2571 = vmul.f32 %v2560, %v2569
    %v2572 = vmul.f32 %v2554, %v2561
    %v2573 = vadd.f32 %v2571, %v2572
    %v2574 = vtanh.pop %v2573
    %v2575 = vmul.f32 %v2567, %v2574
    %v2576 = vpack.c.bf16 %v2575, %v2575
    %2577 = vst [vmem:[#allocation15] sm:$0x4] %v2576
    %v2578 = vld [vmem:[#allocation2] sm:$0xc0]
    %v2579 = vld [vmem:[#allocation2 + $0x8] sm:$0xc0]
    %v2580 = vld [vmem:[#allocation2 + $0x10] sm:$0xc0]
    %v2581 = vld [vmem:[#allocation2 + $0x18] sm:$0xc0]
    %v2583 = vrot.slane %v2576, 2
    %2585 = vmatprep.subr.bf16.mxu0 %v2166
    %2586 = vmatpush1.bf16.msra.mxu0 %v2165
    %2587 = vmatprep.subr.bf16.mxu0 %v2162
    %2588 = vmatpush1.bf16.msra.mxu0 %v2161
    %2589 = vmatprep.subr.bf16.mxu0 %v2158
    %2590 = vmatpush1.bf16.msra.mxu0 %v2157
    %2591 = vmatprep.subr.bf16.mxu0 %v2154
    %2592 = vmatpush1.bf16.msra.mxu0 %v2153
    %2593 = vmatprep.subr.bf16.mxu0 %v2150
    %2594 = vmatpush1.bf16.msra.mxu0 %v2149
    %2595 = vmatprep.subr.bf16.mxu0 %v2146
    %2596 = vmatpush1.bf16.msra.mxu0 %v2145
    %2597 = vmatprep.subr.bf16.mxu0 %v2142
    %2598 = vmatpush1.bf16.msra.mxu0 %v2141
    %2599 = vmatprep.subr.bf16.mxu0 %v2138
    %2600 = vmatpush1.bf16.msra.mxu0 %v2137
    %2601 = vmatprep.subr.bf16.mxu0 0
    %2602 = vmatpush2.bf16.msra.mxu0 0
    %2603 = vmatprep.subr.bf16.mxu0 0
    %2604 = vmatpush2.bf16.msra.mxu0 0
    %2605 = vmatprep.subr.bf16.mxu0 0
    %2606 = vmatpush2.bf16.msra.mxu0 0
    %2607 = vmatprep.subr.bf16.mxu0 0
    %2608 = vmatpush2.bf16.msra.mxu0 0
    %2609 = vmatprep.subr.bf16.mxu0 0
    %2610 = vmatpush2.bf16.msra.mxu0 0
    %2611 = vmatprep.subr.bf16.mxu0 0
    %2612 = vmatpush2.bf16.msra.mxu0 0
    %2613 = vmatprep.subr.bf16.mxu0 0
    %2614 = vmatpush2.bf16.msra.mxu0 0
    %2615 = vmatprep.subr.bf16.mxu0 0
    %2616 = vmatpush2.bf16.msra.mxu0 0
    %2617 = vmatprep.mubr.bf16.mxu0 0
    %2618 = vmatmul.mubr.bf16.gmra.mxu0 %v2583
    %v2619 = vpop.f32.mrf.mxu0
    %v2620 = vadd.f32 0.0, %v2619
    %v2621 = vpop.f32.mrf.mxu0
    %v2622 = vadd.f32 0.0, %v2621
    %v2623 = vpop.f32.mrf.mxu0
    %v2624 = vpop.f32.mrf.mxu0
    %2625 = vdwg.mxu0
    %2626 = vmatprep.subr.bf16.mxu0 %v2168
    %2627 = vmatpush1.bf16.msra.mxu0 %v2167
    %2628 = vmatprep.subr.bf16.mxu0 %v2164
    %2629 = vmatpush1.bf16.msra.mxu0 %v2163
    %2630 = vmatprep.subr.bf16.mxu0 %v2160
    %2631 = vmatpush1.bf16.msra.mxu0 %v2159
    %2632 = vmatprep.subr.bf16.mxu0 %v2156
    %2633 = vmatpush1.bf16.msra.mxu0 %v2155
    %2634 = vmatprep.subr.bf16.mxu0 %v2152
    %2635 = vmatpush1.bf16.msra.mxu0 %v2151
    %2636 = vmatprep.subr.bf16.mxu0 %v2148
    %2637 = vmatpush1.bf16.msra.mxu0 %v2147
    %2638 = vmatprep.subr.bf16.mxu0 %v2144
    %2639 = vmatpush1.bf16.msra.mxu0 %v2143
    %2640 = vmatprep.subr.bf16.mxu0 %v2140
    %2641 = vmatpush1.bf16.msra.mxu0 %v2139
    %2642 = vmatprep.subr.bf16.mxu0 0
    %2643 = vmatpush2.bf16.msra.mxu0 0
    %2644 = vmatprep.subr.bf16.mxu0 0
    %2645 = vmatpush2.bf16.msra.mxu0 0
    %2646 = vmatprep.subr.bf16.mxu0 0
    %2647 = vmatpush2.bf16.msra.mxu0 0
    %2648 = vmatprep.subr.bf16.mxu0 0
    %2649 = vmatpush2.bf16.msra.mxu0 0
    %2650 = vmatprep.subr.bf16.mxu0 0
    %2651 = vmatpush2.bf16.msra.mxu0 0
    %2652 = vmatprep.subr.bf16.mxu0 0
    %2653 = vmatpush2.bf16.msra.mxu0 0
    %2654 = vmatprep.subr.bf16.mxu0 0
    %2655 = vmatpush2.bf16.msra.mxu0 0
    %2656 = vmatprep.subr.bf16.mxu0 0
    %2657 = vmatpush2.bf16.msra.mxu0 0
    %2658 = vmatprep.mubr.bf16.mxu0 0
    %2659 = vmatmul.mubr.bf16.gmra.mxu0 %v2583
    %v2660 = vpop.f32.mrf.mxu0
    %v2661 = vadd.f32 0.0, %v2660
    %v2662 = vpop.f32.mrf.mxu0
    %v2663 = vadd.f32 0.0, %v2662
    %v2664 = vpop.f32.mrf.mxu0
    %v2665 = vpop.f32.mrf.mxu0
    %2666 = vdwg.mxu0
    %v2671 = vrot.slane %v2620, 2
    %v2672 = vrot.slane %v2622, 2
    %v2673 = vrot.slane %v2661, 2
    %v2674 = vrot.slane %v2663, 2
    %v2679 = vadd.f32 %v2578, %v2671
    %v2680 = vadd.f32 %v2579, %v2672
    %v2681 = vadd.f32 %v2580, %v2673
    %v2682 = vadd.f32 %v2581, %v2674
    %v2683 = vxor.u32 %v2679, 2147483648
    %v2684 = vmul.f32 %v2683, 1.442695
    %v2685 = vpow.pop %v2684
    %v2686 = vadd.f32 %v2685, 1.0
    %v2687 = vrcp.pop %v2686
    %v2688 = vmul.f32 1.0, %v2687
    %v2689 = vxor.u32 %v2680, 2147483648
    %v2690 = vmul.f32 %v2689, 1.442695
    %v2691 = vpow.pop %v2690
    %v2692 = vadd.f32 %v2691, 1.0
    %v2693 = vrcp.pop %v2692
    %v2694 = vmul.f32 1.0, %v2693
    %v2695 = vtanh.pop %v2681
    %v2696 = vxor.u32 %v2682, 2147483648
    %v2697 = vmul.f32 %v2696, 1.442695
    %v2698 = vpow.pop %v2697
    %v2699 = vadd.f32 %v2698, 1.0
    %v2700 = vrcp.pop %v2699
    %v2701 = vmul.f32 1.0, %v2700
    %v2703 = vrot.slane %v2573, 6
    %v2705 = vmul.f32 %v2694, %v2703
    %v2706 = vmul.f32 %v2688, %v2695
    %v2707 = vadd.f32 %v2705, %v2706
    %v2708 = vtanh.pop %v2707
    %v2709 = vmul.f32 %v2701, %v2708
    %v2710 = vpack.c.bf16 %v2709, %v2709
    %2711 = vst [vmem:[#allocation15] sm:$0x8] %v2710
    %v2712 = vld [vmem:[#allocation2 + $0x20] sm:$0x3]
    %v2713 = vld [vmem:[#allocation2 + $0x28] sm:$0x3]
    %v2714 = vld [vmem:[#allocation2 + $0x30] sm:$0x3]
    %v2715 = vld [vmem:[#allocation2 + $0x38] sm:$0x3]
    %v2717 = vrot.slane %v2710, 3
    %2719 = vmatprep.subr.bf16.mxu0 %v2166
    %2720 = vmatpush1.bf16.msra.mxu0 %v2165
    %2721 = vmatprep.subr.bf16.mxu0 %v2162
    %2722 = vmatpush1.bf16.msra.mxu0 %v2161
    %2723 = vmatprep.subr.bf16.mxu0 %v2158
    %2724 = vmatpush1.bf16.msra.mxu0 %v2157
    %2725 = vmatprep.subr.bf16.mxu0 %v2154
    %2726 = vmatpush1.bf16.msra.mxu0 %v2153
    %2727 = vmatprep.subr.bf16.mxu0 %v2150
    %2728 = vmatpush1.bf16.msra.mxu0 %v2149
    %2729 = vmatprep.subr.bf16.mxu0 %v2146
    %2730 = vmatpush1.bf16.msra.mxu0 %v2145
    %2731 = vmatprep.subr.bf16.mxu0 %v2142
    %2732 = vmatpush1.bf16.msra.mxu0 %v2141
    %2733 = vmatprep.subr.bf16.mxu0 %v2138
    %2734 = vmatpush1.bf16.msra.mxu0 %v2137
    %2735 = vmatprep.subr.bf16.mxu0 0
    %2736 = vmatpush2.bf16.msra.mxu0 0
    %2737 = vmatprep.subr.bf16.mxu0 0
    %2738 = vmatpush2.bf16.msra.mxu0 0
    %2739 = vmatprep.subr.bf16.mxu0 0
    %2740 = vmatpush2.bf16.msra.mxu0 0
    %2741 = vmatprep.subr.bf16.mxu0 0
    %2742 = vmatpush2.bf16.msra.mxu0 0
    %2743 = vmatprep.subr.bf16.mxu0 0
    %2744 = vmatpush2.bf16.msra.mxu0 0
    %2745 = vmatprep.subr.bf16.mxu0 0
    %2746 = vmatpush2.bf16.msra.mxu0 0
    %2747 = vmatprep.subr.bf16.mxu0 0
    %2748 = vmatpush2.bf16.msra.mxu0 0
    %2749 = vmatprep.subr.bf16.mxu0 0
    %2750 = vmatpush2.bf16.msra.mxu0 0
    %2751 = vmatprep.mubr.bf16.mxu0 0
    %2752 = vmatmul.mubr.bf16.gmra.mxu0 %v2717
    %v2753 = vpop.f32.mrf.mxu0
    %v2754 = vadd.f32 0.0, %v2753
    %v2755 = vpop.f32.mrf.mxu0
    %v2756 = vadd.f32 0.0, %v2755
    %v2757 = vpop.f32.mrf.mxu0
    %v2758 = vpop.f32.mrf.mxu0
    %2759 = vdwg.mxu0
    %2760 = vmatprep.subr.bf16.mxu0 %v2168
    %2761 = vmatpush1.bf16.msra.mxu0 %v2167
    %2762 = vmatprep.subr.bf16.mxu0 %v2164
    %2763 = vmatpush1.bf16.msra.mxu0 %v2163
    %2764 = vmatprep.subr.bf16.mxu0 %v2160
    %2765 = vmatpush1.bf16.msra.mxu0 %v2159
    %2766 = vmatprep.subr.bf16.mxu0 %v2156
    %2767 = vmatpush1.bf16.msra.mxu0 %v2155
    %2768 = vmatprep.subr.bf16.mxu0 %v2152
    %2769 = vmatpush1.bf16.msra.mxu0 %v2151
    %2770 = vmatprep.subr.bf16.mxu0 %v2148
    %2771 = vmatpush1.bf16.msra.mxu0 %v2147
    %2772 = vmatprep.subr.bf16.mxu0 %v2144
    %2773 = vmatpush1.bf16.msra.mxu0 %v2143
    %2774 = vmatprep.subr.bf16.mxu0 %v2140
    %2775 = vmatpush1.bf16.msra.mxu0 %v2139
    %2776 = vmatprep.subr.bf16.mxu0 0
    %2777 = vmatpush2.bf16.msra.mxu0 0
    %2778 = vmatprep.subr.bf16.mxu0 0
    %2779 = vmatpush2.bf16.msra.mxu0 0
    %2780 = vmatprep.subr.bf16.mxu0 0
    %2781 = vmatpush2.bf16.msra.mxu0 0
    %2782 = vmatprep.subr.bf16.mxu0 0
    %2783 = vmatpush2.bf16.msra.mxu0 0
    %2784 = vmatprep.subr.bf16.mxu0 0
    %2785 = vmatpush2.bf16.msra.mxu0 0
    %2786 = vmatprep.subr.bf16.mxu0 0
    %2787 = vmatpush2.bf16.msra.mxu0 0
    %2788 = vmatprep.subr.bf16.mxu0 0
    %2789 = vmatpush2.bf16.msra.mxu0 0
    %2790 = vmatprep.subr.bf16.mxu0 0
    %2791 = vmatpush2.bf16.msra.mxu0 0
    %2792 = vmatprep.mubr.bf16.mxu0 0
    %2793 = vmatmul.mubr.bf16.gmra.mxu0 %v2717
    %v2794 = vpop.f32.mrf.mxu0
    %v2795 = vadd.f32 0.0, %v2794
    %v2796 = vpop.f32.mrf.mxu0
    %v2797 = vadd.f32 0.0, %v2796
    %v2798 = vpop.f32.mrf.mxu0
    %v2799 = vpop.f32.mrf.mxu0
    %2800 = vdwg.mxu0
    %v2801 = vadd.f32 %v2712, %v2754
    %v2802 = vadd.f32 %v2713, %v2756
    %v2803 = vadd.f32 %v2714, %v2795
    %v2804 = vadd.f32 %v2715, %v2797
    %v2805 = vxor.u32 %v2801, 2147483648
    %v2806 = vmul.f32 %v2805, 1.442695
    %v2807 = vpow.pop %v2806
    %v2808 = vadd.f32 %v2807, 1.0
    %v2809 = vrcp.pop %v2808
    %v2810 = vmul.f32 1.0, %v2809
    %v2811 = vxor.u32 %v2802, 2147483648
    %v2812 = vmul.f32 %v2811, 1.442695
    %v2813 = vpow.pop %v2812
    %v2814 = vadd.f32 %v2813, 1.0
    %v2815 = vrcp.pop %v2814
    %v2816 = vmul.f32 1.0, %v2815
    %v2817 = vtanh.pop %v2803
    %v2818 = vxor.u32 %v2804, 2147483648
    %v2819 = vmul.f32 %v2818, 1.442695
    %v2820 = vpow.pop %v2819
    %v2821 = vadd.f32 %v2820, 1.0
    %v2822 = vrcp.pop %v2821
    %v2823 = vmul.f32 1.0, %v2822
    %v2825 = vrot.slane %v2707, 6
    %v2827 = vmul.f32 %v2816, %v2825
    %v2828 = vmul.f32 %v2810, %v2817
    %v2829 = vadd.f32 %v2827, %v2828
    %v2830 = vtanh.pop %v2829
    %v2831 = vmul.f32 %v2823, %v2830
    %v2832 = vpack.c.bf16 %v2831, %v2831
    %2833 = vst [vmem:[#allocation15 + $0x4] sm:$0x1] %v2832
    %v2834 = vld [vmem:[#allocation2 + $0x20] sm:$0xc]
    %v2835 = vld [vmem:[#allocation2 + $0x28] sm:$0xc]
    %v2836 = vld [vmem:[#allocation2 + $0x30] sm:$0xc]
    %v2837 = vld [vmem:[#allocation2 + $0x38] sm:$0xc]
    %2838 = vmatprep.subr.bf16.mxu0 %v2166
    %2839 = vmatpush1.bf16.msra.mxu0 %v2165
    %2840 = vmatprep.subr.bf16.mxu0 %v2162
    %2841 = vmatpush1.bf16.msra.mxu0 %v2161
    %2842 = vmatprep.subr.bf16.mxu0 %v2158
    %2843 = vmatpush1.bf16.msra.mxu0 %v2157
    %2844 = vmatprep.subr.bf16.mxu0 %v2154
    %2845 = vmatpush1.bf16.msra.mxu0 %v2153
    %2846 = vmatprep.subr.bf16.mxu0 %v2150
    %2847 = vmatpush1.bf16.msra.mxu0 %v2149
    %2848 = vmatprep.subr.bf16.mxu0 %v2146
    %2849 = vmatpush1.bf16.msra.mxu0 %v2145
    %2850 = vmatprep.subr.bf16.mxu0 %v2142
    %2851 = vmatpush1.bf16.msra.mxu0 %v2141
    %2852 = vmatprep.subr.bf16.mxu0 %v2138
    %2853 = vmatpush1.bf16.msra.mxu0 %v2137
    %2854 = vmatprep.subr.bf16.mxu0 0
    %2855 = vmatpush2.bf16.msra.mxu0 0
    %2856 = vmatprep.subr.bf16.mxu0 0
    %2857 = vmatpush2.bf16.msra.mxu0 0
    %2858 = vmatprep.subr.bf16.mxu0 0
    %2859 = vmatpush2.bf16.msra.mxu0 0
    %2860 = vmatprep.subr.bf16.mxu0 0
    %2861 = vmatpush2.bf16.msra.mxu0 0
    %2862 = vmatprep.subr.bf16.mxu0 0
    %2863 = vmatpush2.bf16.msra.mxu0 0
    %2864 = vmatprep.subr.bf16.mxu0 0
    %2865 = vmatpush2.bf16.msra.mxu0 0
    %2866 = vmatprep.subr.bf16.mxu0 0
    %2867 = vmatpush2.bf16.msra.mxu0 0
    %2868 = vmatprep.subr.bf16.mxu0 0
    %2869 = vmatpush2.bf16.msra.mxu0 0
    %2870 = vmatprep.mubr.bf16.mxu0 0
    %2871 = vmatmul.mubr.bf16.gmra.mxu0 %v2832
    %v2872 = vpop.f32.mrf.mxu0
    %v2873 = vadd.f32 0.0, %v2872
    %v2874 = vpop.f32.mrf.mxu0
    %v2875 = vadd.f32 0.0, %v2874
    %v2876 = vpop.f32.mrf.mxu0
    %v2877 = vpop.f32.mrf.mxu0
    %2878 = vdwg.mxu0
    %2879 = vmatprep.subr.bf16.mxu0 %v2168
    %2880 = vmatpush1.bf16.msra.mxu0 %v2167
    %2881 = vmatprep.subr.bf16.mxu0 %v2164
    %2882 = vmatpush1.bf16.msra.mxu0 %v2163
    %2883 = vmatprep.subr.bf16.mxu0 %v2160
    %2884 = vmatpush1.bf16.msra.mxu0 %v2159
    %2885 = vmatprep.subr.bf16.mxu0 %v2156
    %2886 = vmatpush1.bf16.msra.mxu0 %v2155
    %2887 = vmatprep.subr.bf16.mxu0 %v2152
    %2888 = vmatpush1.bf16.msra.mxu0 %v2151
    %2889 = vmatprep.subr.bf16.mxu0 %v2148
    %2890 = vmatpush1.bf16.msra.mxu0 %v2147
    %2891 = vmatprep.subr.bf16.mxu0 %v2144
    %2892 = vmatpush1.bf16.msra.mxu0 %v2143
    %2893 = vmatprep.subr.bf16.mxu0 %v2140
    %2894 = vmatpush1.bf16.msra.mxu0 %v2139
    %2895 = vmatprep.subr.bf16.mxu0 0
    %2896 = vmatpush2.bf16.msra.mxu0 0
    %2897 = vmatprep.subr.bf16.mxu0 0
    %2898 = vmatpush2.bf16.msra.mxu0 0
    %2899 = vmatprep.subr.bf16.mxu0 0
    %2900 = vmatpush2.bf16.msra.mxu0 0
    %2901 = vmatprep.subr.bf16.mxu0 0
    %2902 = vmatpush2.bf16.msra.mxu0 0
    %2903 = vmatprep.subr.bf16.mxu0 0
    %2904 = vmatpush2.bf16.msra.mxu0 0
    %2905 = vmatprep.subr.bf16.mxu0 0
    %2906 = vmatpush2.bf16.msra.mxu0 0
    %2907 = vmatprep.subr.bf16.mxu0 0
    %2908 = vmatpush2.bf16.msra.mxu0 0
    %2909 = vmatprep.subr.bf16.mxu0 0
    %2910 = vmatpush2.bf16.msra.mxu0 0
    %2911 = vmatprep.mubr.bf16.mxu0 0
    %2912 = vmatmul.mubr.bf16.gmra.mxu0 %v2832
    %v2913 = vpop.f32.mrf.mxu0
    %v2914 = vadd.f32 0.0, %v2913
    %v2915 = vpop.f32.mrf.mxu0
    %v2916 = vadd.f32 0.0, %v2915
    %v2917 = vpop.f32.mrf.mxu0
    %v2918 = vpop.f32.mrf.mxu0
    %2919 = vdwg.mxu0
    %v2924 = vrot.slane %v2873, 6
    %v2925 = vrot.slane %v2875, 6
    %v2926 = vrot.slane %v2914, 6
    %v2927 = vrot.slane %v2916, 6
    %v2932 = vadd.f32 %v2834, %v2924
    %v2933 = vadd.f32 %v2835, %v2925
    %v2934 = vadd.f32 %v2836, %v2926
    %v2935 = vadd.f32 %v2837, %v2927
    %v2936 = vxor.u32 %v2932, 2147483648
    %v2937 = vmul.f32 %v2936, 1.442695
    %v2938 = vpow.pop %v2937
    %v2939 = vadd.f32 %v2938, 1.0
    %v2940 = vrcp.pop %v2939
    %v2941 = vmul.f32 1.0, %v2940
    %v2942 = vxor.u32 %v2933, 2147483648
    %v2943 = vmul.f32 %v2942, 1.442695
    %v2944 = vpow.pop %v2943
    %v2945 = vadd.f32 %v2944, 1.0
    %v2946 = vrcp.pop %v2945
    %v2947 = vmul.f32 1.0, %v2946
    %v2948 = vtanh.pop %v2934
    %v2949 = vxor.u32 %v2935, 2147483648
    %v2950 = vmul.f32 %v2949, 1.442695
    %v2951 = vpow.pop %v2950
    %v2952 = vadd.f32 %v2951, 1.0
    %v2953 = vrcp.pop %v2952
    %v2954 = vmul.f32 1.0, %v2953
    %v2956 = vrot.slane %v2829, 6
    %v2958 = vmul.f32 %v2947, %v2956
    %v2959 = vmul.f32 %v2941, %v2948
    %v2960 = vadd.f32 %v2958, %v2959
    %v2961 = vtanh.pop %v2960
    %v2962 = vmul.f32 %v2954, %v2961
    %v2963 = vpack.c.bf16 %v2962, %v2962
    %2964 = vst [vmem:[#allocation15 + $0x4] sm:$0x2] %v2963
    %v2965 = vld [vmem:[#allocation2 + $0x20] sm:$0x30]
    %v2966 = vld [vmem:[#allocation2 + $0x28] sm:$0x30]
    %v2967 = vld [vmem:[#allocation2 + $0x30] sm:$0x30]
    %v2968 = vld [vmem:[#allocation2 + $0x38] sm:$0x30]
    %v2970 = vrot.slane %v2963, 1
    %2972 = vmatprep.subr.bf16.mxu0 %v2166
    %2973 = vmatpush1.bf16.msra.mxu0 %v2165
    %2974 = vmatprep.subr.bf16.mxu0 %v2162
    %2975 = vmatpush1.bf16.msra.mxu0 %v2161
    %2976 = vmatprep.subr.bf16.mxu0 %v2158
    %2977 = vmatpush1.bf16.msra.mxu0 %v2157
    %2978 = vmatprep.subr.bf16.mxu0 %v2154
    %2979 = vmatpush1.bf16.msra.mxu0 %v2153
    %2980 = vmatprep.subr.bf16.mxu0 %v2150
    %2981 = vmatpush1.bf16.msra.mxu0 %v2149
    %2982 = vmatprep.subr.bf16.mxu0 %v2146
    %2983 = vmatpush1.bf16.msra.mxu0 %v2145
    %2984 = vmatprep.subr.bf16.mxu0 %v2142
    %2985 = vmatpush1.bf16.msra.mxu0 %v2141
    %2986 = vmatprep.subr.bf16.mxu0 %v2138
    %2987 = vmatpush1.bf16.msra.mxu0 %v2137
    %2988 = vmatprep.subr.bf16.mxu0 0
    %2989 = vmatpush2.bf16.msra.mxu0 0
    %2990 = vmatprep.subr.bf16.mxu0 0
    %2991 = vmatpush2.bf16.msra.mxu0 0
    %2992 = vmatprep.subr.bf16.mxu0 0
    %2993 = vmatpush2.bf16.msra.mxu0 0
    %2994 = vmatprep.subr.bf16.mxu0 0
    %2995 = vmatpush2.bf16.msra.mxu0 0
    %2996 = vmatprep.subr.bf16.mxu0 0
    %2997 = vmatpush2.bf16.msra.mxu0 0
    %2998 = vmatprep.subr.bf16.mxu0 0
    %2999 = vmatpush2.bf16.msra.mxu0 0
    %3000 = vmatprep.subr.bf16.mxu0 0
    %3001 = vmatpush2.bf16.msra.mxu0 0
    %3002 = vmatprep.subr.bf16.mxu0 0
    %3003 = vmatpush2.bf16.msra.mxu0 0
    %3004 = vmatprep.mubr.bf16.mxu0 0
    %3005 = vmatmul.mubr.bf16.gmra.mxu0 %v2970
    %v3006 = vpop.f32.mrf.mxu0
    %v3007 = vadd.f32 0.0, %v3006
    %v3008 = vpop.f32.mrf.mxu0
    %v3009 = vadd.f32 0.0, %v3008
    %v3010 = vpop.f32.mrf.mxu0
    %v3011 = vpop.f32.mrf.mxu0
    %3012 = vdwg.mxu0
    %3013 = vmatprep.subr.bf16.mxu0 %v2168
    %3014 = vmatpush1.bf16.msra.mxu0 %v2167
    %3015 = vmatprep.subr.bf16.mxu0 %v2164
    %3016 = vmatpush1.bf16.msra.mxu0 %v2163
    %3017 = vmatprep.subr.bf16.mxu0 %v2160
    %3018 = vmatpush1.bf16.msra.mxu0 %v2159
    %3019 = vmatprep.subr.bf16.mxu0 %v2156
    %3020 = vmatpush1.bf16.msra.mxu0 %v2155
    %3021 = vmatprep.subr.bf16.mxu0 %v2152
    %3022 = vmatpush1.bf16.msra.mxu0 %v2151
    %3023 = vmatprep.subr.bf16.mxu0 %v2148
    %3024 = vmatpush1.bf16.msra.mxu0 %v2147
    %3025 = vmatprep.subr.bf16.mxu0 %v2144
    %3026 = vmatpush1.bf16.msra.mxu0 %v2143
    %3027 = vmatprep.subr.bf16.mxu0 %v2140
    %3028 = vmatpush1.bf16.msra.mxu0 %v2139
    %3029 = vmatprep.subr.bf16.mxu0 0
    %3030 = vmatpush2.bf16.msra.mxu0 0
    %3031 = vmatprep.subr.bf16.mxu0 0
    %3032 = vmatpush2.bf16.msra.mxu0 0
    %3033 = vmatprep.subr.bf16.mxu0 0
    %3034 = vmatpush2.bf16.msra.mxu0 0
    %3035 = vmatprep.subr.bf16.mxu0 0
    %3036 = vmatpush2.bf16.msra.mxu0 0
    %3037 = vmatprep.subr.bf16.mxu0 0
    %3038 = vmatpush2.bf16.msra.mxu0 0
    %3039 = vmatprep.subr.bf16.mxu0 0
    %3040 = vmatpush2.bf16.msra.mxu0 0
    %3041 = vmatprep.subr.bf16.mxu0 0
    %3042 = vmatpush2.bf16.msra.mxu0 0
    %3043 = vmatprep.subr.bf16.mxu0 0
    %3044 = vmatpush2.bf16.msra.mxu0 0
    %3045 = vmatprep.mubr.bf16.mxu0 0
    %3046 = vmatmul.mubr.bf16.gmra.mxu0 %v2970
    %v3047 = vpop.f32.mrf.mxu0
    %v3048 = vadd.f32 0.0, %v3047
    %v3049 = vpop.f32.mrf.mxu0
    %v3050 = vadd.f32 0.0, %v3049
    %v3051 = vpop.f32.mrf.mxu0
    %v3052 = vpop.f32.mrf.mxu0
    %3053 = vdwg.mxu0
    %v3058 = vrot.slane %v3007, 4
    %v3059 = vrot.slane %v3009, 4
    %v3060 = vrot.slane %v3048, 4
    %v3061 = vrot.slane %v3050, 4
    %v3066 = vadd.f32 %v2965, %v3058
    %v3067 = vadd.f32 %v2966, %v3059
    %v3068 = vadd.f32 %v2967, %v3060
    %v3069 = vadd.f32 %v2968, %v3061
    %v3070 = vxor.u32 %v3066, 2147483648
    %v3071 = vmul.f32 %v3070, 1.442695
    %v3072 = vpow.pop %v3071
    %v3073 = vadd.f32 %v3072, 1.0
    %v3074 = vrcp.pop %v3073
    %v3075 = vmul.f32 1.0, %v3074
    %v3076 = vxor.u32 %v3067, 2147483648
    %v3077 = vmul.f32 %v3076, 1.442695
    %v3078 = vpow.pop %v3077
    %v3079 = vadd.f32 %v3078, 1.0
    %v3080 = vrcp.pop %v3079
    %v3081 = vmul.f32 1.0, %v3080
    %v3082 = vtanh.pop %v3068
    %v3083 = vxor.u32 %v3069, 2147483648
    %v3084 = vmul.f32 %v3083, 1.442695
    %v3085 = vpow.pop %v3084
    %v3086 = vadd.f32 %v3085, 1.0
    %v3087 = vrcp.pop %v3086
    %v3088 = vmul.f32 1.0, %v3087
    %v3090 = vrot.slane %v2960, 6
    %v3092 = vmul.f32 %v3081, %v3090
    %v3093 = vmul.f32 %v3075, %v3082
    %v3094 = vadd.f32 %v3092, %v3093
    %v3095 = vtanh.pop %v3094
    %v3096 = vmul.f32 %v3088, %v3095
    %v3097 = vpack.c.bf16 %v3096, %v3096
    %3098 = vst [vmem:[#allocation15 + $0x4] sm:$0x4] %v3097
    %v3099 = vld [vmem:[#allocation2 + $0x20] sm:$0xc0]
    %v3100 = vld [vmem:[#allocation2 + $0x28] sm:$0xc0]
    %v3101 = vld [vmem:[#allocation2 + $0x30] sm:$0xc0]
    %v3102 = vld [vmem:[#allocation2 + $0x38] sm:$0xc0]
    %v3104 = vrot.slane %v3097, 2
    %3106 = vmatprep.subr.bf16.mxu0 %v2166
    %3107 = vmatpush1.bf16.msra.mxu0 %v2165
    %3108 = vmatprep.subr.bf16.mxu0 %v2162
    %3109 = vmatpush1.bf16.msra.mxu0 %v2161
    %3110 = vmatprep.subr.bf16.mxu0 %v2158
    %3111 = vmatpush1.bf16.msra.mxu0 %v2157
    %3112 = vmatprep.subr.bf16.mxu0 %v2154
    %3113 = vmatpush1.bf16.msra.mxu0 %v2153
    %3114 = vmatprep.subr.bf16.mxu0 %v2150
    %3115 = vmatpush1.bf16.msra.mxu0 %v2149
    %3116 = vmatprep.subr.bf16.mxu0 %v2146
    %3117 = vmatpush1.bf16.msra.mxu0 %v2145
    %3118 = vmatprep.subr.bf16.mxu0 %v2142
    %3119 = vmatpush1.bf16.msra.mxu0 %v2141
    %3120 = vmatprep.subr.bf16.mxu0 %v2138
    %3121 = vmatpush1.bf16.msra.mxu0 %v2137
    %3122 = vmatprep.subr.bf16.mxu0 0
    %3123 = vmatpush2.bf16.msra.mxu0 0
    %3124 = vmatprep.subr.bf16.mxu0 0
    %3125 = vmatpush2.bf16.msra.mxu0 0
    %3126 = vmatprep.subr.bf16.mxu0 0
    %3127 = vmatpush2.bf16.msra.mxu0 0
    %3128 = vmatprep.subr.bf16.mxu0 0
    %3129 = vmatpush2.bf16.msra.mxu0 0
    %3130 = vmatprep.subr.bf16.mxu0 0
    %3131 = vmatpush2.bf16.msra.mxu0 0
    %3132 = vmatprep.subr.bf16.mxu0 0
    %3133 = vmatpush2.bf16.msra.mxu0 0
    %3134 = vmatprep.subr.bf16.mxu0 0
    %3135 = vmatpush2.bf16.msra.mxu0 0
    %3136 = vmatprep.subr.bf16.mxu0 0
    %3137 = vmatpush2.bf16.msra.mxu0 0
    %3138 = vmatprep.mubr.bf16.mxu0 0
    %3139 = vmatmul.mubr.bf16.gmra.mxu0 %v3104
    %v3140 = vpop.f32.mrf.mxu0
    %v3141 = vadd.f32 0.0, %v3140
    %v3142 = vpop.f32.mrf.mxu0
    %v3143 = vadd.f32 0.0, %v3142
    %v3144 = vpop.f32.mrf.mxu0
    %v3145 = vpop.f32.mrf.mxu0
    %3146 = vdwg.mxu0
    %3147 = vmatprep.subr.bf16.mxu0 %v2168
    %3148 = vmatpush1.bf16.msra.mxu0 %v2167
    %3149 = vmatprep.subr.bf16.mxu0 %v2164
    %3150 = vmatpush1.bf16.msra.mxu0 %v2163
    %3151 = vmatprep.subr.bf16.mxu0 %v2160
    %3152 = vmatpush1.bf16.msra.mxu0 %v2159
    %3153 = vmatprep.subr.bf16.mxu0 %v2156
    %3154 = vmatpush1.bf16.msra.mxu0 %v2155
    %3155 = vmatprep.subr.bf16.mxu0 %v2152
    %3156 = vmatpush1.bf16.msra.mxu0 %v2151
    %3157 = vmatprep.subr.bf16.mxu0 %v2148
    %3158 = vmatpush1.bf16.msra.mxu0 %v2147
    %3159 = vmatprep.subr.bf16.mxu0 %v2144
    %3160 = vmatpush1.bf16.msra.mxu0 %v2143
    %3161 = vmatprep.subr.bf16.mxu0 %v2140
    %3162 = vmatpush1.bf16.msra.mxu0 %v2139
    %3163 = vmatprep.subr.bf16.mxu0 0
    %3164 = vmatpush2.bf16.msra.mxu0 0
    %3165 = vmatprep.subr.bf16.mxu0 0
    %3166 = vmatpush2.bf16.msra.mxu0 0
    %3167 = vmatprep.subr.bf16.mxu0 0
    %3168 = vmatpush2.bf16.msra.mxu0 0
    %3169 = vmatprep.subr.bf16.mxu0 0
    %3170 = vmatpush2.bf16.msra.mxu0 0
    %3171 = vmatprep.subr.bf16.mxu0 0
    %3172 = vmatpush2.bf16.msra.mxu0 0
    %3173 = vmatprep.subr.bf16.mxu0 0
    %3174 = vmatpush2.bf16.msra.mxu0 0
    %3175 = vmatprep.subr.bf16.mxu0 0
    %3176 = vmatpush2.bf16.msra.mxu0 0
    %3177 = vmatprep.subr.bf16.mxu0 0
    %3178 = vmatpush2.bf16.msra.mxu0 0
    %3179 = vmatprep.mubr.bf16.mxu0 0
    %3180 = vmatmul.mubr.bf16.gmra.mxu0 %v3104
    %v3181 = vpop.f32.mrf.mxu0
    %v3182 = vadd.f32 0.0, %v3181
    %v3183 = vpop.f32.mrf.mxu0
    %v3184 = vadd.f32 0.0, %v3183
    %v3185 = vpop.f32.mrf.mxu0
    %v3186 = vpop.f32.mrf.mxu0
    %3187 = vdwg.mxu0
    %v3192 = vrot.slane %v3141, 2
    %v3193 = vrot.slane %v3143, 2
    %v3194 = vrot.slane %v3182, 2
    %v3195 = vrot.slane %v3184, 2
    %v3200 = vadd.f32 %v3099, %v3192
    %v3201 = vadd.f32 %v3100, %v3193
    %v3202 = vadd.f32 %v3101, %v3194
    %v3203 = vadd.f32 %v3102, %v3195
    %v3204 = vxor.u32 %v3200, 2147483648
    %v3205 = vmul.f32 %v3204, 1.442695
    %v3206 = vpow.pop %v3205
    %v3207 = vadd.f32 %v3206, 1.0
    %v3208 = vrcp.pop %v3207
    %v3209 = vmul.f32 1.0, %v3208
    %v3210 = vxor.u32 %v3201, 2147483648
    %v3211 = vmul.f32 %v3210, 1.442695
    %v3212 = vpow.pop %v3211
    %v3213 = vadd.f32 %v3212, 1.0
    %v3214 = vrcp.pop %v3213
    %v3215 = vmul.f32 1.0, %v3214
    %v3216 = vtanh.pop %v3202
    %v3217 = vxor.u32 %v3203, 2147483648
    %v3218 = vmul.f32 %v3217, 1.442695
    %v3219 = vpow.pop %v3218
    %v3220 = vadd.f32 %v3219, 1.0
    %v3221 = vrcp.pop %v3220
    %v3222 = vmul.f32 1.0, %v3221
    %v3224 = vrot.slane %v3094, 6
    %v3226 = vmul.f32 %v3215, %v3224
    %v3227 = vmul.f32 %v3209, %v3216
    %v3228 = vadd.f32 %v3226, %v3227
    %v3229 = vtanh.pop %v3228
    %v3230 = vmul.f32 %v3222, %v3229
    %v3231 = vpack.c.bf16 %v3230, %v3230
    %3232 = vst [vmem:[#allocation15 + $0x4] sm:$0x8] %v3231
    %s3233 = scalar_lea.vmem [#allocation16], 2
    %3234 = vst [vmem:[%s3233 - $0x6] sm:$0xc0] %v3230
    %s3235 = scalar_lea.vmem [#allocation18], 2
    %3236 = vst [vmem:[%s3235 - $0x6] sm:$0xc0] %v3228
    // Predicated region
    $region66: #{tpu_custom_call.1} parent=1 // pred_check
      _
    $region67: #{tpu_custom_call.1} parent=1 // pred_check_branch
      %3238 = sbr.rel (0) target = $region69
    $region68: #{tpu_custom_call.1} parent=1 // pred_region
      %s3240 = ssub.s32 128, 128
      %3241 = vsyncadd [#allocation5], %s3240
      %s3242 = sshll.u32 [#allocation15], 4
      %s3243 = int_to_ptr.vmem [resolvable:$true] %s3242
      %3248 = dma.vmem_to_hbm [thread:$0]  %s3243, 128, %s9, [#allocation5], 64, 64, 4
    $region69: #{tpu_custom_call.1} parent=1 // pred_fallthru
      _
    // Predicated region
    $region70: #{tpu_custom_call.1} parent=1 // pred_check
      _
    $region71: #{tpu_custom_call.1} parent=1 // pred_check_branch
      %3250 = sbr.rel (0) target = $region73
    $region72: #{tpu_custom_call.1} parent=1 // pred_region
      %s3252 = ssub.s32 64, 64
      %3253 = vsyncadd [#allocation17], %s3252
      %s3254 = sshll.u32 [#allocation16], 4
      %s3255 = int_to_ptr.vmem [resolvable:$true] %s3254
      %3260 = dma.vmem_to_hbm [thread:$0]  %s3255, 64, %s10, [#allocation17], 32, 32, 2
    $region73: #{tpu_custom_call.1} parent=1 // pred_fallthru
      _
    // Predicated region
    $region74: #{tpu_custom_call.1} parent=1 // pred_check
      _
    $region75: #{tpu_custom_call.1} parent=1 // pred_check_branch
      %3262 = sbr.rel (0) target = $region77
    $region76: #{tpu_custom_call.1} parent=1 // pred_region
      %s3264 = ssub.s32 64, 64
      %3265 = vsyncadd [#allocation17], %s3264
      %s3266 = sshll.u32 [#allocation18], 4
      %s3267 = int_to_ptr.vmem [resolvable:$true] %s3266
      %3272 = dma.vmem_to_hbm [thread:$0]  %s3267, 64, %s11, [#allocation17], 32, 32, 2
    $region77: #{tpu_custom_call.1} parent=1 // pred_fallthru
      _
    // Predicated region
    $region78: #{tpu_custom_call.1} parent=1 // pred_check
      _
    $region79: #{tpu_custom_call.1} parent=1 // pred_check_branch
      %3274 = sbr.rel (0) target = $region81
    $region80: #{tpu_custom_call.1} parent=1 // pred_region
      %3275 = dma.done [#allocation5], 128
    $region81: #{tpu_custom_call.1} parent=1 // pred_fallthru
      _
    // Predicated region
    $region82: #{tpu_custom_call.1} parent=1 // pred_check
      _
    $region83: #{tpu_custom_call.1} parent=1 // pred_check_branch
      %3277 = sbr.rel (0) target = $region85
    $region84: #{tpu_custom_call.1} parent=1 // pred_region
      %3278 = dma.done [#allocation17], 64
    $region85: #{tpu_custom_call.1} parent=1 // pred_fallthru
      _
    // Predicated region
    $region86: #{tpu_custom_call.1} parent=1 // pred_check
      _
    $region87: #{tpu_custom_call.1} parent=1 // pred_check_branch
      %3280 = sbr.rel (0) target = $region89
    $region88: #{tpu_custom_call.1} parent=1 // pred_region
      %3281 = dma.done [#allocation17], 64
    $region89: #{tpu_custom_call.1} parent=1 // pred_fallthru
      _
    %3282 = vsyncpa [#allocation4], 1
    %3283 = vsyncpa [#allocation7], 1
    %3284 = vsyncpa [#allocation10], 1
    %3285 = vsyncpa [#allocation13], 1
    %3286 = vsyncpa [#allocation5], 1
    %3287 = vsyncpa [#allocation17], 1

</llo_original>
